<compile_context>
chip_gen: v5e
topology: v5e:2x2
jax: 0.10.0
libtpu: 0.0.40
codegen_flags: <defaults>
</compile_context>

<pallas_src>
import functools
import math

import jax
import jax.numpy as jnp
from jax.experimental import pallas as pl
from jax.experimental.pallas import tpu as pltpu

# ----------------------------- config (small, synthetic) -----------------------------
VOCAB = 128
HIDDEN = 128
N_LAYERS = 2
N_HEADS = 4
N_KV_HEADS = 2
HEAD_DIM = HIDDEN // N_HEADS               # 32
HALF = HEAD_DIM // 2                       # 16
KV_DIM = N_KV_HEADS * HEAD_DIM             # 64
QK_DIM = HIDDEN + KV_DIM                   # 192  (q|k columns of the packed proj)
QKV_DIM = HIDDEN + 2 * KV_DIM              # 256  (q|k|v packed)
REP = N_HEADS // N_KV_HEADS                # GQA group size
INTER = 256
EPS = 1e-6
ROPE_THETA = 10000.0


def _inter_tile(i):
    # TODO(synk): for production Qwen2 (INTER ~19k) size this against VMEM
    # (v7x 64 MiB incl. double buffering; v6e/v5e can take ~2x larger tiles).
    return 128 if (i % 128 == 0 and i >= 256) else i


def _vocab_tile(v):
    for t in (512, 256, 128):
        if v % t == 0:
            return t
    return v


# ----------------------------- kernel 1: RMSNorm + QKV proj + RoPE -----------------------------
def _qkv_rope_kernel(x_ref, lnw_ref, w_ref, b_ref, cos_ref, sin_ref, o_ref):
    x = x_ref[0].astype(jnp.float32)                              # (S, H)
    var = jnp.mean(x * x, axis=-1, keepdims=True)
    xn = x * jax.lax.rsqrt(var + EPS) * lnw_ref[...]
    base = jnp.dot(xn.astype(jnp.bfloat16), w_ref[...],
                   preferred_element_type=jnp.float32) + b_ref[...]   # (S, 256)

    # In-kernel RoPE (exact rotate_half) on the q|k columns via two static lane
    # shifts + a per-lane select (XLU/VPU work, no extra MXU matmul).
    #   first half of each 32-wide head:  -base[c + 16]
    #   second half of each head:          base[c - 16]
    left = jnp.concatenate([base[:, HALF:], base[:, :HALF]], axis=1)       # base[c+16]
    right = jnp.concatenate([base[:, QKV_DIM - HALF:], base[:, :QKV_DIM - HALF]],
                            axis=1)                                        # base[c-16]
    lane = jax.lax.broadcasted_iota(jnp.int32, base.shape, 1)
    rot = jnp.where((lane % HEAD_DIM) < HALF, -left, right)

    n_rep = QKV_DIM // HEAD_DIM
    cos = jnp.concatenate([cos_ref[0]] * n_rep, axis=1)                    # (S, 256)
    sin = jnp.concatenate([sin_ref[0]] * n_rep, axis=1)
    rope = base * cos + rot * sin
    # v columns (lane >= QK_DIM) pass through un-rotated.
    o_ref[0] = jnp.where(lane < QK_DIM, rope, base).astype(o_ref.dtype)


def qkv_rope_proj(x, lnw, w_qkv, b_qkv, cos, sin):
    """x: (B,S,H) bf16; cos/sin: (B,S,D) f32 -> (B,S,QKV_DIM) bf16."""
    B, S, H = x.shape
    N = w_qkv.shape[1]
    return pl.pallas_call(
        _qkv_rope_kernel,
        out_shape=jax.ShapeDtypeStruct((B, S, N), jnp.bfloat16),
        grid=(B,),
        in_specs=[
            pl.BlockSpec((1, S, H), lambda b: (b, 0, 0)),
            pl.BlockSpec((1, H), lambda b: (0, 0)),
            pl.BlockSpec((H, N), lambda b: (0, 0)),        # weight-stationary
            pl.BlockSpec((1, N), lambda b: (0, 0)),
            pl.BlockSpec((1, S, HEAD_DIM), lambda b: (b, 0, 0)),
            pl.BlockSpec((1, S, HEAD_DIM), lambda b: (b, 0, 0)),
        ],
        out_specs=pl.BlockSpec((1, S, N), lambda b: (b, 0, 0)),
        compiler_params=pltpu.CompilerParams(dimension_semantics=("parallel",)),
    )(x, lnw.reshape(1, H), w_qkv, b_qkv, cos, sin)


# ----------------------------- kernel 2: attention + o-proj + residual -----------------------------
def _attn_block_kernel(mask_ref, qkv_ref, pk_ref, pv_ref, wo_ref, res_ref, o_ref,
                       *, scale, past):
    S = qkv_ref.shape[1]
    T = past + S
    qkv = qkv_ref[0]                                              # (S, 256) bf16
    q = qkv[:, :HIDDEN]                                           # (S, 128)
    k_new = qkv[:, HIDDEN:QK_DIM]                                 # (S, 64)
    v_new = qkv[:, QK_DIM:]                                       # (S, 64)

    # causal + padding mask built in-kernel (no (B,1,S,T) f32 stream from HBM)
    kpos = jax.lax.broadcasted_iota(jnp.int32, (S, T), 1)
    qpos = past + jax.lax.broadcasted_iota(jnp.int32, (S, T), 0)
    allowed = (kpos <= qpos) & (mask_ref[0] > 0.5)                # (S,T) & (1,T)

    outs = []
    for g in range(N_KV_HEADS):                                   # GQA: no KV repeat
        k_cat = jnp.concatenate(
            [pk_ref[0, g], k_new[:, g * HEAD_DIM:(g + 1) * HEAD_DIM]], axis=0)  # (T,D)
        v_cat = jnp.concatenate(
            [pv_ref[0, g], v_new[:, g * HEAD_DIM:(g + 1) * HEAD_DIM]], axis=0)
        for r in range(REP):
            h = g * REP + r
            qh = q[:, h * HEAD_DIM:(h + 1) * HEAD_DIM]            # (S, D)
            s = jax.lax.dot_general(qh, k_cat, (((1,), (1,)), ((), ())),
                                    preferred_element_type=jnp.float32) * scale
            s = jnp.where(allowed, s, -1e30)
            s = s - jnp.max(s, axis=-1, keepdims=True)
            p = jnp.exp(s)
            p = p * pl.reciprocal(jnp.sum(p, axis=-1, keepdims=True), approx=True)
            outs.append(jnp.dot(p.astype(jnp.bfloat16), v_cat,
                                preferred_element_type=jnp.float32))          # (S, D)
    attn = jnp.concatenate(outs, axis=1)                          # (S, 128) lane-dense
    o = jnp.dot(attn.astype(jnp.bfloat16), wo_ref[...],
                preferred_element_type=jnp.float32)
    o_ref[0] = (res_ref[0].astype(jnp.float32) + o).astype(o_ref.dtype)


def attn_block(mask3, qkv, past_k, past_v, wo, resid, *, past):
    """mask3: (B,1,T) f32; qkv: (B,S,QKV_DIM) bf16; past_k/v: (B,KVH,PAST,D) bf16;
    resid: (B,S,H) bf16 -> (B,S,H) bf16 (residual + attn @ Wo)."""
    B, S, H = resid.shape
    T = past + S
    kern = functools.partial(_attn_block_kernel,
                             scale=1.0 / math.sqrt(HEAD_DIM), past=past)
    return pl.pallas_call(
        kern,
        out_shape=jax.ShapeDtypeStruct((B, S, H), jnp.bfloat16),
        grid=(B,),
        in_specs=[
            pl.BlockSpec((1, 1, T), lambda b: (b, 0, 0)),
            pl.BlockSpec((1, S, QKV_DIM), lambda b: (b, 0, 0)),
            pl.BlockSpec((1, N_KV_HEADS, past, HEAD_DIM), lambda b: (b, 0, 0, 0)),
            pl.BlockSpec((1, N_KV_HEADS, past, HEAD_DIM), lambda b: (b, 0, 0, 0)),
            pl.BlockSpec((H, H), lambda b: (0, 0)),
            pl.BlockSpec((1, S, H), lambda b: (b, 0, 0)),
        ],
        out_specs=pl.BlockSpec((1, S, H), lambda b: (b, 0, 0)),
        compiler_params=pltpu.CompilerParams(dimension_semantics=("parallel",)),
    )(mask3, qkv, past_k, past_v, wo, resid)


# ----------------------------- kernel 3: RMSNorm + SwiGLU MLP + residual -----------------------------
def _mlp_kernel(x_ref, lnw_ref, wg_ref, wu_ref, wd_ref, o_ref, acc_ref):
    j = pl.program_id(1)
    x = x_ref[0].astype(jnp.float32)                              # (S, H)
    var = jnp.mean(x * x, axis=-1, keepdims=True)
    xn = x * jax.lax.rsqrt(var + EPS) * lnw_ref[...]
    xb = xn.astype(jnp.bfloat16)
    g = jnp.dot(xb, wg_ref[...], preferred_element_type=jnp.float32)
    u = jnp.dot(xb, wu_ref[...], preferred_element_type=jnp.float32)
    h = (g * jax.nn.sigmoid(g) * u).astype(jnp.bfloat16)

    @pl.when(j == 0)
    def _():
        acc_ref[...] = jnp.zeros_like(acc_ref)

    acc_ref[...] += jnp.dot(h, wd_ref[...], preferred_element_type=jnp.float32)

    @pl.when(j == pl.num_programs(1) - 1)
    def _():
        o_ref[0] = (x + acc_ref[...]).astype(o_ref.dtype)


def mlp_block(x, lnw, wg, wu, wd):
    """x: (B,S,H) bf16 -> (B,S,H) bf16; INTER axis streamed as a reduction."""
    B, S, H = x.shape
    I = wg.shape[1]
    ti = _inter_tile(I)
    return pl.pallas_call(
        _mlp_kernel,
        out_shape=jax.ShapeDtypeStruct((B, S, H), jnp.bfloat16),
        grid=(B, I // ti),
        in_specs=[
            pl.BlockSpec((1, S, H), lambda b, j: (b, 0, 0)),
            pl.BlockSpec((1, H), lambda b, j: (0, 0)),
            pl.BlockSpec((H, ti), lambda b, j: (0, j)),
            pl.BlockSpec((H, ti), lambda b, j: (0, j)),
            pl.BlockSpec((ti, H), lambda b, j: (j, 0)),
        ],
        out_specs=pl.BlockSpec((1, S, H), lambda b, j: (b, 0, 0)),
        scratch_shapes=[pltpu.VMEM((S, H), jnp.float32)],
        compiler_params=pltpu.CompilerParams(
            dimension_semantics=("parallel", "arbitrary")),
    )(x, lnw.reshape(1, H), wg, wu, wd)


# ----------------------------- kernel 4: final RMSNorm + lm_head -----------------------------
def _head_kernel(x_ref, lnw_ref, w_ref, o_ref):
    x = x_ref[0].astype(jnp.float32)
    var = jnp.mean(x * x, axis=-1, keepdims=True)
    xn = x * jax.lax.rsqrt(var + EPS) * lnw_ref[...]
    o_ref[0] = jnp.dot(xn.astype(jnp.bfloat16), w_ref[...],
                       preferred_element_type=jnp.float32)


def lm_head_proj(x, lnw, w):
    """x: (B,S,H) bf16 -> logits (B,S,V) f32; vocab axis tiled."""
    B, S, H = x.shape
    V = w.shape[1]
    tv = _vocab_tile(V)
    return pl.pallas_call(
        _head_kernel,
        out_shape=jax.ShapeDtypeStruct((B, S, V), jnp.float32),
        grid=(B, V // tv),
        in_specs=[
            pl.BlockSpec((1, S, H), lambda b, j: (b, 0, 0)),
            pl.BlockSpec((1, H), lambda b, j: (0, 0)),
            pl.BlockSpec((H, tv), lambda b, j: (0, j)),
        ],
        out_specs=pl.BlockSpec((1, S, tv), lambda b, j: (b, 0, j)),
        compiler_params=pltpu.CompilerParams(
            dimension_semantics=("parallel", "parallel")),
    )(x, lnw.reshape(1, H), w)


# ----------------------------- plain-JAX glue -----------------------------
def _rope_cos_sin(position_ids):
    """position_ids: (B, S) int32 -> cos, sin each (B, S, HEAD_DIM) f32."""
    inv_freq = 1.0 / (ROPE_THETA ** (jnp.arange(0, HEAD_DIM, 2, dtype=jnp.float32)
                                     / HEAD_DIM))
    ang = position_ids.astype(jnp.float32)[..., None] * inv_freq          # (B,S,D/2)
    ang = jnp.concatenate([ang, ang], axis=-1)                            # (B,S,D)
    return jnp.cos(ang), jnp.sin(ang)


def init_params(key):
    def nrm(k, shape):
        return 0.02 * jax.random.normal(k, shape, dtype=jnp.float32)

    keys = jax.random.split(key, 3 + N_LAYERS)
    params = {
        "embed": nrm(keys[0], (VOCAB, HIDDEN)),
        "final_ln": jnp.ones((HIDDEN,), jnp.float32),
        "lm_head": nrm(keys[1], (HIDDEN, VOCAB)),
        "layers": [],
    }
    for l in range(N_LAYERS):
        ks = jax.random.split(keys[3 + l], 10)
        params["layers"].append({
            "input_ln": jnp.ones((HIDDEN,), jnp.float32),
            "post_ln": jnp.ones((HIDDEN,), jnp.float32),
            "wq": nrm(ks[0], (HIDDEN, HIDDEN)),
            "bq": nrm(ks[1], (HIDDEN,)),
            "wk": nrm(ks[2], (HIDDEN, KV_DIM)),
            "bk": nrm(ks[3], (KV_DIM,)),
            "wv": nrm(ks[4], (HIDDEN, KV_DIM)),
            "bv": nrm(ks[5], (KV_DIM,)),
            "wo": nrm(ks[6], (HIDDEN, HIDDEN)),
            "wg": nrm(ks[7], (HIDDEN, INTER)),
            "wu": nrm(ks[8], (HIDDEN, INTER)),
            "wd": nrm(ks[9], (INTER, HIDDEN)),
        })
    return params


def _prepare_params(params):
    """Derive packed bf16 projection weights (constant-folded under jit)."""
    prep = {
        "embed": params["embed"],
        "final_ln": params["final_ln"],
        "lm_head": params["lm_head"].astype(jnp.bfloat16),
        "layers": [],
    }
    for p in params["layers"]:
        prep["layers"].append({
            "input_ln": p["input_ln"],
            "post_ln": p["post_ln"],
            "w_qkv": jnp.concatenate([p["wq"], p["wk"], p["wv"]],
                                     axis=1).astype(jnp.bfloat16),          # (H,256)
            "b_qkv": jnp.concatenate([p["bq"], p["bk"], p["bv"]]).reshape(1, QKV_DIM),
            "wo": p["wo"].astype(jnp.bfloat16),
            "wg": p["wg"].astype(jnp.bfloat16),
            "wu": p["wu"].astype(jnp.bfloat16),
            "wd": p["wd"].astype(jnp.bfloat16),
        })
    return prep


def qwen2_forward(params, input_ids, attention_mask, position_ids, past_kv_values):
    """Returns (logits[B,S,VOCAB] f32, new_kv[L,2,B,KVH,PAST+S,D] f32)."""
    B, S = input_ids.shape
    PAST = past_kv_values.shape[4]
    T = PAST + S
    prep = _prepare_params(params)

    cos, sin = _rope_cos_sin(position_ids)                        # (B,S,D) each
    mask3 = attention_mask.reshape(B, 1, T).astype(jnp.float32)   # HF 2-D padding mask

    x = jnp.take(params["embed"], input_ids, axis=0).astype(jnp.bfloat16)  # (B,S,H)
    past_bf = past_kv_values.astype(jnp.bfloat16)

    new_kv = []
    for l in range(N_LAYERS):
        p = prep["layers"][l]

        # --- self-attention block ---
        qkv = qkv_rope_proj(x, p["input_ln"], p["w_qkv"], p["b_qkv"], cos, sin)

        # Returned KV cache (interface: past ++ new along T). Attention never
        # consumes this concat; it reads past + new directly.
        # TODO(synk): a production decode path should alias a preallocated
        # max-length cache (input_output_aliases) so cache traffic is O(new tokens).
        k_new = qkv[:, :, HIDDEN:QK_DIM].astype(jnp.float32).reshape(
            B, S, N_KV_HEADS, HEAD_DIM).transpose(0, 2, 1, 3)
        v_new = qkv[:, :, QK_DIM:].astype(jnp.float32).reshape(
            B, S, N_KV_HEADS, HEAD_DIM).transpose(0, 2, 1, 3)
        new_kv.append(jnp.stack(
            [jnp.concatenate([past_kv_values[l, 0], k_new], axis=2),
             jnp.concatenate([past_kv_values[l, 1], v_new], axis=2)], axis=0))

        x = attn_block(mask3, qkv, past_bf[l, 0], past_bf[l, 1], p["wo"], x,
                       past=PAST)

        # --- MLP block ---
        x = mlp_block(x, p["post_ln"], p["wg"], p["wu"], p["wd"])

    logits = lm_head_proj(x, prep["final_ln"], prep["lm_head"])   # (B,S,V) f32
    return logits, jnp.stack(new_kv, axis=0)


# ----------------------------- main -----------------------------
if __name__ == "__main__":
    B, S, PAST = 2, 8, 8
    T = PAST + S

    key = jax.random.PRNGKey(0)
    k_par, k_ids, k_kv = jax.random.split(key, 3)

    params = init_params(k_par)

    input_ids = jax.random.randint(k_ids, (B, S), 0, VOCAB, dtype=jnp.int32)
    position_ids = jnp.broadcast_to(
        PAST + jnp.arange(S, dtype=jnp.int32)[None, :], (B, S))
    past_kv_values = 0.02 * jax.random.normal(
        k_kv, (N_LAYERS, 2, B, N_KV_HEADS, PAST, HEAD_DIM), dtype=jnp.float32)

    # HF-style 2-D padding mask over [past | current]: 1 = attend, 0 = masked.
    # The causal structure is generated inside the attention kernel.
    attention_mask = jnp.ones((B, T), dtype=jnp.float32)

    fwd = jax.jit(functools.partial(qwen2_forward, params))
    logits, new_kv = fwd(input_ids, attention_mask, position_ids, past_kv_values)
    jax.block_until_ready((logits, new_kv))

    assert logits.shape == (B, S, VOCAB)
    assert new_kv.shape == (N_LAYERS, 2, B, N_KV_HEADS, T, HEAD_DIM)
    assert bool(jnp.all(jnp.isfinite(logits)))
    print("KERNEL_OK")
</pallas_src>

<mosaic_0001>
module attributes {stable_mosaic.version = 11 : i64} {
  func.func @_qkv_rope_kernel(%arg0: i32, %arg1: memref<1x8x128xbf16, #tpu.memory_space<vmem>>, %arg2: memref<1x128xf32, #tpu.memory_space<vmem>>, %arg3: memref<128x256xbf16, #tpu.memory_space<vmem>>, %arg4: memref<1x256xf32, #tpu.memory_space<vmem>>, %arg5: memref<1x8x32xf32, #tpu.memory_space<vmem>>, %arg6: memref<1x8x32xf32, #tpu.memory_space<vmem>>, %arg7: memref<1x8x256xbf16, #tpu.memory_space<vmem>>) attributes {dimension_semantics = [#tpu.dimension_semantics<parallel>], iteration_bounds = array<i64: 2>, scalar_prefetch = 0 : i64, scratch_operands = 0 : i64, tpu.core_type = #tpu.core_type<tc>, window_params = [{transform_indices = @transform_0, window_bounds = array<i64: 1, 8, 128>}, {pipeline_mode = #tpu.pipeline_mode<synchronous>, transform_indices = @transform_1, window_bounds = array<i64: 1, 128>}, {pipeline_mode = #tpu.pipeline_mode<synchronous>, transform_indices = @transform_2, window_bounds = array<i64: 128, 256>}, {pipeline_mode = #tpu.pipeline_mode<synchronous>, transform_indices = @transform_3, window_bounds = array<i64: 1, 256>}, {transform_indices = @transform_4, window_bounds = array<i64: 1, 8, 32>}, {transform_indices = @transform_5, window_bounds = array<i64: 1, 8, 32>}, {transform_indices = @transform_6, window_bounds = array<i64: 1, 8, 256>}]} {
    %c0 = arith.constant 0 : index
    %c0_0 = arith.constant 0 : index
    %c0_1 = arith.constant 0 : index
    %0 = vector.load %arg1[%c0, %c0_0, %c0_1] : memref<1x8x128xbf16, #tpu.memory_space<vmem>>, vector<1x8x128xbf16>
    %1 = vector.shape_cast %0 : vector<1x8x128xbf16> to vector<8x128xbf16>
    %2 = arith.extf %1 : vector<8x128xbf16> to vector<8x128xf32>
    %3 = arith.mulf %2, %2 : vector<8x128xf32>
    %cst = arith.constant dense<0.000000e+00> : vector<8xf32>
    %4 = vector.multi_reduction <add>, %3, %cst [1] : vector<8x128xf32> to vector<8xf32>
    %5 = vector.shape_cast %4 : vector<8xf32> to vector<8x1xf32>
    %cst_2 = arith.constant 1.280000e+02 : f32
    %6 = vector.broadcast %cst_2 : f32 to vector<8x1xf32>
    %7 = arith.divf %5, %6 : vector<8x1xf32>
    %cst_3 = arith.constant 9.99999997E-7 : f32
    %8 = vector.broadcast %cst_3 : f32 to vector<8x1xf32>
    %9 = arith.addf %7, %8 : vector<8x1xf32>
    %10 = math.rsqrt %9 : vector<8x1xf32>
    %11 = vector.broadcast %10 : vector<8x1xf32> to vector<8x128xf32>
    %12 = arith.mulf %2, %11 : vector<8x128xf32>
    %c0_4 = arith.constant 0 : index
    %c0_5 = arith.constant 0 : index
    %13 = vector.load %arg2[%c0_4, %c0_5] : memref<1x128xf32, #tpu.memory_space<vmem>>, vector<1x128xf32>
    %14 = vector.broadcast %13 : vector<1x128xf32> to vector<8x128xf32>
    %15 = arith.mulf %12, %14 : vector<8x128xf32>
    %16 = arith.truncf %15 : vector<8x128xf32> to vector<8x128xbf16>
    %c0_6 = arith.constant 0 : index
    %c0_7 = arith.constant 0 : index
    %17 = vector.load %arg3[%c0_6, %c0_7] : memref<128x256xbf16, #tpu.memory_space<vmem>>, vector<128x256xbf16>
    %cst_8 = arith.constant dense<0.000000e+00> : vector<8x256xf32>
    %18 = tpu.matmul %16, %17, %cst_8 {dimension_numbers = #tpu.dot_dimension_numbers<[1], [0], [0], [1], [0, 0, 1, 1], [], []>} : vector<8x128xbf16>, vector<128x256xbf16>, vector<8x256xf32> -> vector<8x256xf32>
    %c0_9 = arith.constant 0 : index
    %c0_10 = arith.constant 0 : index
    %19 = vector.load %arg4[%c0_9, %c0_10] : memref<1x256xf32, #tpu.memory_space<vmem>>, vector<1x256xf32>
    %20 = vector.broadcast %19 : vector<1x256xf32> to vector<8x256xf32>
    %21 = arith.addf %18, %20 : vector<8x256xf32>
    %22 = vector.extract_strided_slice %21 {offsets = [0, 16], sizes = [8, 240], strides = [1, 1]} : vector<8x256xf32> to vector<8x240xf32>
    %23 = vector.extract_strided_slice %21 {offsets = [0, 0], sizes = [8, 16], strides = [1, 1]} : vector<8x256xf32> to vector<8x16xf32>
    %24 = tpu.concatenate %22, %23 in 1 : vector<8x240xf32>, vector<8x16xf32> -> vector<8x256xf32>
    %25 = vector.extract_strided_slice %21 {offsets = [0, 240], sizes = [8, 16], strides = [1, 1]} : vector<8x256xf32> to vector<8x16xf32>
    %26 = vector.extract_strided_slice %21 {offsets = [0, 0], sizes = [8, 240], strides = [1, 1]} : vector<8x256xf32> to vector<8x240xf32>
    %27 = tpu.concatenate %25, %26 in 1 : vector<8x16xf32>, vector<8x240xf32> -> vector<8x256xf32>
    %28 = tpu.iota {dimensions = array<i32: 1>} : vector<8x256xi32>
    %c32_i32 = arith.constant 32 : i32
    %c0_i32 = arith.constant 0 : i32
    %29 = arith.cmpi eq, %c32_i32, %c0_i32 : i32
    %c1_i32 = arith.constant 1 : i32
    %30 = arith.select %29, %c1_i32, %c32_i32 : i32
    %31 = vector.broadcast %30 : i32 to vector<8x256xi32>
    %32 = arith.remsi %28, %31 : vector<8x256xi32>
    %c0_i32_11 = arith.constant 0 : i32
    %33 = vector.broadcast %c0_i32_11 : i32 to vector<8x256xi32>
    %34 = arith.cmpi ne, %32, %33 : vector<8x256xi32>
    %c0_i32_12 = arith.constant 0 : i32
    %35 = vector.broadcast %c0_i32_12 : i32 to vector<8x256xi32>
    %36 = arith.cmpi slt, %32, %35 : vector<8x256xi32>
    %c0_i32_13 = arith.constant 0 : i32
    %37 = arith.cmpi slt, %30, %c0_i32_13 : i32
    %38 = vector.broadcast %37 : i1 to vector<8x256xi1>
    %39 = vector.broadcast %38 : vector<8x256xi1> to vector<8x256xi1>
    %40 = arith.xori %36, %39 : vector<8x256xi1>
    %41 = arith.andi %40, %34 : vector<8x256xi1>
    %42 = vector.broadcast %30 : i32 to vector<8x256xi32>
    %43 = arith.addi %32, %42 : vector<8x256xi32>
    %44 = arith.select %41, %43, %32 : vector<8x256xi1>, vector<8x256xi32>
    %c16_i32 = arith.constant 16 : i32
    %45 = vector.broadcast %c16_i32 : i32 to vector<8x256xi32>
    %46 = arith.cmpi slt, %44, %45 : vector<8x256xi32>
    %cst_14 = arith.constant 0.000000e+00 : f32
    %47 = vector.broadcast %cst_14 : f32 to vector<8x256xf32>
    %48 = arith.subf %47, %24 : vector<8x256xf32>
    %49 = arith.select %46, %48, %27 : vector<8x256xi1>, vector<8x256xf32>
    %c0_15 = arith.constant 0 : index
    %c0_16 = arith.constant 0 : index
    %c0_17 = arith.constant 0 : index
    %50 = vector.load %arg5[%c0_15, %c0_16, %c0_17] : memref<1x8x32xf32, #tpu.memory_space<vmem>>, vector<1x8x32xf32>
    %51 = vector.shape_cast %50 : vector<1x8x32xf32> to vector<8x32xf32>
    %52 = tpu.concatenate %51, %51, %51, %51, %51, %51, %51, %51 in 1 : vector<8x32xf32>, vector<8x32xf32>, vector<8x32xf32>, vector<8x32xf32>, vector<8x32xf32>, vector<8x32xf32>, vector<8x32xf32>, vector<8x32xf32> -> vector<8x256xf32>
    %c0_18 = arith.constant 0 : index
    %c0_19 = arith.constant 0 : index
    %c0_20 = arith.constant 0 : index
    %53 = vector.load %arg6[%c0_18, %c0_19, %c0_20] : memref<1x8x32xf32, #tpu.memory_space<vmem>>, vector<1x8x32xf32>
    %54 = vector.shape_cast %53 : vector<1x8x32xf32> to vector<8x32xf32>
    %55 = tpu.concatenate %54, %54, %54, %54, %54, %54, %54, %54 in 1 : vector<8x32xf32>, vector<8x32xf32>, vector<8x32xf32>, vector<8x32xf32>, vector<8x32xf32>, vector<8x32xf32>, vector<8x32xf32>, vector<8x32xf32> -> vector<8x256xf32>
    %56 = arith.mulf %21, %52 : vector<8x256xf32>
    %57 = arith.mulf %49, %55 : vector<8x256xf32>
    %58 = arith.addf %56, %57 : vector<8x256xf32>
    %c192_i32 = arith.constant 192 : i32
    %59 = vector.broadcast %c192_i32 : i32 to vector<8x256xi32>
    %60 = arith.cmpi slt, %28, %59 : vector<8x256xi32>
    %61 = arith.select %60, %58, %21 : vector<8x256xi1>, vector<8x256xf32>
    %62 = arith.truncf %61 : vector<8x256xf32> to vector<8x256xbf16>
    %c0_21 = arith.constant 0 : index
    %c0_22 = arith.constant 0 : index
    %c0_23 = arith.constant 0 : index
    %63 = vector.load %arg7[%c0_21, %c0_22, %c0_23] : memref<1x8x256xbf16, #tpu.memory_space<vmem>>, vector<1x8x256xbf16>
    %64 = vector.shape_cast %63 : vector<1x8x256xbf16> to vector<8x256xbf16>
    %65 = vector.shape_cast %62 : vector<8x256xbf16> to vector<1x8x256xbf16>
    tpu.vector_store %arg7[%c0_21, %c0_22, %c0_23], %65 {strides = array<i32>} : memref<1x8x256xbf16, #tpu.memory_space<vmem>>, vector<1x8x256xbf16>,
    return
  }
  func.func @transform_0(%arg0: i32) -> (i32, i32, i32) {
    %c0_i32 = arith.constant 0 : i32
    %c0_i32_0 = arith.constant 0 : i32
    %c0_i32_1 = arith.constant 0 : i32
    return %arg0, %c0_i32, %c0_i32_0 : i32, i32, i32
  }
  func.func @transform_1(%arg0: i32) -> (i32, i32) {
    %c0_i32 = arith.constant 0 : i32
    %c0_i32_0 = arith.constant 0 : i32
    %c0_i32_1 = arith.constant 0 : i32
    return %c0_i32, %c0_i32_0 : i32, i32
  }
  func.func @transform_2(%arg0: i32) -> (i32, i32) {
    %c0_i32 = arith.constant 0 : i32
    %c0_i32_0 = arith.constant 0 : i32
    %c0_i32_1 = arith.constant 0 : i32
    return %c0_i32, %c0_i32_0 : i32, i32
  }
  func.func @transform_3(%arg0: i32) -> (i32, i32) {
    %c0_i32 = arith.constant 0 : i32
    %c0_i32_0 = arith.constant 0 : i32
    %c0_i32_1 = arith.constant 0 : i32
    return %c0_i32, %c0_i32_0 : i32, i32
  }
  func.func @transform_4(%arg0: i32) -> (i32, i32, i32) {
    %c0_i32 = arith.constant 0 : i32
    %c0_i32_0 = arith.constant 0 : i32
    %c0_i32_1 = arith.constant 0 : i32
    return %arg0, %c0_i32, %c0_i32_0 : i32, i32, i32
  }
  func.func @transform_5(%arg0: i32) -> (i32, i32, i32) {
    %c0_i32 = arith.constant 0 : i32
    %c0_i32_0 = arith.constant 0 : i32
    %c0_i32_1 = arith.constant 0 : i32
    return %arg0, %c0_i32, %c0_i32_0 : i32, i32, i32
  }
  func.func @transform_6(%arg0: i32) -> (i32, i32, i32) {
    %c0_i32 = arith.constant 0 : i32
    %c0_i32_0 = arith.constant 0 : i32
    %c0_i32_1 = arith.constant 0 : i32
    return %arg0, %c0_i32, %c0_i32_0 : i32, i32, i32
  }
}

module attributes {stable_mosaic.version = 11 : i64} {
  func.func @_mlp_kernel(%arg0: i32, %arg1: i32, %arg2: memref<1x8x128xbf16, #tpu.memory_space<vmem>>, %arg3: memref<1x128xf32, #tpu.memory_space<vmem>>, %arg4: memref<128x128xbf16, #tpu.memory_space<vmem>>, %arg5: memref<128x128xbf16, #tpu.memory_space<vmem>>, %arg6: memref<128x128xbf16, #tpu.memory_space<vmem>>, %arg7: memref<1x8x128xbf16, #tpu.memory_space<vmem>>, %arg8: memref<8x128xf32, #tpu.memory_space<vmem>>) attributes {dimension_semantics = [#tpu.dimension_semantics<parallel>, #tpu.dimension_semantics<arbitrary>], iteration_bounds = array<i64: 2, 2>, scalar_prefetch = 0 : i64, scratch_operands = 1 : i64, tpu.core_type = #tpu.core_type<tc>, window_params = [{transform_indices = @transform_0, window_bounds = array<i64: 1, 8, 128>}, {pipeline_mode = #tpu.pipeline_mode<synchronous>, transform_indices = @transform_1, window_bounds = array<i64: 1, 128>}, {transform_indices = @transform_2, window_bounds = array<i64: 128, 128>}, {transform_indices = @transform_3, window_bounds = array<i64: 128, 128>}, {transform_indices = @transform_4, window_bounds = array<i64: 128, 128>}, {transform_indices = @transform_5, window_bounds = array<i64: 1, 8, 128>}]} {
    %c0 = arith.constant 0 : index
    %c0_0 = arith.constant 0 : index
    %c0_1 = arith.constant 0 : index
    %0 = vector.load %arg2[%c0, %c0_0, %c0_1] : memref<1x8x128xbf16, #tpu.memory_space<vmem>>, vector<1x8x128xbf16>
    %1 = vector.shape_cast %0 : vector<1x8x128xbf16> to vector<8x128xbf16>
    %2 = arith.extf %1 : vector<8x128xbf16> to vector<8x128xf32>
    %3 = arith.mulf %2, %2 : vector<8x128xf32>
    %cst = arith.constant dense<0.000000e+00> : vector<8xf32>
    %4 = vector.multi_reduction <add>, %3, %cst [1] : vector<8x128xf32> to vector<8xf32>
    %5 = vector.shape_cast %4 : vector<8xf32> to vector<8x1xf32>
    %cst_2 = arith.constant 1.280000e+02 : f32
    %6 = vector.broadcast %cst_2 : f32 to vector<8x1xf32>
    %7 = arith.divf %5, %6 : vector<8x1xf32>
    %cst_3 = arith.constant 9.99999997E-7 : f32
    %8 = vector.broadcast %cst_3 : f32 to vector<8x1xf32>
    %9 = arith.addf %7, %8 : vector<8x1xf32>
    %10 = math.rsqrt %9 : vector<8x1xf32>
    %11 = vector.broadcast %10 : vector<8x1xf32> to vector<8x128xf32>
    %12 = arith.mulf %2, %11 : vector<8x128xf32>
    %c0_4 = arith.constant 0 : index
    %c0_5 = arith.constant 0 : index
    %13 = vector.load %arg3[%c0_4, %c0_5] : memref<1x128xf32, #tpu.memory_space<vmem>>, vector<1x128xf32>
    %14 = vector.broadcast %13 : vector<1x128xf32> to vector<8x128xf32>
    %15 = arith.mulf %12, %14 : vector<8x128xf32>
    %16 = arith.truncf %15 : vector<8x128xf32> to vector<8x128xbf16>
    %c0_6 = arith.constant 0 : index
    %c0_7 = arith.constant 0 : index
    %17 = vector.load %arg4[%c0_6, %c0_7] : memref<128x128xbf16, #tpu.memory_space<vmem>>, vector<128x128xbf16>
    %cst_8 = arith.constant dense<0.000000e+00> : vector<8x128xf32>
    %18 = tpu.matmul %16, %17, %cst_8 {dimension_numbers = #tpu.dot_dimension_numbers<[1], [0], [0], [1], [0, 0, 1, 1], [], []>} : vector<8x128xbf16>, vector<128x128xbf16>, vector<8x128xf32> -> vector<8x128xf32>
    %c0_9 = arith.constant 0 : index
    %c0_10 = arith.constant 0 : index
    %19 = vector.load %arg5[%c0_9, %c0_10] : memref<128x128xbf16, #tpu.memory_space<vmem>>, vector<128x128xbf16>
    %cst_11 = arith.constant dense<0.000000e+00> : vector<8x128xf32>
    %20 = tpu.matmul %16, %19, %cst_11 {dimension_numbers = #tpu.dot_dimension_numbers<[1], [0], [0], [1], [0, 0, 1, 1], [], []>} : vector<8x128xbf16>, vector<128x128xbf16>, vector<8x128xf32> -> vector<8x128xf32>
    %21 = arith.negf %18 : vector<8x128xf32>
    %22 = math.exp %21 : vector<8x128xf32>
    %cst_12 = arith.constant 1.000000e+00 : f32
    %23 = vector.broadcast %cst_12 : f32 to vector<8x128xf32>
    %24 = arith.addf %23, %22 : vector<8x128xf32>
    %25 = arith.divf %23, %24 : vector<8x128xf32>
    %26 = arith.mulf %18, %25 : vector<8x128xf32>
    %27 = arith.mulf %26, %20 : vector<8x128xf32>
    %28 = arith.truncf %27 : vector<8x128xf32> to vector<8x128xbf16>
    %c0_i32 = arith.constant 0 : i32
    %29 = arith.cmpi eq, %arg1, %c0_i32 : i32
    %30 = arith.extui %29 : i1 to i32
    %c0_i32_13 = arith.constant 0 : i32
    %31 = arith.cmpi ne, %30, %c0_i32_13 : i32
    scf.if %31 {
      %cst_22 = arith.constant 0.000000e+00 : f32
      %40 = vector.broadcast %cst_22 : f32 to vector<8x128xf32>
      %c0_23 = arith.constant 0 : index
      %c0_24 = arith.constant 0 : index
      %41 = vector.load %arg8[%c0_23, %c0_24] : memref<8x128xf32, #tpu.memory_space<vmem>>, vector<8x128xf32>
      tpu.vector_store %arg8[%c0_23, %c0_24], %40 {strides = array<i32>} : memref<8x128xf32, #tpu.memory_space<vmem>>, vector<8x128xf32>,
    } else {
    }
    %c0_14 = arith.constant 0 : index
    %c0_15 = arith.constant 0 : index
    %32 = vector.load %arg8[%c0_14, %c0_15] : memref<8x128xf32, #tpu.memory_space<vmem>>, vector<8x128xf32>
    %c0_16 = arith.constant 0 : index
    %c0_17 = arith.constant 0 : index
    %33 = vector.load %arg6[%c0_16, %c0_17] : memref<128x128xbf16, #tpu.memory_space<vmem>>, vector<128x128xbf16>
    %cst_18 = arith.constant dense<0.000000e+00> : vector<8x128xf32>
    %34 = tpu.matmul %28, %33, %cst_18 {dimension_numbers = #tpu.dot_dimension_numbers<[1], [0], [0], [1], [0, 0, 1, 1], [], []>} : vector<8x128xbf16>, vector<128x128xbf16>, vector<8x128xf32> -> vector<8x128xf32>
    %35 = arith.addf %32, %34 : vector<8x128xf32>
    %c0_19 = arith.constant 0 : index
    %c0_20 = arith.constant 0 : index
    %36 = vector.load %arg8[%c0_19, %c0_20] : memref<8x128xf32, #tpu.memory_space<vmem>>, vector<8x128xf32>
    tpu.vector_store %arg8[%c0_19, %c0_20], %35 {strides = array<i32>} : memref<8x128xf32, #tpu.memory_space<vmem>>, vector<8x128xf32>,
    %c1_i32 = arith.constant 1 : i32
    %37 = arith.cmpi eq, %arg1, %c1_i32 : i32
    %38 = arith.extui %37 : i1 to i32
    %c0_i32_21 = arith.constant 0 : i32
    %39 = arith.cmpi ne, %38, %c0_i32_21 : i32
    scf.if %39 {
      %c0_22 = arith.constant 0 : index
      %c0_23 = arith.constant 0 : index
      %40 = vector.load %arg8[%c0_22, %c0_23] : memref<8x128xf32, #tpu.memory_space<vmem>>, vector<8x128xf32>
      %41 = arith.addf %2, %40 : vector<8x128xf32>
      %42 = arith.truncf %41 : vector<8x128xf32> to vector<8x128xbf16>
      %c0_24 = arith.constant 0 : index
      %c0_25 = arith.constant 0 : index
      %c0_26 = arith.constant 0 : index
      %43 = vector.load %arg7[%c0_24, %c0_25, %c0_26] : memref<1x8x128xbf16, #tpu.memory_space<vmem>>, vector<1x8x128xbf16>
      %44 = vector.shape_cast %43 : vector<1x8x128xbf16> to vector<8x128xbf16>
      %45 = vector.shape_cast %42 : vector<8x128xbf16> to vector<1x8x128xbf16>
      tpu.vector_store %arg7[%c0_24, %c0_25, %c0_26], %45 {strides = array<i32>} : memref<1x8x128xbf16, #tpu.memory_space<vmem>>, vector<1x8x128xbf16>,
    } else {
    }
    return
  }
  func.func @transform_0(%arg0: i32, %arg1: i32) -> (i32, i32, i32) {
    %c0_i32 = arith.constant 0 : i32
    %c0_i32_0 = arith.constant 0 : i32
    %c0_i32_1 = arith.constant 0 : i32
    return %arg0, %c0_i32, %c0_i32_0 : i32, i32, i32
  }
  func.func @transform_1(%arg0: i32, %arg1: i32) -> (i32, i32) {
    %c0_i32 = arith.constant 0 : i32
    %c0_i32_0 = arith.constant 0 : i32
    %c0_i32_1 = arith.constant 0 : i32
    return %c0_i32, %c0_i32_0 : i32, i32
  }
  func.func @transform_2(%arg0: i32, %arg1: i32) -> (i32, i32) {
    %c0_i32 = arith.constant 0 : i32
    %c0_i32_0 = arith.constant 0 : i32
    return %c0_i32, %arg1 : i32, i32
  }
  func.func @transform_3(%arg0: i32, %arg1: i32) -> (i32, i32) {
    %c0_i32 = arith.constant 0 : i32
    %c0_i32_0 = arith.constant 0 : i32
    return %c0_i32, %arg1 : i32, i32
  }
  func.func @transform_4(%arg0: i32, %arg1: i32) -> (i32, i32) {
    %c0_i32 = arith.constant 0 : i32
    %c0_i32_0 = arith.constant 0 : i32
    return %arg1, %c0_i32 : i32, i32
  }
  func.func @transform_5(%arg0: i32, %arg1: i32) -> (i32, i32, i32) {
    %c0_i32 = arith.constant 0 : i32
    %c0_i32_0 = arith.constant 0 : i32
    %c0_i32_1 = arith.constant 0 : i32
    return %arg0, %c0_i32, %c0_i32_0 : i32, i32, i32
  }
}

module attributes {stable_mosaic.version = 11 : i64} {
  func.func @_attn_block_kernel(%arg0: i32, %arg1: memref<1x1x16xf32, #tpu.memory_space<vmem>>, %arg2: memref<1x8x256xbf16, #tpu.memory_space<vmem>>, %arg3: memref<1x2x8x32xbf16, #tpu.memory_space<vmem>>, %arg4: memref<1x2x8x32xbf16, #tpu.memory_space<vmem>>, %arg5: memref<128x128xbf16, #tpu.memory_space<vmem>>, %arg6: memref<1x8x128xbf16, #tpu.memory_space<vmem>>, %arg7: memref<1x8x128xbf16, #tpu.memory_space<vmem>>) attributes {dimension_semantics = [#tpu.dimension_semantics<parallel>], iteration_bounds = array<i64: 2>, scalar_prefetch = 0 : i64, scratch_operands = 0 : i64, tpu.core_type = #tpu.core_type<tc>, window_params = [{transform_indices = @transform_0, window_bounds = array<i64: 1, 1, 16>}, {transform_indices = @transform_1, window_bounds = array<i64: 1, 8, 256>}, {transform_indices = @transform_2, window_bounds = array<i64: 1, 2, 8, 32>}, {transform_indices = @transform_3, window_bounds = array<i64: 1, 2, 8, 32>}, {pipeline_mode = #tpu.pipeline_mode<synchronous>, transform_indices = @transform_4, window_bounds = array<i64: 128, 128>}, {transform_indices = @transform_5, window_bounds = array<i64: 1, 8, 128>}, {transform_indices = @transform_6, window_bounds = array<i64: 1, 8, 128>}]} {
    %c0 = arith.constant 0 : index
    %c0_0 = arith.constant 0 : index
    %c0_1 = arith.constant 0 : index
    %0 = vector.load %arg2[%c0, %c0_0, %c0_1] : memref<1x8x256xbf16, #tpu.memory_space<vmem>>, vector<1x8x256xbf16>
    %1 = vector.shape_cast %0 : vector<1x8x256xbf16> to vector<8x256xbf16>
    %2 = vector.extract_strided_slice %1 {offsets = [0, 0], sizes = [8, 128], strides = [1, 1]} : vector<8x256xbf16> to vector<8x128xbf16>
    %3 = vector.extract_strided_slice %1 {offsets = [0, 128], sizes = [8, 64], strides = [1, 1]} : vector<8x256xbf16> to vector<8x64xbf16>
    %4 = vector.extract_strided_slice %1 {offsets = [0, 192], sizes = [8, 64], strides = [1, 1]} : vector<8x256xbf16> to vector<8x64xbf16>
    %5 = tpu.iota {dimensions = array<i32: 1>} : vector<8x16xi32>
    %6 = tpu.iota {dimensions = array<i32: 0>} : vector<8x16xi32>
    %c8_i32 = arith.constant 8 : i32
    %7 = vector.broadcast %c8_i32 : i32 to vector<8x16xi32>
    %8 = arith.addi %7, %6 : vector<8x16xi32>
    %9 = arith.cmpi sle, %5, %8 : vector<8x16xi32>
    %c0_2 = arith.constant 0 : index
    %c0_3 = arith.constant 0 : index
    %c0_4 = arith.constant 0 : index
    %10 = vector.load %arg1[%c0_2, %c0_3, %c0_4] : memref<1x1x16xf32, #tpu.memory_space<vmem>>, vector<1x1x16xf32>
    %11 = vector.shape_cast %10 : vector<1x1x16xf32> to vector<1x16xf32>
    %cst = arith.constant 5.000000e-01 : f32
    %12 = vector.broadcast %cst : f32 to vector<1x16xf32>
    %13 = arith.cmpf ogt, %11, %12 : vector<1x16xf32>
    %14 = vector.broadcast %13 : vector<1x16xi1> to vector<8x16xi1>
    %15 = arith.andi %9, %14 : vector<8x16xi1>
    %c0_5 = arith.constant 0 : index
    %c0_6 = arith.constant 0 : index
    %c0_7 = arith.constant 0 : index
    %c0_8 = arith.constant 0 : index
    %16 = vector.load %arg3[%c0_5, %c0_6, %c0_7, %c0_8] : memref<1x2x8x32xbf16, #tpu.memory_space<vmem>>, vector<1x1x8x32xbf16>
    %17 = vector.shape_cast %16 : vector<1x1x8x32xbf16> to vector<8x32xbf16>
    %18 = vector.extract_strided_slice %3 {offsets = [0, 0], sizes = [8, 32], strides = [1, 1]} : vector<8x64xbf16> to vector<8x32xbf16>
    %19 = tpu.concatenate %17, %18 in 0 : vector<8x32xbf16>, vector<8x32xbf16> -> vector<16x32xbf16>
    %c0_9 = arith.constant 0 : index
    %c0_10 = arith.constant 0 : index
    %c0_11 = arith.constant 0 : index
    %c0_12 = arith.constant 0 : index
    %20 = vector.load %arg4[%c0_9, %c0_10, %c0_11, %c0_12] : memref<1x2x8x32xbf16, #tpu.memory_space<vmem>>, vector<1x1x8x32xbf16>
    %21 = vector.shape_cast %20 : vector<1x1x8x32xbf16> to vector<8x32xbf16>
    %22 = vector.extract_strided_slice %4 {offsets = [0, 0], sizes = [8, 32], strides = [1, 1]} : vector<8x64xbf16> to vector<8x32xbf16>
    %23 = tpu.concatenate %21, %22 in 0 : vector<8x32xbf16>, vector<8x32xbf16> -> vector<16x32xbf16>
    %24 = vector.extract_strided_slice %2 {offsets = [0, 0], sizes = [8, 32], strides = [1, 1]} : vector<8x128xbf16> to vector<8x32xbf16>
    %cst_13 = arith.constant dense<0.000000e+00> : vector<8x16xf32>
    %25 = tpu.matmul %24, %19, %cst_13 {dimension_numbers = #tpu.dot_dimension_numbers<[1], [1], [0], [0], [0, 0, 1, 0], [], []>} : vector<8x32xbf16>, vector<16x32xbf16>, vector<8x16xf32> -> vector<8x16xf32>
    %cst_14 = arith.constant 0.176776692 : f32
    %26 = vector.broadcast %cst_14 : f32 to vector<8x16xf32>
    %27 = arith.mulf %25, %26 : vector<8x16xf32>
    %cst_15 = arith.constant -1.000000e+30 : f32
    %28 = vector.broadcast %cst_15 : f32 to vector<8x16xf32>
    %29 = arith.select %15, %27, %28 : vector<8x16xi1>, vector<8x16xf32>
    %cst_16 = arith.constant dense<0xFF800000> : vector<8xf32>
    %30 = vector.multi_reduction <maximumf>, %29, %cst_16 [1] : vector<8x16xf32> to vector<8xf32>
    %31 = vector.shape_cast %30 : vector<8xf32> to vector<8x1xf32>
    %32 = vector.broadcast %31 : vector<8x1xf32> to vector<8x16xf32>
    %33 = arith.subf %29, %32 : vector<8x16xf32>
    %34 = math.exp %33 : vector<8x16xf32>
    %cst_17 = arith.constant dense<0.000000e+00> : vector<8xf32>
    %35 = vector.multi_reduction <add>, %34, %cst_17 [1] : vector<8x16xf32> to vector<8xf32>
    %36 = vector.shape_cast %35 : vector<8xf32> to vector<8x1xf32>
    %37 = tpu.reciprocal %36 {approx = true} : vector<8x1xf32> -> vector<8x1xf32>
    %38 = vector.broadcast %37 : vector<8x1xf32> to vector<8x16xf32>
    %39 = arith.mulf %34, %38 : vector<8x16xf32>
    %40 = arith.truncf %39 : vector<8x16xf32> to vector<8x16xbf16>
    %cst_18 = arith.constant dense<0.000000e+00> : vector<8x32xf32>
    %41 = tpu.matmul %40, %23, %cst_18 {dimension_numbers = #tpu.dot_dimension_numbers<[1], [0], [0], [1], [0, 0, 1, 1], [], []>} : vector<8x16xbf16>, vector<16x32xbf16>, vector<8x32xf32> -> vector<8x32xf32>
    %42 = vector.extract_strided_slice %2 {offsets = [0, 32], sizes = [8, 32], strides = [1, 1]} : vector<8x128xbf16> to vector<8x32xbf16>
    %cst_19 = arith.constant dense<0.000000e+00> : vector<8x16xf32>
    %43 = tpu.matmul %42, %19, %cst_19 {dimension_numbers = #tpu.dot_dimension_numbers<[1], [1], [0], [0], [0, 0, 1, 0], [], []>} : vector<8x32xbf16>, vector<16x32xbf16>, vector<8x16xf32> -> vector<8x16xf32>
    %cst_20 = arith.constant 0.176776692 : f32
    %44 = vector.broadcast %cst_20 : f32 to vector<8x16xf32>
    %45 = arith.mulf %43, %44 : vector<8x16xf32>
    %cst_21 = arith.constant -1.000000e+30 : f32
    %46 = vector.broadcast %cst_21 : f32 to vector<8x16xf32>
    %47 = arith.select %15, %45, %46 : vector<8x16xi1>, vector<8x16xf32>
    %cst_22 = arith.constant dense<0xFF800000> : vector<8xf32>
    %48 = vector.multi_reduction <maximumf>, %47, %cst_22 [1] : vector<8x16xf32> to vector<8xf32>
    %49 = vector.shape_cast %48 : vector<8xf32> to vector<8x1xf32>
    %50 = vector.broadcast %49 : vector<8x1xf32> to vector<8x16xf32>
    %51 = arith.subf %47, %50 : vector<8x16xf32>
    %52 = math.exp %51 : vector<8x16xf32>
    %cst_23 = arith.constant dense<0.000000e+00> : vector<8xf32>
    %53 = vector.multi_reduction <add>, %52, %cst_23 [1] : vector<8x16xf32> to vector<8xf32>
    %54 = vector.shape_cast %53 : vector<8xf32> to vector<8x1xf32>
    %55 = tpu.reciprocal %54 {approx = true} : vector<8x1xf32> -> vector<8x1xf32>
    %56 = vector.broadcast %55 : vector<8x1xf32> to vector<8x16xf32>
    %57 = arith.mulf %52, %56 : vector<8x16xf32>
    %58 = arith.truncf %57 : vector<8x16xf32> to vector<8x16xbf16>
    %cst_24 = arith.constant dense<0.000000e+00> : vector<8x32xf32>
    %59 = tpu.matmul %58, %23, %cst_24 {dimension_numbers = #tpu.dot_dimension_numbers<[1], [0], [0], [1], [0, 0, 1, 1], [], []>} : vector<8x16xbf16>, vector<16x32xbf16>, vector<8x32xf32> -> vector<8x32xf32>
    %c0_25 = arith.constant 0 : index
    %c1 = arith.constant 1 : index
    %c0_26 = arith.constant 0 : index
    %c0_27 = arith.constant 0 : index
    %60 = vector.load %arg3[%c0_25, %c1, %c0_26, %c0_27] : memref<1x2x8x32xbf16, #tpu.memory_space<vmem>>, vector<1x1x8x32xbf16>
    %61 = vector.shape_cast %60 : vector<1x1x8x32xbf16> to vector<8x32xbf16>
    %62 = vector.extract_strided_slice %3 {offsets = [0, 32], sizes = [8, 32], strides = [1, 1]} : vector<8x64xbf16> to vector<8x32xbf16>
    %63 = tpu.concatenate %61, %62 in 0 : vector<8x32xbf16>, vector<8x32xbf16> -> vector<16x32xbf16>
    %c0_28 = arith.constant 0 : index
    %c1_29 = arith.constant 1 : index
    %c0_30 = arith.constant 0 : index
    %c0_31 = arith.constant 0 : index
    %64 = vector.load %arg4[%c0_28, %c1_29, %c0_30, %c0_31] : memref<1x2x8x32xbf16, #tpu.memory_space<vmem>>, vector<1x1x8x32xbf16>
    %65 = vector.shape_cast %64 : vector<1x1x8x32xbf16> to vector<8x32xbf16>
    %66 = vector.extract_strided_slice %4 {offsets = [0, 32], sizes = [8, 32], strides = [1, 1]} : vector<8x64xbf16> to vector<8x32xbf16>
    %67 = tpu.concatenate %65, %66 in 0 : vector<8x32xbf16>, vector<8x32xbf16> -> vector<16x32xbf16>
    %68 = vector.extract_strided_slice %2 {offsets = [0, 64], sizes = [8, 32], strides = [1, 1]} : vector<8x128xbf16> to vector<8x32xbf16>
    %cst_32 = arith.constant dense<0.000000e+00> : vector<8x16xf32>
    %69 = tpu.matmul %68, %63, %cst_32 {dimension_numbers = #tpu.dot_dimension_numbers<[1], [1], [0], [0], [0, 0, 1, 0], [], []>} : vector<8x32xbf16>, vector<16x32xbf16>, vector<8x16xf32> -> vector<8x16xf32>
    %cst_33 = arith.constant 0.176776692 : f32
    %70 = vector.broadcast %cst_33 : f32 to vector<8x16xf32>
    %71 = arith.mulf %69, %70 : vector<8x16xf32>
    %cst_34 = arith.constant -1.000000e+30 : f32
    %72 = vector.broadcast %cst_34 : f32 to vector<8x16xf32>
    %73 = arith.select %15, %71, %72 : vector<8x16xi1>, vector<8x16xf32>
    %cst_35 = arith.constant dense<0xFF800000> : vector<8xf32>
    %74 = vector.multi_reduction <maximumf>, %73, %cst_35 [1] : vector<8x16xf32> to vector<8xf32>
    %75 = vector.shape_cast %74 : vector<8xf32> to vector<8x1xf32>
    %76 = vector.broadcast %75 : vector<8x1xf32> to vector<8x16xf32>
    %77 = arith.subf %73, %76 : vector<8x16xf32>
    %78 = math.exp %77 : vector<8x16xf32>
    %cst_36 = arith.constant dense<0.000000e+00> : vector<8xf32>
    %79 = vector.multi_reduction <add>, %78, %cst_36 [1] : vector<8x16xf32> to vector<8xf32>
    %80 = vector.shape_cast %79 : vector<8xf32> to vector<8x1xf32>
    %81 = tpu.reciprocal %80 {approx = true} : vector<8x1xf32> -> vector<8x1xf32>
    %82 = vector.broadcast %81 : vector<8x1xf32> to vector<8x16xf32>
    %83 = arith.mulf %78, %82 : vector<8x16xf32>
    %84 = arith.truncf %83 : vector<8x16xf32> to vector<8x16xbf16>
    %cst_37 = arith.constant dense<0.000000e+00> : vector<8x32xf32>
    %85 = tpu.matmul %84, %67, %cst_37 {dimension_numbers = #tpu.dot_dimension_numbers<[1], [0], [0], [1], [0, 0, 1, 1], [], []>} : vector<8x16xbf16>, vector<16x32xbf16>, vector<8x32xf32> -> vector<8x32xf32>
    %86 = vector.extract_strided_slice %2 {offsets = [0, 96], sizes = [8, 32], strides = [1, 1]} : vector<8x128xbf16> to vector<8x32xbf16>
    %cst_38 = arith.constant dense<0.000000e+00> : vector<8x16xf32>
    %87 = tpu.matmul %86, %63, %cst_38 {dimension_numbers = #tpu.dot_dimension_numbers<[1], [1], [0], [0], [0, 0, 1, 0], [], []>} : vector<8x32xbf16>, vector<16x32xbf16>, vector<8x16xf32> -> vector<8x16xf32>
    %cst_39 = arith.constant 0.176776692 : f32
    %88 = vector.broadcast %cst_39 : f32 to vector<8x16xf32>
    %89 = arith.mulf %87, %88 : vector<8x16xf32>
    %cst_40 = arith.constant -1.000000e+30 : f32
    %90 = vector.broadcast %cst_40 : f32 to vector<8x16xf32>
    %91 = arith.select %15, %89, %90 : vector<8x16xi1>, vector<8x16xf32>
    %cst_41 = arith.constant dense<0xFF800000> : vector<8xf32>
    %92 = vector.multi_reduction <maximumf>, %91, %cst_41 [1] : vector<8x16xf32> to vector<8xf32>
    %93 = vector.shape_cast %92 : vector<8xf32> to vector<8x1xf32>
    %94 = vector.broadcast %93 : vector<8x1xf32> to vector<8x16xf32>
    %95 = arith.subf %91, %94 : vector<8x16xf32>
    %96 = math.exp %95 : vector<8x16xf32>
    %cst_42 = arith.constant dense<0.000000e+00> : vector<8xf32>
    %97 = vector.multi_reduction <add>, %96, %cst_42 [1] : vector<8x16xf32> to vector<8xf32>
    %98 = vector.shape_cast %97 : vector<8xf32> to vector<8x1xf32>
    %99 = tpu.reciprocal %98 {approx = true} : vector<8x1xf32> -> vector<8x1xf32>
    %100 = vector.broadcast %99 : vector<8x1xf32> to vector<8x16xf32>
    %101 = arith.mulf %96, %100 : vector<8x16xf32>
    %102 = arith.truncf %101 : vector<8x16xf32> to vector<8x16xbf16>
    %cst_43 = arith.constant dense<0.000000e+00> : vector<8x32xf32>
    %103 = tpu.matmul %102, %67, %cst_43 {dimension_numbers = #tpu.dot_dimension_numbers<[1], [0], [0], [1], [0, 0, 1, 1], [], []>} : vector<8x16xbf16>, vector<16x32xbf16>, vector<8x32xf32> -> vector<8x32xf32>
    %104 = tpu.concatenate %41, %59, %85, %103 in 1 : vector<8x32xf32>, vector<8x32xf32>, vector<8x32xf32>, vector<8x32xf32> -> vector<8x128xf32>
    %105 = arith.truncf %104 : vector<8x128xf32> to vector<8x128xbf16>
    %c0_44 = arith.constant 0 : index
    %c0_45 = arith.constant 0 : index
    %106 = vector.load %arg5[%c0_44, %c0_45] : memref<128x128xbf16, #tpu.memory_space<vmem>>, vector<128x128xbf16>
    %cst_46 = arith.constant dense<0.000000e+00> : vector<8x128xf32>
    %107 = tpu.matmul %105, %106, %cst_46 {dimension_numbers = #tpu.dot_dimension_numbers<[1], [0], [0], [1], [0, 0, 1, 1], [], []>} : vector<8x128xbf16>, vector<128x128xbf16>, vector<8x128xf32> -> vector<8x128xf32>
    %c0_47 = arith.constant 0 : index
    %c0_48 = arith.constant 0 : index
    %c0_49 = arith.constant 0 : index
    %108 = vector.load %arg6[%c0_47, %c0_48, %c0_49] : memref<1x8x128xbf16, #tpu.memory_space<vmem>>, vector<1x8x128xbf16>
    %109 = vector.shape_cast %108 : vector<1x8x128xbf16> to vector<8x128xbf16>
    %110 = arith.extf %109 : vector<8x128xbf16> to vector<8x128xf32>
    %111 = arith.addf %110, %107 : vector<8x128xf32>
    %112 = arith.truncf %111 : vector<8x128xf32> to vector<8x128xbf16>
    %c0_50 = arith.constant 0 : index
    %c0_51 = arith.constant 0 : index
    %c0_52 = arith.constant 0 : index
    %113 = vector.load %arg7[%c0_50, %c0_51, %c0_52] : memref<1x8x128xbf16, #tpu.memory_space<vmem>>, vector<1x8x128xbf16>
    %114 = vector.shape_cast %113 : vector<1x8x128xbf16> to vector<8x128xbf16>
    %115 = vector.shape_cast %112 : vector<8x128xbf16> to vector<1x8x128xbf16>
    tpu.vector_store %arg7[%c0_50, %c0_51, %c0_52], %115 {strides = array<i32>} : memref<1x8x128xbf16, #tpu.memory_space<vmem>>, vector<1x8x128xbf16>,
    return
  }
  func.func @transform_0(%arg0: i32) -> (i32, i32, i32) {
    %c0_i32 = arith.constant 0 : i32
    %c0_i32_0 = arith.constant 0 : i32
    %c0_i32_1 = arith.constant 0 : i32
    return %arg0, %c0_i32, %c0_i32_0 : i32, i32, i32
  }
  func.func @transform_1(%arg0: i32) -> (i32, i32, i32) {
    %c0_i32 = arith.constant 0 : i32
    %c0_i32_0 = arith.constant 0 : i32
    %c0_i32_1 = arith.constant 0 : i32
    return %arg0, %c0_i32, %c0_i32_0 : i32, i32, i32
  }
  func.func @transform_2(%arg0: i32) -> (i32, i32, i32, i32) {
    %c0_i32 = arith.constant 0 : i32
    %c0_i32_0 = arith.constant 0 : i32
    %c0_i32_1 = arith.constant 0 : i32
    %c0_i32_2 = arith.constant 0 : i32
    return %arg0, %c0_i32, %c0_i32_0, %c0_i32_1 : i32, i32, i32, i32
  }
  func.func @transform_3(%arg0: i32) -> (i32, i32, i32, i32) {
    %c0_i32 = arith.constant 0 : i32
    %c0_i32_0 = arith.constant 0 : i32
    %c0_i32_1 = arith.constant 0 : i32
    %c0_i32_2 = arith.constant 0 : i32
    return %arg0, %c0_i32, %c0_i32_0, %c0_i32_1 : i32, i32, i32, i32
  }
  func.func @transform_4(%arg0: i32) -> (i32, i32) {
    %c0_i32 = arith.constant 0 : i32
    %c0_i32_0 = arith.constant 0 : i32
    %c0_i32_1 = arith.constant 0 : i32
    return %c0_i32, %c0_i32_0 : i32, i32
  }
  func.func @transform_5(%arg0: i32) -> (i32, i32, i32) {
    %c0_i32 = arith.constant 0 : i32
    %c0_i32_0 = arith.constant 0 : i32
    %c0_i32_1 = arith.constant 0 : i32
    return %arg0, %c0_i32, %c0_i32_0 : i32, i32, i32
  }
  func.func @transform_6(%arg0: i32) -> (i32, i32, i32) {
    %c0_i32 = arith.constant 0 : i32
    %c0_i32_0 = arith.constant 0 : i32
    %c0_i32_1 = arith.constant 0 : i32
    return %arg0, %c0_i32, %c0_i32_0 : i32, i32, i32
  }
}

module attributes {stable_mosaic.version = 11 : i64} {
  func.func @_qkv_rope_kernel(%arg0: i32, %arg1: memref<1x8x128xbf16, #tpu.memory_space<vmem>>, %arg2: memref<1x128xf32, #tpu.memory_space<vmem>>, %arg3: memref<128x256xbf16, #tpu.memory_space<vmem>>, %arg4: memref<1x256xf32, #tpu.memory_space<vmem>>, %arg5: memref<1x8x32xf32, #tpu.memory_space<vmem>>, %arg6: memref<1x8x32xf32, #tpu.memory_space<vmem>>, %arg7: memref<1x8x256xbf16, #tpu.memory_space<vmem>>) attributes {dimension_semantics = [#tpu.dimension_semantics<parallel>], iteration_bounds = array<i64: 2>, scalar_prefetch = 0 : i64, scratch_operands = 0 : i64, tpu.core_type = #tpu.core_type<tc>, window_params = [{transform_indices = @transform_0, window_bounds = array<i64: 1, 8, 128>}, {pipeline_mode = #tpu.pipeline_mode<synchronous>, transform_indices = @transform_1, window_bounds = array<i64: 1, 128>}, {pipeline_mode = #tpu.pipeline_mode<synchronous>, transform_indices = @transform_2, window_bounds = array<i64: 128, 256>}, {pipeline_mode = #tpu.pipeline_mode<synchronous>, transform_indices = @transform_3, window_bounds = array<i64: 1, 256>}, {transform_indices = @transform_4, window_bounds = array<i64: 1, 8, 32>}, {transform_indices = @transform_5, window_bounds = array<i64: 1, 8, 32>}, {transform_indices = @transform_6, window_bounds = array<i64: 1, 8, 256>}]} {
    %c0 = arith.constant 0 : index
    %c0_0 = arith.constant 0 : index
    %c0_1 = arith.constant 0 : index
    %0 = vector.load %arg1[%c0, %c0_0, %c0_1] : memref<1x8x128xbf16, #tpu.memory_space<vmem>>, vector<1x8x128xbf16>
    %1 = vector.shape_cast %0 : vector<1x8x128xbf16> to vector<8x128xbf16>
    %2 = arith.extf %1 : vector<8x128xbf16> to vector<8x128xf32>
    %3 = arith.mulf %2, %2 : vector<8x128xf32>
    %cst = arith.constant dense<0.000000e+00> : vector<8xf32>
    %4 = vector.multi_reduction <add>, %3, %cst [1] : vector<8x128xf32> to vector<8xf32>
    %5 = vector.shape_cast %4 : vector<8xf32> to vector<8x1xf32>
    %cst_2 = arith.constant 1.280000e+02 : f32
    %6 = vector.broadcast %cst_2 : f32 to vector<8x1xf32>
    %7 = arith.divf %5, %6 : vector<8x1xf32>
    %cst_3 = arith.constant 9.99999997E-7 : f32
    %8 = vector.broadcast %cst_3 : f32 to vector<8x1xf32>
    %9 = arith.addf %7, %8 : vector<8x1xf32>
    %10 = math.rsqrt %9 : vector<8x1xf32>
    %11 = vector.broadcast %10 : vector<8x1xf32> to vector<8x128xf32>
    %12 = arith.mulf %2, %11 : vector<8x128xf32>
    %c0_4 = arith.constant 0 : index
    %c0_5 = arith.constant 0 : index
    %13 = vector.load %arg2[%c0_4, %c0_5] : memref<1x128xf32, #tpu.memory_space<vmem>>, vector<1x128xf32>
    %14 = vector.broadcast %13 : vector<1x128xf32> to vector<8x128xf32>
    %15 = arith.mulf %12, %14 : vector<8x128xf32>
    %16 = arith.truncf %15 : vector<8x128xf32> to vector<8x128xbf16>
    %c0_6 = arith.constant 0 : index
    %c0_7 = arith.constant 0 : index
    %17 = vector.load %arg3[%c0_6, %c0_7] : memref<128x256xbf16, #tpu.memory_space<vmem>>, vector<128x256xbf16>
    %cst_8 = arith.constant dense<0.000000e+00> : vector<8x256xf32>
    %18 = tpu.matmul %16, %17, %cst_8 {dimension_numbers = #tpu.dot_dimension_numbers<[1], [0], [0], [1], [0, 0, 1, 1], [], []>} : vector<8x128xbf16>, vector<128x256xbf16>, vector<8x256xf32> -> vector<8x256xf32>
    %c0_9 = arith.constant 0 : index
    %c0_10 = arith.constant 0 : index
    %19 = vector.load %arg4[%c0_9, %c0_10] : memref<1x256xf32, #tpu.memory_space<vmem>>, vector<1x256xf32>
    %20 = vector.broadcast %19 : vector<1x256xf32> to vector<8x256xf32>
    %21 = arith.addf %18, %20 : vector<8x256xf32>
    %22 = vector.extract_strided_slice %21 {offsets = [0, 16], sizes = [8, 240], strides = [1, 1]} : vector<8x256xf32> to vector<8x240xf32>
    %23 = vector.extract_strided_slice %21 {offsets = [0, 0], sizes = [8, 16], strides = [1, 1]} : vector<8x256xf32> to vector<8x16xf32>
    %24 = tpu.concatenate %22, %23 in 1 : vector<8x240xf32>, vector<8x16xf32> -> vector<8x256xf32>
    %25 = vector.extract_strided_slice %21 {offsets = [0, 240], sizes = [8, 16], strides = [1, 1]} : vector<8x256xf32> to vector<8x16xf32>
    %26 = vector.extract_strided_slice %21 {offsets = [0, 0], sizes = [8, 240], strides = [1, 1]} : vector<8x256xf32> to vector<8x240xf32>
    %27 = tpu.concatenate %25, %26 in 1 : vector<8x16xf32>, vector<8x240xf32> -> vector<8x256xf32>
    %28 = tpu.iota {dimensions = array<i32: 1>} : vector<8x256xi32>
    %c32_i32 = arith.constant 32 : i32
    %c0_i32 = arith.constant 0 : i32
    %29 = arith.cmpi eq, %c32_i32, %c0_i32 : i32
    %c1_i32 = arith.constant 1 : i32
    %30 = arith.select %29, %c1_i32, %c32_i32 : i32
    %31 = vector.broadcast %30 : i32 to vector<8x256xi32>
    %32 = arith.remsi %28, %31 : vector<8x256xi32>
    %c0_i32_11 = arith.constant 0 : i32
    %33 = vector.broadcast %c0_i32_11 : i32 to vector<8x256xi32>
    %34 = arith.cmpi ne, %32, %33 : vector<8x256xi32>
    %c0_i32_12 = arith.constant 0 : i32
    %35 = vector.broadcast %c0_i32_12 : i32 to vector<8x256xi32>
    %36 = arith.cmpi slt, %32, %35 : vector<8x256xi32>
    %c0_i32_13 = arith.constant 0 : i32
    %37 = arith.cmpi slt, %30, %c0_i32_13 : i32
    %38 = vector.broadcast %37 : i1 to vector<8x256xi1>
    %39 = vector.broadcast %38 : vector<8x256xi1> to vector<8x256xi1>
    %40 = arith.xori %36, %39 : vector<8x256xi1>
    %41 = arith.andi %40, %34 : vector<8x256xi1>
    %42 = vector.broadcast %30 : i32 to vector<8x256xi32>
    %43 = arith.addi %32, %42 : vector<8x256xi32>
    %44 = arith.select %41, %43, %32 : vector<8x256xi1>, vector<8x256xi32>
    %c16_i32 = arith.constant 16 : i32
    %45 = vector.broadcast %c16_i32 : i32 to vector<8x256xi32>
    %46 = arith.cmpi slt, %44, %45 : vector<8x256xi32>
    %cst_14 = arith.constant 0.000000e+00 : f32
    %47 = vector.broadcast %cst_14 : f32 to vector<8x256xf32>
    %48 = arith.subf %47, %24 : vector<8x256xf32>
    %49 = arith.select %46, %48, %27 : vector<8x256xi1>, vector<8x256xf32>
    %c0_15 = arith.constant 0 : index
    %c0_16 = arith.constant 0 : index
    %c0_17 = arith.constant 0 : index
    %50 = vector.load %arg5[%c0_15, %c0_16, %c0_17] : memref<1x8x32xf32, #tpu.memory_space<vmem>>, vector<1x8x32xf32>
    %51 = vector.shape_cast %50 : vector<1x8x32xf32> to vector<8x32xf32>
    %52 = tpu.concatenate %51, %51, %51, %51, %51, %51, %51, %51 in 1 : vector<8x32xf32>, vector<8x32xf32>, vector<8x32xf32>, vector<8x32xf32>, vector<8x32xf32>, vector<8x32xf32>, vector<8x32xf32>, vector<8x32xf32> -> vector<8x256xf32>
    %c0_18 = arith.constant 0 : index
    %c0_19 = arith.constant 0 : index
    %c0_20 = arith.constant 0 : index
    %53 = vector.load %arg6[%c0_18, %c0_19, %c0_20] : memref<1x8x32xf32, #tpu.memory_space<vmem>>, vector<1x8x32xf32>
    %54 = vector.shape_cast %53 : vector<1x8x32xf32> to vector<8x32xf32>
    %55 = tpu.concatenate %54, %54, %54, %54, %54, %54, %54, %54 in 1 : vector<8x32xf32>, vector<8x32xf32>, vector<8x32xf32>, vector<8x32xf32>, vector<8x32xf32>, vector<8x32xf32>, vector<8x32xf32>, vector<8x32xf32> -> vector<8x256xf32>
    %56 = arith.mulf %21, %52 : vector<8x256xf32>
    %57 = arith.mulf %49, %55 : vector<8x256xf32>
    %58 = arith.addf %56, %57 : vector<8x256xf32>
    %c192_i32 = arith.constant 192 : i32
    %59 = vector.broadcast %c192_i32 : i32 to vector<8x256xi32>
    %60 = arith.cmpi slt, %28, %59 : vector<8x256xi32>
    %61 = arith.select %60, %58, %21 : vector<8x256xi1>, vector<8x256xf32>
    %62 = arith.truncf %61 : vector<8x256xf32> to vector<8x256xbf16>
    %c0_21 = arith.constant 0 : index
    %c0_22 = arith.constant 0 : index
    %c0_23 = arith.constant 0 : index
    %63 = vector.load %arg7[%c0_21, %c0_22, %c0_23] : memref<1x8x256xbf16, #tpu.memory_space<vmem>>, vector<1x8x256xbf16>
    %64 = vector.shape_cast %63 : vector<1x8x256xbf16> to vector<8x256xbf16>
    %65 = vector.shape_cast %62 : vector<8x256xbf16> to vector<1x8x256xbf16>
    tpu.vector_store %arg7[%c0_21, %c0_22, %c0_23], %65 {strides = array<i32>} : memref<1x8x256xbf16, #tpu.memory_space<vmem>>, vector<1x8x256xbf16>,
    return
  }
  func.func @transform_0(%arg0: i32) -> (i32, i32, i32) {
    %c0_i32 = arith.constant 0 : i32
    %c0_i32_0 = arith.constant 0 : i32
    %c0_i32_1 = arith.constant 0 : i32
    return %arg0, %c0_i32, %c0_i32_0 : i32, i32, i32
  }
  func.func @transform_1(%arg0: i32) -> (i32, i32) {
    %c0_i32 = arith.constant 0 : i32
    %c0_i32_0 = arith.constant 0 : i32
    %c0_i32_1 = arith.constant 0 : i32
    return %c0_i32, %c0_i32_0 : i32, i32
  }
  func.func @transform_2(%arg0: i32) -> (i32, i32) {
    %c0_i32 = arith.constant 0 : i32
    %c0_i32_0 = arith.constant 0 : i32
    %c0_i32_1 = arith.constant 0 : i32
    return %c0_i32, %c0_i32_0 : i32, i32
  }
  func.func @transform_3(%arg0: i32) -> (i32, i32) {
    %c0_i32 = arith.constant 0 : i32
    %c0_i32_0 = arith.constant 0 : i32
    %c0_i32_1 = arith.constant 0 : i32
    return %c0_i32, %c0_i32_0 : i32, i32
  }
  func.func @transform_4(%arg0: i32) -> (i32, i32, i32) {
    %c0_i32 = arith.constant 0 : i32
    %c0_i32_0 = arith.constant 0 : i32
    %c0_i32_1 = arith.constant 0 : i32
    return %arg0, %c0_i32, %c0_i32_0 : i32, i32, i32
  }
  func.func @transform_5(%arg0: i32) -> (i32, i32, i32) {
    %c0_i32 = arith.constant 0 : i32
    %c0_i32_0 = arith.constant 0 : i32
    %c0_i32_1 = arith.constant 0 : i32
    return %arg0, %c0_i32, %c0_i32_0 : i32, i32, i32
  }
  func.func @transform_6(%arg0: i32) -> (i32, i32, i32) {
    %c0_i32 = arith.constant 0 : i32
    %c0_i32_0 = arith.constant 0 : i32
    %c0_i32_1 = arith.constant 0 : i32
    return %arg0, %c0_i32, %c0_i32_0 : i32, i32, i32
  }
}

module attributes {stable_mosaic.version = 11 : i64} {
  func.func @_head_kernel(%arg0: i32, %arg1: i32, %arg2: memref<1x8x128xbf16, #tpu.memory_space<vmem>>, %arg3: memref<1x128xf32, #tpu.memory_space<vmem>>, %arg4: memref<128x128xbf16, #tpu.memory_space<vmem>>, %arg5: memref<1x8x128xf32, #tpu.memory_space<vmem>>) attributes {dimension_semantics = [#tpu.dimension_semantics<parallel>, #tpu.dimension_semantics<parallel>], iteration_bounds = array<i64: 2, 1>, scalar_prefetch = 0 : i64, scratch_operands = 0 : i64, tpu.core_type = #tpu.core_type<tc>, window_params = [{transform_indices = @transform_0, window_bounds = array<i64: 1, 8, 128>}, {pipeline_mode = #tpu.pipeline_mode<synchronous>, transform_indices = @transform_1, window_bounds = array<i64: 1, 128>}, {transform_indices = @transform_2, window_bounds = array<i64: 128, 128>}, {transform_indices = @transform_3, window_bounds = array<i64: 1, 8, 128>}]} {
    %c0 = arith.constant 0 : index
    %c0_0 = arith.constant 0 : index
    %c0_1 = arith.constant 0 : index
    %0 = vector.load %arg2[%c0, %c0_0, %c0_1] : memref<1x8x128xbf16, #tpu.memory_space<vmem>>, vector<1x8x128xbf16>
    %1 = vector.shape_cast %0 : vector<1x8x128xbf16> to vector<8x128xbf16>
    %2 = arith.extf %1 : vector<8x128xbf16> to vector<8x128xf32>
    %3 = arith.mulf %2, %2 : vector<8x128xf32>
    %cst = arith.constant dense<0.000000e+00> : vector<8xf32>
    %4 = vector.multi_reduction <add>, %3, %cst [1] : vector<8x128xf32> to vector<8xf32>
    %5 = vector.shape_cast %4 : vector<8xf32> to vector<8x1xf32>
    %cst_2 = arith.constant 1.280000e+02 : f32
    %6 = vector.broadcast %cst_2 : f32 to vector<8x1xf32>
    %7 = arith.divf %5, %6 : vector<8x1xf32>
    %cst_3 = arith.constant 9.99999997E-7 : f32
    %8 = vector.broadcast %cst_3 : f32 to vector<8x1xf32>
    %9 = arith.addf %7, %8 : vector<8x1xf32>
    %10 = math.rsqrt %9 : vector<8x1xf32>
    %11 = vector.broadcast %10 : vector<8x1xf32> to vector<8x128xf32>
    %12 = arith.mulf %2, %11 : vector<8x128xf32>
    %c0_4 = arith.constant 0 : index
    %c0_5 = arith.constant 0 : index
    %13 = vector.load %arg3[%c0_4, %c0_5] : memref<1x128xf32, #tpu.memory_space<vmem>>, vector<1x128xf32>
    %14 = vector.broadcast %13 : vector<1x128xf32> to vector<8x128xf32>
    %15 = arith.mulf %12, %14 : vector<8x128xf32>
    %16 = arith.truncf %15 : vector<8x128xf32> to vector<8x128xbf16>
    %c0_6 = arith.constant 0 : index
    %c0_7 = arith.constant 0 : index
    %17 = vector.load %arg4[%c0_6, %c0_7] : memref<128x128xbf16, #tpu.memory_space<vmem>>, vector<128x128xbf16>
    %cst_8 = arith.constant dense<0.000000e+00> : vector<8x128xf32>
    %18 = tpu.matmul %16, %17, %cst_8 {dimension_numbers = #tpu.dot_dimension_numbers<[1], [0], [0], [1], [0, 0, 1, 1], [], []>} : vector<8x128xbf16>, vector<128x128xbf16>, vector<8x128xf32> -> vector<8x128xf32>
    %c0_9 = arith.constant 0 : index
    %c0_10 = arith.constant 0 : index
    %c0_11 = arith.constant 0 : index
    %19 = vector.load %arg5[%c0_9, %c0_10, %c0_11] : memref<1x8x128xf32, #tpu.memory_space<vmem>>, vector<1x8x128xf32>
    %20 = vector.shape_cast %19 : vector<1x8x128xf32> to vector<8x128xf32>
    %21 = vector.shape_cast %18 : vector<8x128xf32> to vector<1x8x128xf32>
    tpu.vector_store %arg5[%c0_9, %c0_10, %c0_11], %21 {strides = array<i32>} : memref<1x8x128xf32, #tpu.memory_space<vmem>>, vector<1x8x128xf32>,
    return
  }
  func.func @transform_0(%arg0: i32, %arg1: i32) -> (i32, i32, i32) {
    %c0_i32 = arith.constant 0 : i32
    %c0_i32_0 = arith.constant 0 : i32
    %c0_i32_1 = arith.constant 0 : i32
    return %arg0, %c0_i32, %c0_i32_0 : i32, i32, i32
  }
  func.func @transform_1(%arg0: i32, %arg1: i32) -> (i32, i32) {
    %c0_i32 = arith.constant 0 : i32
    %c0_i32_0 = arith.constant 0 : i32
    %c0_i32_1 = arith.constant 0 : i32
    return %c0_i32, %c0_i32_0 : i32, i32
  }
  func.func @transform_2(%arg0: i32, %arg1: i32) -> (i32, i32) {
    %c0_i32 = arith.constant 0 : i32
    %c0_i32_0 = arith.constant 0 : i32
    return %c0_i32, %arg1 : i32, i32
  }
  func.func @transform_3(%arg0: i32, %arg1: i32) -> (i32, i32, i32) {
    %c0_i32 = arith.constant 0 : i32
    %c0_i32_0 = arith.constant 0 : i32
    return %arg0, %c0_i32, %arg1 : i32, i32, i32
  }
}

module attributes {stable_mosaic.version = 11 : i64} {
  func.func @_mlp_kernel(%arg0: i32, %arg1: i32, %arg2: memref<1x8x128xbf16, #tpu.memory_space<vmem>>, %arg3: memref<1x128xf32, #tpu.memory_space<vmem>>, %arg4: memref<128x128xbf16, #tpu.memory_space<vmem>>, %arg5: memref<128x128xbf16, #tpu.memory_space<vmem>>, %arg6: memref<128x128xbf16, #tpu.memory_space<vmem>>, %arg7: memref<1x8x128xbf16, #tpu.memory_space<vmem>>, %arg8: memref<8x128xf32, #tpu.memory_space<vmem>>) attributes {dimension_semantics = [#tpu.dimension_semantics<parallel>, #tpu.dimension_semantics<arbitrary>], iteration_bounds = array<i64: 2, 2>, scalar_prefetch = 0 : i64, scratch_operands = 1 : i64, tpu.core_type = #tpu.core_type<tc>, window_params = [{transform_indices = @transform_0, window_bounds = array<i64: 1, 8, 128>}, {pipeline_mode = #tpu.pipeline_mode<synchronous>, transform_indices = @transform_1, window_bounds = array<i64: 1, 128>}, {transform_indices = @transform_2, window_bounds = array<i64: 128, 128>}, {transform_indices = @transform_3, window_bounds = array<i64: 128, 128>}, {transform_indices = @transform_4, window_bounds = array<i64: 128, 128>}, {transform_indices = @transform_5, window_bounds = array<i64: 1, 8, 128>}]} {
    %c0 = arith.constant 0 : index
    %c0_0 = arith.constant 0 : index
    %c0_1 = arith.constant 0 : index
    %0 = vector.load %arg2[%c0, %c0_0, %c0_1] : memref<1x8x128xbf16, #tpu.memory_space<vmem>>, vector<1x8x128xbf16>
    %1 = vector.shape_cast %0 : vector<1x8x128xbf16> to vector<8x128xbf16>
    %2 = arith.extf %1 : vector<8x128xbf16> to vector<8x128xf32>
    %3 = arith.mulf %2, %2 : vector<8x128xf32>
    %cst = arith.constant dense<0.000000e+00> : vector<8xf32>
    %4 = vector.multi_reduction <add>, %3, %cst [1] : vector<8x128xf32> to vector<8xf32>
    %5 = vector.shape_cast %4 : vector<8xf32> to vector<8x1xf32>
    %cst_2 = arith.constant 1.280000e+02 : f32
    %6 = vector.broadcast %cst_2 : f32 to vector<8x1xf32>
    %7 = arith.divf %5, %6 : vector<8x1xf32>
    %cst_3 = arith.constant 9.99999997E-7 : f32
    %8 = vector.broadcast %cst_3 : f32 to vector<8x1xf32>
    %9 = arith.addf %7, %8 : vector<8x1xf32>
    %10 = math.rsqrt %9 : vector<8x1xf32>
    %11 = vector.broadcast %10 : vector<8x1xf32> to vector<8x128xf32>
    %12 = arith.mulf %2, %11 : vector<8x128xf32>
    %c0_4 = arith.constant 0 : index
    %c0_5 = arith.constant 0 : index
    %13 = vector.load %arg3[%c0_4, %c0_5] : memref<1x128xf32, #tpu.memory_space<vmem>>, vector<1x128xf32>
    %14 = vector.broadcast %13 : vector<1x128xf32> to vector<8x128xf32>
    %15 = arith.mulf %12, %14 : vector<8x128xf32>
    %16 = arith.truncf %15 : vector<8x128xf32> to vector<8x128xbf16>
    %c0_6 = arith.constant 0 : index
    %c0_7 = arith.constant 0 : index
    %17 = vector.load %arg4[%c0_6, %c0_7] : memref<128x128xbf16, #tpu.memory_space<vmem>>, vector<128x128xbf16>
    %cst_8 = arith.constant dense<0.000000e+00> : vector<8x128xf32>
    %18 = tpu.matmul %16, %17, %cst_8 {dimension_numbers = #tpu.dot_dimension_numbers<[1], [0], [0], [1], [0, 0, 1, 1], [], []>} : vector<8x128xbf16>, vector<128x128xbf16>, vector<8x128xf32> -> vector<8x128xf32>
    %c0_9 = arith.constant 0 : index
    %c0_10 = arith.constant 0 : index
    %19 = vector.load %arg5[%c0_9, %c0_10] : memref<128x128xbf16, #tpu.memory_space<vmem>>, vector<128x128xbf16>
    %cst_11 = arith.constant dense<0.000000e+00> : vector<8x128xf32>
    %20 = tpu.matmul %16, %19, %cst_11 {dimension_numbers = #tpu.dot_dimension_numbers<[1], [0], [0], [1], [0, 0, 1, 1], [], []>} : vector<8x128xbf16>, vector<128x128xbf16>, vector<8x128xf32> -> vector<8x128xf32>
    %21 = arith.negf %18 : vector<8x128xf32>
    %22 = math.exp %21 : vector<8x128xf32>
    %cst_12 = arith.constant 1.000000e+00 : f32
    %23 = vector.broadcast %cst_12 : f32 to vector<8x128xf32>
    %24 = arith.addf %23, %22 : vector<8x128xf32>
    %25 = arith.divf %23, %24 : vector<8x128xf32>
    %26 = arith.mulf %18, %25 : vector<8x128xf32>
    %27 = arith.mulf %26, %20 : vector<8x128xf32>
    %28 = arith.truncf %27 : vector<8x128xf32> to vector<8x128xbf16>
    %c0_i32 = arith.constant 0 : i32
    %29 = arith.cmpi eq, %arg1, %c0_i32 : i32
    %30 = arith.extui %29 : i1 to i32
    %c0_i32_13 = arith.constant 0 : i32
    %31 = arith.cmpi ne, %30, %c0_i32_13 : i32
    scf.if %31 {
      %cst_22 = arith.constant 0.000000e+00 : f32
      %40 = vector.broadcast %cst_22 : f32 to vector<8x128xf32>
      %c0_23 = arith.constant 0 : index
      %c0_24 = arith.constant 0 : index
      %41 = vector.load %arg8[%c0_23, %c0_24] : memref<8x128xf32, #tpu.memory_space<vmem>>, vector<8x128xf32>
      tpu.vector_store %arg8[%c0_23, %c0_24], %40 {strides = array<i32>} : memref<8x128xf32, #tpu.memory_space<vmem>>, vector<8x128xf32>,
    } else {
    }
    %c0_14 = arith.constant 0 : index
    %c0_15 = arith.constant 0 : index
    %32 = vector.load %arg8[%c0_14, %c0_15] : memref<8x128xf32, #tpu.memory_space<vmem>>, vector<8x128xf32>
    %c0_16 = arith.constant 0 : index
    %c0_17 = arith.constant 0 : index
    %33 = vector.load %arg6[%c0_16, %c0_17] : memref<128x128xbf16, #tpu.memory_space<vmem>>, vector<128x128xbf16>
    %cst_18 = arith.constant dense<0.000000e+00> : vector<8x128xf32>
    %34 = tpu.matmul %28, %33, %cst_18 {dimension_numbers = #tpu.dot_dimension_numbers<[1], [0], [0], [1], [0, 0, 1, 1], [], []>} : vector<8x128xbf16>, vector<128x128xbf16>, vector<8x128xf32> -> vector<8x128xf32>
    %35 = arith.addf %32, %34 : vector<8x128xf32>
    %c0_19 = arith.constant 0 : index
    %c0_20 = arith.constant 0 : index
    %36 = vector.load %arg8[%c0_19, %c0_20] : memref<8x128xf32, #tpu.memory_space<vmem>>, vector<8x128xf32>
    tpu.vector_store %arg8[%c0_19, %c0_20], %35 {strides = array<i32>} : memref<8x128xf32, #tpu.memory_space<vmem>>, vector<8x128xf32>,
    %c1_i32 = arith.constant 1 : i32
    %37 = arith.cmpi eq, %arg1, %c1_i32 : i32
    %38 = arith.extui %37 : i1 to i32
    %c0_i32_21 = arith.constant 0 : i32
    %39 = arith.cmpi ne, %38, %c0_i32_21 : i32
    scf.if %39 {
      %c0_22 = arith.constant 0 : index
      %c0_23 = arith.constant 0 : index
      %40 = vector.load %arg8[%c0_22, %c0_23] : memref<8x128xf32, #tpu.memory_space<vmem>>, vector<8x128xf32>
      %41 = arith.addf %2, %40 : vector<8x128xf32>
      %42 = arith.truncf %41 : vector<8x128xf32> to vector<8x128xbf16>
      %c0_24 = arith.constant 0 : index
      %c0_25 = arith.constant 0 : index
      %c0_26 = arith.constant 0 : index
      %43 = vector.load %arg7[%c0_24, %c0_25, %c0_26] : memref<1x8x128xbf16, #tpu.memory_space<vmem>>, vector<1x8x128xbf16>
      %44 = vector.shape_cast %43 : vector<1x8x128xbf16> to vector<8x128xbf16>
      %45 = vector.shape_cast %42 : vector<8x128xbf16> to vector<1x8x128xbf16>
      tpu.vector_store %arg7[%c0_24, %c0_25, %c0_26], %45 {strides = array<i32>} : memref<1x8x128xbf16, #tpu.memory_space<vmem>>, vector<1x8x128xbf16>,
    } else {
    }
    return
  }
  func.func @transform_0(%arg0: i32, %arg1: i32) -> (i32, i32, i32) {
    %c0_i32 = arith.constant 0 : i32
    %c0_i32_0 = arith.constant 0 : i32
    %c0_i32_1 = arith.constant 0 : i32
    return %arg0, %c0_i32, %c0_i32_0 : i32, i32, i32
  }
  func.func @transform_1(%arg0: i32, %arg1: i32) -> (i32, i32) {
    %c0_i32 = arith.constant 0 : i32
    %c0_i32_0 = arith.constant 0 : i32
    %c0_i32_1 = arith.constant 0 : i32
    return %c0_i32, %c0_i32_0 : i32, i32
  }
  func.func @transform_2(%arg0: i32, %arg1: i32) -> (i32, i32) {
    %c0_i32 = arith.constant 0 : i32
    %c0_i32_0 = arith.constant 0 : i32
    return %c0_i32, %arg1 : i32, i32
  }
  func.func @transform_3(%arg0: i32, %arg1: i32) -> (i32, i32) {
    %c0_i32 = arith.constant 0 : i32
    %c0_i32_0 = arith.constant 0 : i32
    return %c0_i32, %arg1 : i32, i32
  }
  func.func @transform_4(%arg0: i32, %arg1: i32) -> (i32, i32) {
    %c0_i32 = arith.constant 0 : i32
    %c0_i32_0 = arith.constant 0 : i32
    return %arg1, %c0_i32 : i32, i32
  }
  func.func @transform_5(%arg0: i32, %arg1: i32) -> (i32, i32, i32) {
    %c0_i32 = arith.constant 0 : i32
    %c0_i32_0 = arith.constant 0 : i32
    %c0_i32_1 = arith.constant 0 : i32
    return %arg0, %c0_i32, %c0_i32_0 : i32, i32, i32
  }
}

</mosaic_0001>

<llo_original>
// kernel: qwen2_forward.7
$region0: #{qwen2_forward.7}
  #allocation0 [shape = 'u32[]', space=smem, size = 0x4, offset = 0x4, fixed_abs, tag = 'smem constant byte address 0x4 - core index']
  #allocation1 [shape = 'u32[72,128]{1,0:T(1,128)}', space=vmem, size = 0x9000, scoped, tag = 'internal scratch']
  %s0 = inlined_call_operand.vmem [shape: bf16[2,8,128], index: 0, kind: input, shape index: {}]
  %s1 = inlined_call_operand.vmem [shape: f32[1,128], index: 1, kind: input, shape index: {}]
  %s2 = inlined_call_operand.hbm [shape: bf16[128,256], index: 2, kind: input, shape index: {}]
  %s3 = inlined_call_operand.vmem [shape: f32[1,256], index: 3, kind: input, shape index: {}]
  %s4 = inlined_call_operand.vmem [shape: f32[2,8,32], index: 4, kind: input, shape index: {}]
  %s5 = inlined_call_operand.vmem [shape: f32[2,8,32], index: 5, kind: input, shape index: {}]
  %s6 = inlined_call_operand.vmem [shape: bf16[2,8,256], index: 6, kind: output, shape index: {}]
  %s7 = sld [smem:[#allocation0]]
  $region61: #{qwen2_forward.7} parent=0
    _
  %s9 = ssub.s32 1, %s7
  %s10 = scalar_select 0, %s9, %s7
  $region1: #{qwen2_forward.7} parent=0
    #allocation2 [shape = 'u8[65536]{0}', space=vmem, size = 0x10000, scoped, tag = 'input window, operand 2, single buffered']
    #allocation3 [shape = 's32[2]{0}', space=sflag, size = 0x8, scoped, tag = 'scoped memory for qwen2_forward.7']
    %11 = vsyncpa [#allocation3], 0
    loop: start=0, step=1, limit=4
    $region2: #{qwen2_forward.7} parent=1 // loop_pre_header
      _
    $region3: #{qwen2_forward.7} parent=1 // loop_header
      %s13 = sphi 0, %s17
      %p14 = scmp.ge.s32.totalorder %s13, 4
      %s23 = sphi 0, %s25
      %s26 = sphi 0, %s23
      %s27 = sphi 0, %s26
      %s43 = sphi 0, %s27
      %s47 = sphi 0, %s47
      %s49 = sphi 0, %s47
      %s50 = sphi 0, %s49
      %s64 = sphi 0, %s50
      %s68 = sphi 0, %s68
      %s70 = sphi 0, %s68
      %s71 = sphi 0, %s70
      %s85 = sphi 0, %s71
      %s89 = sphi 0, %s89
      %s91 = sphi 0, %s89
      %s92 = sphi 0, %s91
      %s106 = sphi 0, %s92
      %s112 = sphi 0, %s114
      %s115 = sphi 0, %s112
      %s116 = sphi 0, %s115
      %s132 = sphi 0, %s116
      %s138 = sphi 0, %s140
      %s141 = sphi 0, %s138
      %s142 = sphi 0, %s141
      %s158 = sphi 0, %s142
      %s164 = sphi 0, %s166
      %s167 = sphi 0, %s164
      %s168 = sphi 0, %s167
      %s184 = sphi 0, %s168
    $region4: #{qwen2_forward.7} parent=1 // loop_header_branch
      %16 = sbr.rel (%p14) target = $region8
    $region5: #{qwen2_forward.7} parent=1 // loop_body
      %s18 = ssub.s32 %s13, 1
      %s19 = ssub.s32 %s13, 2
      %s20 = sadd.s32 %s13, 1
      %s21 = ssub.s32 %s13, %s20
      %p22 = scmp.eq.s32.totalorder %s21, 0
      %s24 = sadd.s32 %s23, 1
      %s25 = scalar_select %p22, %s23, %s24
      %p28 = pneg %p22
      %p29 = scmp.eq.s32.totalorder %s13, 1
      %p30 = por %p28, %p29
      %p31 = scmp.ne.s32.totalorder %s23, %s26
      %p32 = scmp.eq.s32.totalorder %s13, 0
      %p33 = por %p31, %p32
      %p34 = scmp.ne.s32.totalorder %s23, %s26
      %p35 = scmp.eq.s32.totalorder %s18, 1
      %p36 = por %p34, %p35
      %p37 = scmp.ne.s32.totalorder %s26, %s27
      %p38 = scmp.eq.s32.totalorder %s18, 0
      %p39 = por %p37, %p38
      %p40 = scmp.ne.s32.totalorder %s26, %s27
      %p41 = scmp.eq.s32.totalorder %s19, 1
      %p42 = por %p40, %p41
      %p44 = scmp.ne.s32.totalorder %s27, %s43
      %p45 = scmp.eq.s32.totalorder %s19, 0
      %p46 = por %p44, %p45
      %s48 = sadd.s32 %s47, 1
      %p51 = scmp.eq.s32.totalorder %s13, 1
      %p52 = scmp.ne.s32.totalorder %s47, %s49
      %p53 = scmp.eq.s32.totalorder %s13, 0
      %p54 = por %p52, %p53
      %p55 = scmp.ne.s32.totalorder %s47, %s49
      %p56 = scmp.eq.s32.totalorder %s18, 1
      %p57 = por %p55, %p56
      %p58 = scmp.ne.s32.totalorder %s49, %s50
      %p59 = scmp.eq.s32.totalorder %s18, 0
      %p60 = por %p58, %p59
      %p61 = scmp.ne.s32.totalorder %s49, %s50
      %p62 = scmp.eq.s32.totalorder %s19, 1
      %p63 = por %p61, %p62
      %p65 = scmp.ne.s32.totalorder %s50, %s64
      %p66 = scmp.eq.s32.totalorder %s19, 0
      %p67 = por %p65, %p66
      %s69 = sadd.s32 %s68, 1
      %p72 = scmp.eq.s32.totalorder %s13, 1
      %p73 = scmp.ne.s32.totalorder %s68, %s70
      %p74 = scmp.eq.s32.totalorder %s13, 0
      %p75 = por %p73, %p74
      %p76 = scmp.ne.s32.totalorder %s68, %s70
      %p77 = scmp.eq.s32.totalorder %s18, 1
      %p78 = por %p76, %p77
      %p79 = scmp.ne.s32.totalorder %s70, %s71
      %p80 = scmp.eq.s32.totalorder %s18, 0
      %p81 = por %p79, %p80
      %p82 = scmp.ne.s32.totalorder %s70, %s71
      %p83 = scmp.eq.s32.totalorder %s19, 1
      %p84 = por %p82, %p83
      %p86 = scmp.ne.s32.totalorder %s71, %s85
      %p87 = scmp.eq.s32.totalorder %s19, 0
      %p88 = por %p86, %p87
      %s90 = sadd.s32 %s89, 1
      %p93 = scmp.eq.s32.totalorder %s13, 1
      %p94 = scmp.ne.s32.totalorder %s89, %s91
      %p95 = scmp.eq.s32.totalorder %s13, 0
      %p96 = por %p94, %p95
      %p97 = scmp.ne.s32.totalorder %s89, %s91
      %p98 = scmp.eq.s32.totalorder %s18, 1
      %p99 = por %p97, %p98
      %p100 = scmp.ne.s32.totalorder %s91, %s92
      %p101 = scmp.eq.s32.totalorder %s18, 0
      %p102 = por %p100, %p101
      %p103 = scmp.ne.s32.totalorder %s91, %s92
      %p104 = scmp.eq.s32.totalorder %s19, 1
      %p105 = por %p103, %p104
      %p107 = scmp.ne.s32.totalorder %s92, %s106
      %p108 = scmp.eq.s32.totalorder %s19, 0
      %p109 = por %p107, %p108
      %s110 = ssub.s32 %s13, %s20
      %p111 = scmp.eq.s32.totalorder %s110, 0
      %s113 = sadd.s32 %s112, 1
      %s114 = scalar_select %p111, %s112, %s113
      %p117 = pneg %p111
      %p118 = scmp.eq.s32.totalorder %s13, 1
      %p119 = por %p117, %p118
      %p120 = scmp.ne.s32.totalorder %s112, %s115
      %p121 = scmp.eq.s32.totalorder %s13, 0
      %p122 = por %p120, %p121
      %p123 = scmp.ne.s32.totalorder %s112, %s115
      %p124 = scmp.eq.s32.totalorder %s18, 1
      %p125 = por %p123, %p124
      %p126 = scmp.ne.s32.totalorder %s115, %s116
      %p127 = scmp.eq.s32.totalorder %s18, 0
      %p128 = por %p126, %p127
      %p129 = scmp.ne.s32.totalorder %s115, %s116
      %p130 = scmp.eq.s32.totalorder %s19, 1
      %p131 = por %p129, %p130
      %p133 = scmp.ne.s32.totalorder %s116, %s132
      %p134 = scmp.eq.s32.totalorder %s19, 0
      %p135 = por %p133, %p134
      %s136 = ssub.s32 %s13, %s20
      %p137 = scmp.eq.s32.totalorder %s136, 0
      %s139 = sadd.s32 %s138, 1
      %s140 = scalar_select %p137, %s138, %s139
      %p143 = pneg %p137
      %p144 = scmp.eq.s32.totalorder %s13, 1
      %p145 = por %p143, %p144
      %p146 = scmp.ne.s32.totalorder %s138, %s141
      %p147 = scmp.eq.s32.totalorder %s13, 0
      %p148 = por %p146, %p147
      %p149 = scmp.ne.s32.totalorder %s138, %s141
      %p150 = scmp.eq.s32.totalorder %s18, 1
      %p151 = por %p149, %p150
      %p152 = scmp.ne.s32.totalorder %s141, %s142
      %p153 = scmp.eq.s32.totalorder %s18, 0
      %p154 = por %p152, %p153
      %p155 = scmp.ne.s32.totalorder %s141, %s142
      %p156 = scmp.eq.s32.totalorder %s19, 1
      %p157 = por %p155, %p156
      %p159 = scmp.ne.s32.totalorder %s142, %s158
      %p160 = scmp.eq.s32.totalorder %s19, 0
      %p161 = por %p159, %p160
      %s162 = ssub.s32 %s13, %s20
      %p163 = scmp.eq.s32.totalorder %s162, 0
      %s165 = sadd.s32 %s164, 1
      %s166 = scalar_select %p163, %s164, %s165
      %p169 = pneg %p163
      %p170 = scmp.eq.s32.totalorder %s13, 1
      %p171 = por %p169, %p170
      %p172 = scmp.ne.s32.totalorder %s164, %s167
      %p173 = scmp.eq.s32.totalorder %s13, 0
      %p174 = por %p172, %p173
      %p175 = scmp.ne.s32.totalorder %s164, %s167
      %p176 = scmp.eq.s32.totalorder %s18, 1
      %p177 = por %p175, %p176
      %p178 = scmp.ne.s32.totalorder %s167, %s168
      %p179 = scmp.eq.s32.totalorder %s18, 0
      %p180 = por %p178, %p179
      %p181 = scmp.ne.s32.totalorder %s167, %s168
      %p182 = scmp.eq.s32.totalorder %s19, 1
      %p183 = por %p181, %p182
      %p185 = scmp.ne.s32.totalorder %s168, %s184
      %p186 = scmp.eq.s32.totalorder %s19, 0
      %p187 = por %p185, %p186
      %p188 = scmp.le.s32.totalorder 1, %s13
      %p189 = scmp.lt.s32.totalorder %s13, 3
      %p190 = pnand %p188, %p189
      %p191 = pneg %p190
      // Predicated region
      $region9: #{qwen2_forward.7} parent=5 // pred_check
        _
      $region10: #{qwen2_forward.7} parent=5 // pred_check_branch
        %193 = sbr.rel (%p190) target = $region12
      $region11: #{qwen2_forward.7} parent=5 // pred_region
        %s194 = ssub.s32 %s13, 1
        // Predicated region
        $region13: #{qwen2_forward.7} parent=11 // pred_check
          %p195 = pneg %p60
        $region14: #{qwen2_forward.7} parent=11 // pred_check_branch
          %197 = sbr.rel (%p195) target = $region16
        $region15: #{qwen2_forward.7} parent=11 // pred_region
          _
        $region16: #{qwen2_forward.7} parent=11 // pred_fallthru
          _
        // Predicated region
        $region17: #{qwen2_forward.7} parent=11 // pred_check
          %p198 = pneg %p81
        $region18: #{qwen2_forward.7} parent=11 // pred_check_branch
          %200 = sbr.rel (%p198) target = $region20
        $region19: #{qwen2_forward.7} parent=11 // pred_region
          %202 = vsyncadd [#allocation3], 0
          %s203 = sshll.u32 %s2, 4
          %s204 = int_to_ptr.hbm [resolvable:$true] %s203
          %s205 = sshll.u32 [#allocation2], 4
          %s206 = int_to_ptr.vmem [resolvable:$true] %s205
          %211 = dma.hbm_to_vmem [thread:$0]  %s204, 2048, %s206, [#allocation3], 128, 128, 8
        $region20: #{qwen2_forward.7} parent=11 // pred_fallthru
          _
        // Predicated region
        $region21: #{qwen2_forward.7} parent=11 // pred_check
          %p212 = pneg %p102
        $region22: #{qwen2_forward.7} parent=11 // pred_check_branch
          %214 = sbr.rel (%p212) target = $region24
        $region23: #{qwen2_forward.7} parent=11 // pred_region
          _
        $region24: #{qwen2_forward.7} parent=11 // pred_fallthru
          _
      $region12: #{qwen2_forward.7} parent=5 // pred_fallthru
        _
      %p215 = scmp.lt.s32.totalorder %s13, 2
      // Predicated region
      $region25: #{qwen2_forward.7} parent=5 // pred_check
        %p216 = pneg %p215
      $region26: #{qwen2_forward.7} parent=5 // pred_check_branch
        %218 = sbr.rel (%p216) target = $region28
      $region27: #{qwen2_forward.7} parent=5 // pred_region
        // Predicated region
        $region29: #{qwen2_forward.7} parent=27 // pred_check
          %p219 = pneg %p33
        $region30: #{qwen2_forward.7} parent=27 // pred_check_branch
          %221 = sbr.rel (%p219) target = $region32
        $region31: #{qwen2_forward.7} parent=27 // pred_region
          %p222 = scmp.lt.s32.totalorder %s13, 1
          %s223 = scalar_select %p222, %s13, 1
          %s224 = smul.addr %s223, 4
          %s225 = scalar_lea.vmem %s0, %s224
        $region32: #{qwen2_forward.7} parent=27 // pred_fallthru
          _
        // Predicated region
        $region33: #{qwen2_forward.7} parent=27 // pred_check
          %p226 = pneg %p122
        $region34: #{qwen2_forward.7} parent=27 // pred_check_branch
          %228 = sbr.rel (%p226) target = $region36
        $region35: #{qwen2_forward.7} parent=27 // pred_region
          %p229 = scmp.lt.s32.totalorder %s13, 1
          %s230 = scalar_select %p229, %s13, 1
          %s231 = smul.addr %s230, 8
          %s232 = scalar_lea.vmem %s4, %s231
        $region36: #{qwen2_forward.7} parent=27 // pred_fallthru
          _
        // Predicated region
        $region37: #{qwen2_forward.7} parent=27 // pred_check
          %p233 = pneg %p148
        $region38: #{qwen2_forward.7} parent=27 // pred_check_branch
          %235 = sbr.rel (%p233) target = $region40
        $region39: #{qwen2_forward.7} parent=27 // pred_region
          %p236 = scmp.lt.s32.totalorder %s13, 1
          %s237 = scalar_select %p236, %s13, 1
          %s238 = smul.addr %s237, 8
          %s239 = scalar_lea.vmem %s5, %s238
        $region40: #{qwen2_forward.7} parent=27 // pred_fallthru
          _
      $region28: #{qwen2_forward.7} parent=5 // pred_fallthru
        _
      %p240 = scmp.le.s32.totalorder 1, %s13
      %p241 = scmp.lt.s32.totalorder %s13, 3
      %p242 = pnand %p240, %p241
      %p243 = pneg %p242
      // Predicated region
      $region41: #{qwen2_forward.7} parent=5 // pred_check
        _
      $region42: #{qwen2_forward.7} parent=5 // pred_check_branch
        %245 = sbr.rel (%p242) target = $region44
      $region43: #{qwen2_forward.7} parent=5 // pred_region
        %s246 = ssub.s32 %s13, 1
        // Predicated region
        $region45: #{qwen2_forward.7} parent=43 // pred_check
          %p247 = pneg %p81
        $region46: #{qwen2_forward.7} parent=43 // pred_check_branch
          %249 = sbr.rel (%p247) target = $region48
        $region47: #{qwen2_forward.7} parent=43 // pred_region
          %251 = dma.done [#allocation3], 2048
        $region48: #{qwen2_forward.7} parent=43 // pred_fallthru
          _
        %p252 = scmp.lt.s32.totalorder %s18, 1
        %s253 = scalar_select %p252, %s18, 1
        %s254 = smul.addr %s253, 4
        %s255 = scalar_lea.vmem %s0, %s254
        %p256 = pneg %p39
        %p257 = pneg %p36
        %p258 = pneg %p60
        %p259 = pneg %p57
        %p260 = pneg %p81
        %p261 = pneg %p78
        %p262 = pneg %p102
        %p263 = pneg %p99
        %p264 = scmp.lt.s32.totalorder %s18, 1
        %s265 = scalar_select %p264, %s18, 1
        %s266 = smul.addr %s265, 8
        %s267 = scalar_lea.vmem %s4, %s266
        %p268 = pneg %p128
        %p269 = pneg %p125
        %p270 = scmp.lt.s32.totalorder %s18, 1
        %s271 = scalar_select %p270, %s18, 1
        %s272 = smul.addr %s271, 8
        %s273 = scalar_lea.vmem %s5, %s272
        %p274 = pneg %p154
        %p275 = pneg %p151
        %p276 = pneg %p180
        %p277 = pneg %p177
        %p278 = scmp.lt.s32.totalorder %s18, 1
        %s279 = scalar_select %p278, %s18, 1
        %s280 = smul.addr %s279, 2
        %s281 = smul.addr %s280, 4
        %s282 = scalar_lea.vmem %s6, %s281
        %p283 = scmp.lt.s32.totalorder %s18, 1
        %s284 = scalar_select %p283, %s18, 1
        %s285 = smul.addr %s284, 4
        %s286 = scalar_lea.vmem %s0, %s285
        %p287 = scmp.lt.s32.totalorder %s18, 1
        %s288 = scalar_select %p287, %s18, 1
        %s289 = smul.addr %s288, 8
        %s290 = scalar_lea.vmem %s4, %s289
        %p291 = scmp.lt.s32.totalorder %s18, 1
        %s292 = scalar_select %p291, %s18, 1
        %s293 = smul.addr %s292, 8
        %s294 = scalar_lea.vmem %s5, %s293
        %p295 = scmp.lt.s32.totalorder %s18, 1
        %s296 = scalar_select %p295, %s18, 1
        %s297 = smul.addr %s296, 2
        %s298 = smul.addr %s297, 4
        %s299 = scalar_lea.vmem %s6, %s298
        %v300 = vld [vmem:[%s286] sm:$0xf]
        %v301 = vunpack.c.l.bf16 %v300
        %v302 = vmul.f32 %v301, %v301
        %303 = vadd.xlane.f32.xlu0 %v302
        %v304 = vpop.xlane.xlu0 %303
        %v305 = vrcp.pop 128.0
        %v306 = vmul.f32 128.0, %v305
        %v307 = vsub.f32 1.0, %v306
        %v308 = vmul.f32 %v305, %v307
        %v309 = vadd.f32 %v305, %v308
        %vm310 = vweird.f32 %v305
        %v311 = vsel %vm310, %v305, %v309
        %v312 = vmul.f32 %v304, %v311
        %v313 = vadd.f32 %v312, 1e-06
        %v314 = vrsqrt.pop %v313
        %v315 = vmul.f32 %v314, %v313
        %v316 = vmul.f32 %v315, %v314
        %v317 = vmul.f32 0.5, %v316
        %v318 = vsub.f32 1.5, %v317
        %v319 = vmul.f32 %v314, %v318
        %vm320 = vweird.f32 %v313
        %vm321 = vweird.f32 %v314
        %vm322 = vmor %vm320, %vm321
        %v323 = vsel %vm322, %v314, %v319
        %v324 = vmul.f32 %v301, %v323
        %v325 = vld [vmem:[%s1] sm:$0x1]
        %v327 = vperm.slane %v325, 0
        %v329 = vmul.f32 %v324, %v327
        %v330 = vpack.c.bf16 %v329, %v329
        %v331 = vld [vmem:[#allocation2] sm:$0xff]
        %v332 = vld [vmem:[#allocation2 + $0x8] sm:$0xff]
        %v333 = vld [vmem:[#allocation2 + $0x10] sm:$0xff]
        %v334 = vld [vmem:[#allocation2 + $0x18] sm:$0xff]
        %v335 = vld [vmem:[#allocation2 + $0x20] sm:$0xff]
        %v336 = vld [vmem:[#allocation2 + $0x28] sm:$0xff]
        %v337 = vld [vmem:[#allocation2 + $0x30] sm:$0xff]
        %v338 = vld [vmem:[#allocation2 + $0x38] sm:$0xff]
        %v339 = vld [vmem:[#allocation2 + $0x40] sm:$0xff]
        %v340 = vld [vmem:[#allocation2 + $0x48] sm:$0xff]
        %v341 = vld [vmem:[#allocation2 + $0x50] sm:$0xff]
        %v342 = vld [vmem:[#allocation2 + $0x58] sm:$0xff]
        %v343 = vld [vmem:[#allocation2 + $0x60] sm:$0xff]
        %v344 = vld [vmem:[#allocation2 + $0x68] sm:$0xff]
        %v345 = vld [vmem:[#allocation2 + $0x70] sm:$0xff]
        %v346 = vld [vmem:[#allocation2 + $0x78] sm:$0xff]
        %v347 = vld [vmem:[%s3] sm:$0x3]
        %v349 = vperm.slane %v347, 0
        %v350 = vperm.slane %v347, 1
        %v369 = vunpack.c.l.b16 %v331
        %v370 = vunpack.c.h.b16 %v331
        %v371 = vunpack.c.l.b16 %v332
        %v372 = vunpack.c.h.b16 %v332
        %v373 = vunpack.c.l.b16 %v333
        %v374 = vunpack.c.h.b16 %v333
        %v375 = vunpack.c.l.b16 %v334
        %v376 = vunpack.c.h.b16 %v334
        %v377 = vunpack.c.l.b16 %v335
        %v378 = vunpack.c.h.b16 %v335
        %v379 = vunpack.c.l.b16 %v336
        %v380 = vunpack.c.h.b16 %v336
        %v381 = vunpack.c.l.b16 %v337
        %v382 = vunpack.c.h.b16 %v337
        %v383 = vunpack.c.l.b16 %v338
        %v384 = vunpack.c.h.b16 %v338
        %v385 = vunpack.c.l.b16 %v339
        %v386 = vunpack.c.h.b16 %v339
        %v387 = vunpack.c.l.b16 %v340
        %v388 = vunpack.c.h.b16 %v340
        %v389 = vunpack.c.l.b16 %v341
        %v390 = vunpack.c.h.b16 %v341
        %v391 = vunpack.c.l.b16 %v342
        %v392 = vunpack.c.h.b16 %v342
        %v393 = vunpack.c.l.b16 %v343
        %v394 = vunpack.c.h.b16 %v343
        %v395 = vunpack.c.l.b16 %v344
        %v396 = vunpack.c.h.b16 %v344
        %v397 = vunpack.c.l.b16 %v345
        %v398 = vunpack.c.h.b16 %v345
        %v399 = vunpack.c.l.b16 %v346
        %v400 = vunpack.c.h.b16 %v346
        %v401 = vpack.c.b16 %v371, %v369
        %v402 = vpack.c.b16 %v372, %v370
        %v403 = vpack.c.b16 %v375, %v373
        %v404 = vpack.c.b16 %v376, %v374
        %v405 = vpack.c.b16 %v379, %v377
        %v406 = vpack.c.b16 %v380, %v378
        %v407 = vpack.c.b16 %v383, %v381
        %v408 = vpack.c.b16 %v384, %v382
        %v409 = vpack.c.b16 %v387, %v385
        %v410 = vpack.c.b16 %v388, %v386
        %v411 = vpack.c.b16 %v391, %v389
        %v412 = vpack.c.b16 %v392, %v390
        %v413 = vpack.c.b16 %v395, %v393
        %v414 = vpack.c.b16 %v396, %v394
        %v415 = vpack.c.b16 %v399, %v397
        %v416 = vpack.c.b16 %v400, %v398
        %433 = vmatpush.bf16.msra.mxu0 %v415
        %434 = vmatpush.bf16.msra.mxu0 %v413
        %435 = vmatpush.bf16.msra.mxu0 %v411
        %436 = vmatpush.bf16.msra.mxu0 %v409
        %437 = vmatpush.bf16.msra.mxu0 %v407
        %438 = vmatpush.bf16.msra.mxu0 %v405
        %439 = vmatpush.bf16.msra.mxu0 %v403
        %440 = vmatpush.bf16.msra.mxu0 %v401
        %441 = vmatmul.bf16.gmra.mxu0 %v330
        %v442 = vpop.f32.mrf.mxu0
        %v443 = vadd.f32 %v349, %v442
        %v444 = vpop.f32.mrf.mxu0
        %445 = vdwg.mxu0
        %446 = vmatpush.bf16.msra.mxu0 %v416
        %447 = vmatpush.bf16.msra.mxu0 %v414
        %448 = vmatpush.bf16.msra.mxu0 %v412
        %449 = vmatpush.bf16.msra.mxu0 %v410
        %450 = vmatpush.bf16.msra.mxu0 %v408
        %451 = vmatpush.bf16.msra.mxu0 %v406
        %452 = vmatpush.bf16.msra.mxu0 %v404
        %453 = vmatpush.bf16.msra.mxu0 %v402
        %454 = vmatmul.bf16.gmra.mxu0 %v330
        %v455 = vpop.f32.mrf.mxu0
        %v456 = vadd.f32 %v350, %v455
        %v457 = vpop.f32.mrf.mxu0
        %458 = vdwg.mxu0
        %461 = vrot.lane.b32.xlu0 %v443, 112
        %v462 = vpop.permute.xlu0 %461
        %463 = vrot.lane.b32.xlu0 %v456, 112
        %v464 = vpop.permute.xlu0 %463
        %vm465 = vcmask 916480
        %v466 = vsel %vm465, %v462, %v464
        %v470 = vsel %vm465, %v464, %v462
        %471 = vrot.lane.b32.xlu0 %v456, 16
        %v472 = vpop.permute.xlu0 %471
        %474 = vrot.lane.b32.xlu0 %v443, 16
        %v475 = vpop.permute.xlu0 %474
        %vm476 = vcmask 130048
        %v477 = vsel %vm476, %v475, %v472
        %v480 = vsel %vm476, %v472, %v475
        %v481 = vlaneseq
        %v482 = vand.u32 %v481, 127
        %v483 = vadd.s32 %v482, 128
        %vm484 = vcmp.lt.s32.totalorder %v482, 0
        %v485 = vsub.s32 0, %v482
        %v486 = vsel %vm484, %v485, %v482
        %v487 = vshrl.u32 %v486, 5
        %v488 = vand.u32 %v486, 31
        %v489 = vsub.s32 0, %v488
        %v490 = vsel %vm484, %v489, %v488
        %vm491 = vcmp.lt.s32.totalorder %v483, 0
        %v492 = vsub.s32 0, %v483
        %v493 = vsel %vm491, %v492, %v483
        %v494 = vshrl.u32 %v493, 5
        %v495 = vand.u32 %v493, 31
        %v496 = vsub.s32 0, %v495
        %v497 = vsel %vm491, %v496, %v495
        %vm498 = vcmp.ne.s32.totalorder %v490, 0
        %vm499 = vcmp.ne.s32.totalorder %v497, 0
        %vm500 = vcmp.lt.s32.totalorder %v490, 0
        %vm501 = vcmp.lt.s32.totalorder %v497, 0
        %vm502 = vmand %vm500, %vm498
        %vm503 = vmand %vm501, %vm499
        %v504 = vadd.s32 %v490, 32
        %v505 = vadd.s32 %v497, 32
        %v506 = vsel %vm502, %v504, %v490
        %v507 = vsel %vm503, %v505, %v497
        %vm508 = vcmp.lt.s32.totalorder %v506, 16
        %vm509 = vcmp.lt.s32.totalorder %v507, 16
        %v510 = vsub.f32 0.0, %v466
        %v511 = vsub.f32 0.0, %v470
        %v512 = vsel %vm508, %v510, %v480
        %v513 = vsel %vm509, %v511, %v477
        %v514 = vld [vmem:[%s290] sm:$0xff]
        %516 = vrot.lane.b32.xlu0 %v514, 32
        %v517 = vpop.permute.xlu0 %516
        %519 = vrot.lane.b32.xlu0 %v514, 64
        %v520 = vpop.permute.xlu0 %519
        %522 = vrot.lane.b32.xlu0 %v514, 96
        %v523 = vpop.permute.xlu0 %522
        %vm525 = vcmask 261120
        %v526 = vsel %vm525, %v514, %v517
        %vm527 = vcmask 523264
        %v528 = vsel %vm527, %v526, %v520
        %vm529 = vcmask 785408
        %v530 = vsel %vm529, %v528, %v523
        %v531 = vld [vmem:[%s294] sm:$0xff]
        %533 = vrot.lane.b32.xlu0 %v531, 32
        %v534 = vpop.permute.xlu0 %533
        %536 = vrot.lane.b32.xlu0 %v531, 64
        %v537 = vpop.permute.xlu0 %536
        %539 = vrot.lane.b32.xlu0 %v531, 96
        %v540 = vpop.permute.xlu0 %539
        %v542 = vsel %vm525, %v531, %v534
        %v543 = vsel %vm527, %v542, %v537
        %v544 = vsel %vm529, %v543, %v540
        %v545 = vmul.f32 %v443, %v530
        %v546 = vmul.f32 %v456, %v530
        %v547 = vmul.f32 %v512, %v544
        %v548 = vmul.f32 %v513, %v544
        %v549 = vadd.f32 %v545, %v547
        %v550 = vadd.f32 %v546, %v548
        %vm551 = vcmp.lt.s32.totalorder %v482, 192
        %vm552 = vcmp.lt.s32.totalorder %v483, 192
        %v553 = vsel %vm551, %v549, %v443
        %v554 = vsel %vm552, %v550, %v456
        %v555 = vpack.c.bf16 %v554, %v553
        %556 = vst [vmem:[%s299] sm:$0xff] %v555
        %p557 = scmp.lt.s32.totalorder %s18, 1
        %s558 = scalar_select %p557, %s18, 1
        %s559 = smul.addr %s558, 2
        %s560 = smul.addr %s559, 4
        %s561 = scalar_lea.vmem %s6, %s560
        // Predicated region
        $region49: #{qwen2_forward.7} parent=43 // pred_check
          %p562 = pneg %p177
        $region50: #{qwen2_forward.7} parent=43 // pred_check_branch
          %564 = sbr.rel (%p562) target = $region52
        $region51: #{qwen2_forward.7} parent=43 // pred_region
          _
        $region52: #{qwen2_forward.7} parent=43 // pred_fallthru
          _
      $region44: #{qwen2_forward.7} parent=5 // pred_fallthru
        _
      %p565 = scmp.le.s32.totalorder 2, %s13
      // Predicated region
      $region53: #{qwen2_forward.7} parent=5 // pred_check
        %p566 = pneg %p565
      $region54: #{qwen2_forward.7} parent=5 // pred_check_branch
        %568 = sbr.rel (%p566) target = $region56
      $region55: #{qwen2_forward.7} parent=5 // pred_region
        %s569 = ssub.s32 %s13, 2
        // Predicated region
        $region57: #{qwen2_forward.7} parent=55 // pred_check
          %p570 = pneg %p183
        $region58: #{qwen2_forward.7} parent=55 // pred_check_branch
          %572 = sbr.rel (%p570) target = $region60
        $region59: #{qwen2_forward.7} parent=55 // pred_region
          %p573 = scmp.lt.s32.totalorder %s19, 1
          %s574 = scalar_select %p573, %s19, 1
          %s575 = smul.addr %s574, 2
          %s576 = smul.addr %s575, 4
          %s577 = scalar_lea.vmem %s6, %s576
        $region60: #{qwen2_forward.7} parent=55 // pred_fallthru
          _
      $region56: #{qwen2_forward.7} parent=5 // pred_fallthru
        _
    $region6: #{qwen2_forward.7} parent=1 // loop_footer
      %s17 = sadd.s32 1, %s13
    $region7: #{qwen2_forward.7} parent=1 // loop_footer_branch
      %12 = sbr.rel target = $region3
    $region8: #{qwen2_forward.7} parent=1 // loop_exit
      _
    %578 = vsyncpa [#allocation3], 1
    %s579 = scalar_lea.sflag [#allocation3], 1
    %580 = vsyncpa %s579, 1

// kernel: qwen2_forward.9
$region0: #{qwen2_forward.9}
  #allocation0 [shape = 'u32[]', space=smem, size = 0x4, offset = 0x4, fixed_abs, tag = 'smem constant byte address 0x4 - core index']
  #allocation1 [shape = 'u32[72,128]{1,0:T(1,128)}', space=vmem, size = 0x9000, scoped, tag = 'internal scratch']
  #allocation2 [shape = 'f32[8,128]{1,0:T(8,128)}', space=vmem, size = 0x1000, scoped, tag = 'scratch operand']
  %s0 = inlined_call_operand.vmem [shape: bf16[2,8,128], index: 0, kind: input, shape index: {}]
  %s1 = inlined_call_operand.vmem [shape: f32[1,128], index: 1, kind: input, shape index: {}]
  %s2 = inlined_call_operand.hbm [shape: bf16[128,256], index: 2, kind: input, shape index: {}]
  %s3 = inlined_call_operand.hbm [shape: bf16[128,256], index: 3, kind: input, shape index: {}]
  %s4 = inlined_call_operand.vmem [shape: bf16[256,128], index: 4, kind: input, shape index: {}]
  %s5 = inlined_call_operand.vmem [shape: bf16[2,8,128], index: 5, kind: output, shape index: {}]
  %s6 = sld [smem:[#allocation0]]
  $region69: #{qwen2_forward.9} parent=0
    _
  %s8 = ssub.s32 1, %s6
  %s9 = scalar_select 0, %s8, %s6
  $region1: #{qwen2_forward.9} parent=0
    #allocation3 [shape = 'u8[65536]{0}', space=vmem, size = 0x10000, scoped, tag = 'input window, operand 2']
    #allocation4 [shape = 's32[2]{0}', space=sflag, size = 0x8, scoped, tag = 'scoped memory for qwen2_forward.9']
    #allocation5 [shape = 'u8[65536]{0}', space=vmem, size = 0x10000, scoped, tag = 'input window, operand 3']
    #allocation6 [shape = 's32[2]{0}', space=sflag, size = 0x8, scoped, tag = 'scoped memory for qwen2_forward.9']
    %10 = vsyncpa [#allocation4], 0
    %s11 = scalar_lea.sflag [#allocation4], 1
    %12 = vsyncpa %s11, 0
    %13 = vsyncpa [#allocation6], 0
    %s14 = scalar_lea.sflag [#allocation6], 1
    %15 = vsyncpa %s14, 0
    loop: start=0, step=1, limit=6
    $region2: #{qwen2_forward.9} parent=1 // loop_pre_header
      _
    $region3: #{qwen2_forward.9} parent=1 // loop_header
      %s17 = sphi 0, %s21
      %p18 = scmp.ge.s32.totalorder %s17, 6
      %s24 = sphi 0, %s36
      %s25 = sphi 0, %s32
      %s26 = sphi 0, %s24
      %s27 = sphi 0, %s25
      %s28 = sphi 0, %s26
      %s29 = sphi 0, %s27
      %s39 = sphi 0, %s41
      %s42 = sphi 0, %s39
      %s43 = sphi 0, %s42
      %s59 = sphi 0, %s43
      %s63 = sphi 0, %s63
      %s65 = sphi 0, %s63
      %s66 = sphi 0, %s65
      %s80 = sphi 0, %s66
      %s86 = sphi 0, %s88
      %s89 = sphi 0, %s86
      %s90 = sphi 0, %s89
      %s106 = sphi 0, %s90
      %s112 = sphi 0, %s114
      %s115 = sphi 0, %s112
      %s116 = sphi 0, %s115
      %s132 = sphi 0, %s116
      %s138 = sphi 0, %s140
      %s141 = sphi 0, %s138
      %s142 = sphi 0, %s141
      %s158 = sphi 0, %s142
      %s164 = sphi 0, %s166
      %s167 = sphi 0, %s164
      %s168 = sphi 0, %s167
      %s184 = sphi 0, %s168
    $region4: #{qwen2_forward.9} parent=1 // loop_header_branch
      %20 = sbr.rel (%p18) target = $region8
    $region5: #{qwen2_forward.9} parent=1 // loop_body
      %s22 = ssub.s32 %s17, 1
      %s23 = ssub.s32 %s17, 2
      %s30 = sadd.s32 1, %s25
      %p31 = scmp.ge.s32.totalorder %s30, 2
      %s32 = scalar_select %p31, 0, %s30
      %s33 = sadd.s32 1, %s24
      %s34 = scalar_select %p31, %s33, %s24
      %p35 = scmp.ge.s32.totalorder %s34, 2
      %s36 = scalar_select %p35, 0, %s34
      %s37 = ssub.s32 %s24, %s36
      %p38 = scmp.eq.s32.totalorder %s37, 0
      %s40 = sadd.s32 %s39, 1
      %s41 = scalar_select %p38, %s39, %s40
      %p44 = pneg %p38
      %p45 = scmp.eq.s32.totalorder %s17, 3
      %p46 = por %p44, %p45
      %p47 = scmp.ne.s32.totalorder %s39, %s42
      %p48 = scmp.eq.s32.totalorder %s17, 0
      %p49 = por %p47, %p48
      %p50 = scmp.ne.s32.totalorder %s39, %s42
      %p51 = scmp.eq.s32.totalorder %s22, 3
      %p52 = por %p50, %p51
      %p53 = scmp.ne.s32.totalorder %s42, %s43
      %p54 = scmp.eq.s32.totalorder %s22, 0
      %p55 = por %p53, %p54
      %p56 = scmp.ne.s32.totalorder %s42, %s43
      %p57 = scmp.eq.s32.totalorder %s23, 3
      %p58 = por %p56, %p57
      %p60 = scmp.ne.s32.totalorder %s43, %s59
      %p61 = scmp.eq.s32.totalorder %s23, 0
      %p62 = por %p60, %p61
      %s64 = sadd.s32 %s63, 1
      %p67 = scmp.eq.s32.totalorder %s17, 3
      %p68 = scmp.ne.s32.totalorder %s63, %s65
      %p69 = scmp.eq.s32.totalorder %s17, 0
      %p70 = por %p68, %p69
      %p71 = scmp.ne.s32.totalorder %s63, %s65
      %p72 = scmp.eq.s32.totalorder %s22, 3
      %p73 = por %p71, %p72
      %p74 = scmp.ne.s32.totalorder %s65, %s66
      %p75 = scmp.eq.s32.totalorder %s22, 0
      %p76 = por %p74, %p75
      %p77 = scmp.ne.s32.totalorder %s65, %s66
      %p78 = scmp.eq.s32.totalorder %s23, 3
      %p79 = por %p77, %p78
      %p81 = scmp.ne.s32.totalorder %s66, %s80
      %p82 = scmp.eq.s32.totalorder %s23, 0
      %p83 = por %p81, %p82
      %s84 = ssub.s32 %s25, %s32
      %p85 = scmp.eq.s32.totalorder %s84, 0
      %s87 = sadd.s32 %s86, 1
      %s88 = scalar_select %p85, %s86, %s87
      %p91 = pneg %p85
      %p92 = scmp.eq.s32.totalorder %s17, 3
      %p93 = por %p91, %p92
      %p94 = scmp.ne.s32.totalorder %s86, %s89
      %p95 = scmp.eq.s32.totalorder %s17, 0
      %p96 = por %p94, %p95
      %p97 = scmp.ne.s32.totalorder %s86, %s89
      %p98 = scmp.eq.s32.totalorder %s22, 3
      %p99 = por %p97, %p98
      %p100 = scmp.ne.s32.totalorder %s89, %s90
      %p101 = scmp.eq.s32.totalorder %s22, 0
      %p102 = por %p100, %p101
      %p103 = scmp.ne.s32.totalorder %s89, %s90
      %p104 = scmp.eq.s32.totalorder %s23, 3
      %p105 = por %p103, %p104
      %p107 = scmp.ne.s32.totalorder %s90, %s106
      %p108 = scmp.eq.s32.totalorder %s23, 0
      %p109 = por %p107, %p108
      %s110 = ssub.s32 %s25, %s32
      %p111 = scmp.eq.s32.totalorder %s110, 0
      %s113 = sadd.s32 %s112, 1
      %s114 = scalar_select %p111, %s112, %s113
      %p117 = pneg %p111
      %p118 = scmp.eq.s32.totalorder %s17, 3
      %p119 = por %p117, %p118
      %p120 = scmp.ne.s32.totalorder %s112, %s115
      %p121 = scmp.eq.s32.totalorder %s17, 0
      %p122 = por %p120, %p121
      %p123 = scmp.ne.s32.totalorder %s112, %s115
      %p124 = scmp.eq.s32.totalorder %s22, 3
      %p125 = por %p123, %p124
      %p126 = scmp.ne.s32.totalorder %s115, %s116
      %p127 = scmp.eq.s32.totalorder %s22, 0
      %p128 = por %p126, %p127
      %p129 = scmp.ne.s32.totalorder %s115, %s116
      %p130 = scmp.eq.s32.totalorder %s23, 3
      %p131 = por %p129, %p130
      %p133 = scmp.ne.s32.totalorder %s116, %s132
      %p134 = scmp.eq.s32.totalorder %s23, 0
      %p135 = por %p133, %p134
      %s136 = ssub.s32 %s25, %s32
      %p137 = scmp.eq.s32.totalorder %s136, 0
      %s139 = sadd.s32 %s138, 1
      %s140 = scalar_select %p137, %s138, %s139
      %p143 = pneg %p137
      %p144 = scmp.eq.s32.totalorder %s17, 3
      %p145 = por %p143, %p144
      %p146 = scmp.ne.s32.totalorder %s138, %s141
      %p147 = scmp.eq.s32.totalorder %s17, 0
      %p148 = por %p146, %p147
      %p149 = scmp.ne.s32.totalorder %s138, %s141
      %p150 = scmp.eq.s32.totalorder %s22, 3
      %p151 = por %p149, %p150
      %p152 = scmp.ne.s32.totalorder %s141, %s142
      %p153 = scmp.eq.s32.totalorder %s22, 0
      %p154 = por %p152, %p153
      %p155 = scmp.ne.s32.totalorder %s141, %s142
      %p156 = scmp.eq.s32.totalorder %s23, 3
      %p157 = por %p155, %p156
      %p159 = scmp.ne.s32.totalorder %s142, %s158
      %p160 = scmp.eq.s32.totalorder %s23, 0
      %p161 = por %p159, %p160
      %s162 = ssub.s32 %s24, %s36
      %p163 = scmp.eq.s32.totalorder %s162, 0
      %s165 = sadd.s32 %s164, 1
      %s166 = scalar_select %p163, %s164, %s165
      %p169 = pneg %p163
      %p170 = scmp.eq.s32.totalorder %s17, 3
      %p171 = por %p169, %p170
      %p172 = scmp.ne.s32.totalorder %s164, %s167
      %p173 = scmp.eq.s32.totalorder %s17, 0
      %p174 = por %p172, %p173
      %p175 = scmp.ne.s32.totalorder %s164, %s167
      %p176 = scmp.eq.s32.totalorder %s22, 3
      %p177 = por %p175, %p176
      %p178 = scmp.ne.s32.totalorder %s167, %s168
      %p179 = scmp.eq.s32.totalorder %s22, 0
      %p180 = por %p178, %p179
      %p181 = scmp.ne.s32.totalorder %s167, %s168
      %p182 = scmp.eq.s32.totalorder %s23, 3
      %p183 = por %p181, %p182
      %p185 = scmp.ne.s32.totalorder %s168, %s184
      %p186 = scmp.eq.s32.totalorder %s23, 0
      %p187 = por %p185, %p186
      %p188 = scmp.le.s32.totalorder 1, %s17
      %p189 = scmp.lt.s32.totalorder %s17, 5
      %p190 = pnand %p188, %p189
      %p191 = pneg %p190
      // Predicated region
      $region9: #{qwen2_forward.9} parent=5 // pred_check
        _
      $region10: #{qwen2_forward.9} parent=5 // pred_check_branch
        %193 = sbr.rel (%p190) target = $region12
      $region11: #{qwen2_forward.9} parent=5 // pred_region
        %s194 = ssub.s32 %s17, 1
        // Predicated region
        $region13: #{qwen2_forward.9} parent=11 // pred_check
          %p195 = pneg %p76
        $region14: #{qwen2_forward.9} parent=11 // pred_check_branch
          %197 = sbr.rel (%p195) target = $region16
        $region15: #{qwen2_forward.9} parent=11 // pred_region
          _
        $region16: #{qwen2_forward.9} parent=11 // pred_fallthru
          _
      $region12: #{qwen2_forward.9} parent=5 // pred_fallthru
        _
      %p198 = scmp.lt.s32.totalorder %s17, 4
      // Predicated region
      $region17: #{qwen2_forward.9} parent=5 // pred_check
        %p199 = pneg %p198
      $region18: #{qwen2_forward.9} parent=5 // pred_check_branch
        %201 = sbr.rel (%p199) target = $region20
      $region19: #{qwen2_forward.9} parent=5 // pred_region
        // Predicated region
        $region21: #{qwen2_forward.9} parent=19 // pred_check
          %p202 = pneg %p49
        $region22: #{qwen2_forward.9} parent=19 // pred_check_branch
          %204 = sbr.rel (%p202) target = $region24
        $region23: #{qwen2_forward.9} parent=19 // pred_region
          %p205 = scmp.lt.s32.totalorder %s24, 1
          %s206 = scalar_select %p205, %s24, 1
          %s207 = smul.addr %s206, 4
          %s208 = scalar_lea.vmem %s0, %s207
        $region24: #{qwen2_forward.9} parent=19 // pred_fallthru
          _
        // Predicated region
        $region25: #{qwen2_forward.9} parent=19 // pred_check
          %p209 = pneg %p96
        $region26: #{qwen2_forward.9} parent=19 // pred_check_branch
          %211 = sbr.rel (%p209) target = $region28
        $region27: #{qwen2_forward.9} parent=19 // pred_region
          %s212 = sand.u32 %s86, 1
          %s213 = scalar_lea.sflag [#allocation4], %s212
          %s214 = sand.u32 %s86, 1
          %s215 = smul.addr %s214, 64
          %s216 = scalar_lea.vmem [#allocation3], %s215
          %218 = vsyncadd %s213, 0
          %s219 = smul.addr %s25, 4
          %s220 = scalar_lea.hbm %s2, %s219
          %s221 = sshll.u32 %s220, 4
          %s222 = int_to_ptr.hbm [resolvable:$true] %s221
          %s223 = sshll.u32 %s216, 4
          %s224 = int_to_ptr.vmem [resolvable:$true] %s223
          %229 = dma.hbm_to_vmem [thread:$0]  %s222, 1024, %s224, %s213, 128, 64, 4
        $region28: #{qwen2_forward.9} parent=19 // pred_fallthru
          _
        // Predicated region
        $region29: #{qwen2_forward.9} parent=19 // pred_check
          %p230 = pneg %p122
        $region30: #{qwen2_forward.9} parent=19 // pred_check_branch
          %232 = sbr.rel (%p230) target = $region32
        $region31: #{qwen2_forward.9} parent=19 // pred_region
          %s233 = sand.u32 %s112, 1
          %s234 = scalar_lea.sflag [#allocation6], %s233
          %s235 = sand.u32 %s112, 1
          %s236 = smul.addr %s235, 64
          %s237 = scalar_lea.vmem [#allocation5], %s236
          %239 = vsyncadd %s234, 0
          %s240 = smul.addr %s25, 4
          %s241 = scalar_lea.hbm %s3, %s240
          %s242 = sshll.u32 %s241, 4
          %s243 = int_to_ptr.hbm [resolvable:$true] %s242
          %s244 = sshll.u32 %s237, 4
          %s245 = int_to_ptr.vmem [resolvable:$true] %s244
          %250 = dma.hbm_to_vmem [thread:$0]  %s243, 1024, %s245, %s234, 128, 64, 4
        $region32: #{qwen2_forward.9} parent=19 // pred_fallthru
          _
        // Predicated region
        $region33: #{qwen2_forward.9} parent=19 // pred_check
          %p251 = pneg %p148
        $region34: #{qwen2_forward.9} parent=19 // pred_check_branch
          %253 = sbr.rel (%p251) target = $region36
        $region35: #{qwen2_forward.9} parent=19 // pred_region
          %s254 = smul.u32 16, %s25
          %p255 = scmp.lt.s32.totalorder %s254, 31
          %s256 = scalar_select %p255, %s254, 31
          %s257 = smul.addr %s256, 4
          %s258 = scalar_lea.vmem %s4, %s257
          %s259 = smul.u32 16, %s25
        $region36: #{qwen2_forward.9} parent=19 // pred_fallthru
          _
      $region20: #{qwen2_forward.9} parent=5 // pred_fallthru
        _
      %p260 = scmp.le.s32.totalorder 1, %s17
      %p261 = scmp.lt.s32.totalorder %s17, 5
      %p262 = pnand %p260, %p261
      %p263 = pneg %p262
      // Predicated region
      $region37: #{qwen2_forward.9} parent=5 // pred_check
        _
      $region38: #{qwen2_forward.9} parent=5 // pred_check_branch
        %265 = sbr.rel (%p262) target = $region40
      $region39: #{qwen2_forward.9} parent=5 // pred_region
        %s266 = ssub.s32 %s17, 1
        %s267 = sand.u32 %s89, 1
        %s268 = scalar_lea.sflag [#allocation4], %s267
        %s269 = sand.u32 %s89, 1
        %s270 = smul.addr %s269, 64
        %s271 = scalar_lea.vmem [#allocation3], %s270
        // Predicated region
        $region41: #{qwen2_forward.9} parent=39 // pred_check
          %p272 = pneg %p102
        $region42: #{qwen2_forward.9} parent=39 // pred_check_branch
          %274 = sbr.rel (%p272) target = $region44
        $region43: #{qwen2_forward.9} parent=39 // pred_region
          %276 = dma.done %s268, 1024
        $region44: #{qwen2_forward.9} parent=39 // pred_fallthru
          _
        %s277 = sand.u32 %s115, 1
        %s278 = scalar_lea.sflag [#allocation6], %s277
        %s279 = sand.u32 %s115, 1
        %s280 = smul.addr %s279, 64
        %s281 = scalar_lea.vmem [#allocation5], %s280
        // Predicated region
        $region45: #{qwen2_forward.9} parent=39 // pred_check
          %p282 = pneg %p128
        $region46: #{qwen2_forward.9} parent=39 // pred_check_branch
          %284 = sbr.rel (%p282) target = $region48
        $region47: #{qwen2_forward.9} parent=39 // pred_region
          %286 = dma.done %s278, 1024
        $region48: #{qwen2_forward.9} parent=39 // pred_fallthru
          _
        %p287 = scmp.lt.s32.totalorder %s26, 1
        %s288 = scalar_select %p287, %s26, 1
        %s289 = smul.addr %s288, 4
        %s290 = scalar_lea.vmem %s0, %s289
        %p291 = pneg %p55
        %p292 = pneg %p52
        %p293 = pneg %p76
        %p294 = pneg %p73
        %s295 = sand.u32 %s89, 1
        %s296 = scalar_lea.sflag [#allocation4], %s295
        %s297 = sand.u32 %s89, 1
        %s298 = smul.addr %s297, 64
        %s299 = scalar_lea.vmem [#allocation3], %s298
        %p300 = pneg %p102
        %p301 = pneg %p99
        %s302 = sand.u32 %s115, 1
        %s303 = scalar_lea.sflag [#allocation6], %s302
        %s304 = sand.u32 %s115, 1
        %s305 = smul.addr %s304, 64
        %s306 = scalar_lea.vmem [#allocation5], %s305
        %p307 = pneg %p128
        %p308 = pneg %p125
        %s309 = smul.u32 16, %s27
        %p310 = scmp.lt.s32.totalorder %s309, 31
        %s311 = scalar_select %p310, %s309, 31
        %s312 = smul.addr %s311, 4
        %s313 = scalar_lea.vmem %s4, %s312
        %p314 = pneg %p154
        %p315 = pneg %p151
        %p316 = pneg %p180
        %p317 = pneg %p177
        %p318 = scmp.lt.s32.totalorder %s26, 1
        %s319 = scalar_select %p318, %s26, 1
        %s320 = smul.addr %s319, 4
        %s321 = scalar_lea.vmem %s5, %s320
        %p322 = scmp.lt.s32.totalorder %s26, 1
        %s323 = scalar_select %p322, %s26, 1
        %s324 = smul.addr %s323, 4
        %s325 = scalar_lea.vmem %s0, %s324
        %s326 = smul.u32 16, %s27
        %p327 = scmp.lt.s32.totalorder %s326, 31
        %s328 = scalar_select %p327, %s326, 31
        %s329 = smul.addr %s328, 4
        %s330 = scalar_lea.vmem %s4, %s329
        %s331 = smul.u32 16, %s27
        %p332 = scmp.lt.s32.totalorder %s26, 1
        %s333 = scalar_select %p332, %s26, 1
        %s334 = smul.addr %s333, 4
        %s335 = scalar_lea.vmem %s5, %s334
        %v336 = vld [vmem:[%s325] sm:$0xf]
        %v337 = vunpack.c.l.bf16 %v336
        %v338 = vmul.f32 %v337, %v337
        %339 = vadd.xlane.f32.xlu0 %v338
        %v340 = vpop.xlane.xlu0 %339
        %v341 = vrcp.pop 128.0
        %v342 = vmul.f32 128.0, %v341
        %v343 = vsub.f32 1.0, %v342
        %v344 = vmul.f32 %v341, %v343
        %v345 = vadd.f32 %v341, %v344
        %vm346 = vweird.f32 %v341
        %v347 = vsel %vm346, %v341, %v345
        %v348 = vmul.f32 %v340, %v347
        %v349 = vadd.f32 %v348, 1e-06
        %v350 = vrsqrt.pop %v349
        %v351 = vmul.f32 %v350, %v349
        %v352 = vmul.f32 %v351, %v350
        %v353 = vmul.f32 0.5, %v352
        %v354 = vsub.f32 1.5, %v353
        %v355 = vmul.f32 %v350, %v354
        %vm356 = vweird.f32 %v349
        %vm357 = vweird.f32 %v350
        %vm358 = vmor %vm356, %vm357
        %v359 = vsel %vm358, %v350, %v355
        %v360 = vmul.f32 %v337, %v359
        %v361 = vld [vmem:[%s1] sm:$0x1]
        %v363 = vperm.slane %v361, 0
        %v365 = vmul.f32 %v360, %v363
        %v366 = vpack.c.bf16 %v365, %v365
        %v367 = vld [vmem:[%s271] sm:$0xf]
        %v368 = vld [vmem:[%s271 + $0x4] sm:$0xf]
        %v369 = vld [vmem:[%s271 + $0x8] sm:$0xf]
        %v370 = vld [vmem:[%s271 + $0xc] sm:$0xf]
        %v371 = vld [vmem:[%s271 + $0x10] sm:$0xf]
        %v372 = vld [vmem:[%s271 + $0x14] sm:$0xf]
        %v373 = vld [vmem:[%s271 + $0x18] sm:$0xf]
        %v374 = vld [vmem:[%s271 + $0x1c] sm:$0xf]
        %v375 = vld [vmem:[%s271 + $0x20] sm:$0xf]
        %v376 = vld [vmem:[%s271 + $0x24] sm:$0xf]
        %v377 = vld [vmem:[%s271 + $0x28] sm:$0xf]
        %v378 = vld [vmem:[%s271 + $0x2c] sm:$0xf]
        %v379 = vld [vmem:[%s271 + $0x30] sm:$0xf]
        %v380 = vld [vmem:[%s271 + $0x34] sm:$0xf]
        %v381 = vld [vmem:[%s271 + $0x38] sm:$0xf]
        %v382 = vld [vmem:[%s271 + $0x3c] sm:$0xf]
        %v399 = vunpack.c.l.b16 %v367
        %v400 = vunpack.c.l.b16 %v368
        %v401 = vunpack.c.l.b16 %v369
        %v402 = vunpack.c.l.b16 %v370
        %v403 = vunpack.c.l.b16 %v371
        %v404 = vunpack.c.l.b16 %v372
        %v405 = vunpack.c.l.b16 %v373
        %v406 = vunpack.c.l.b16 %v374
        %v407 = vunpack.c.l.b16 %v375
        %v408 = vunpack.c.l.b16 %v376
        %v409 = vunpack.c.l.b16 %v377
        %v410 = vunpack.c.l.b16 %v378
        %v411 = vunpack.c.l.b16 %v379
        %v412 = vunpack.c.l.b16 %v380
        %v413 = vunpack.c.l.b16 %v381
        %v414 = vunpack.c.l.b16 %v382
        %v415 = vpack.c.b16 %v400, %v399
        %v416 = vpack.c.b16 %v402, %v401
        %v417 = vpack.c.b16 %v404, %v403
        %v418 = vpack.c.b16 %v406, %v405
        %v419 = vpack.c.b16 %v408, %v407
        %v420 = vpack.c.b16 %v410, %v409
        %v421 = vpack.c.b16 %v412, %v411
        %v422 = vpack.c.b16 %v414, %v413
        %431 = vmatpush.bf16.msra.mxu0 %v422
        %432 = vmatpush.bf16.msra.mxu0 %v421
        %433 = vmatpush.bf16.msra.mxu0 %v420
        %434 = vmatpush.bf16.msra.mxu0 %v419
        %435 = vmatpush.bf16.msra.mxu0 %v418
        %436 = vmatpush.bf16.msra.mxu0 %v417
        %437 = vmatpush.bf16.msra.mxu0 %v416
        %438 = vmatpush.bf16.msra.mxu0 %v415
        %439 = vmatmul.bf16.gmra.mxu0 %v366
        %v440 = vpop.f32.mrf.mxu0
        %v441 = vadd.f32 0.0, %v440
        %v442 = vpop.f32.mrf.mxu0
        %443 = vdwg.mxu0
        %v444 = vld [vmem:[%s281] sm:$0xf]
        %v445 = vld [vmem:[%s281 + $0x4] sm:$0xf]
        %v446 = vld [vmem:[%s281 + $0x8] sm:$0xf]
        %v447 = vld [vmem:[%s281 + $0xc] sm:$0xf]
        %v448 = vld [vmem:[%s281 + $0x10] sm:$0xf]
        %v449 = vld [vmem:[%s281 + $0x14] sm:$0xf]
        %v450 = vld [vmem:[%s281 + $0x18] sm:$0xf]
        %v451 = vld [vmem:[%s281 + $0x1c] sm:$0xf]
        %v452 = vld [vmem:[%s281 + $0x20] sm:$0xf]
        %v453 = vld [vmem:[%s281 + $0x24] sm:$0xf]
        %v454 = vld [vmem:[%s281 + $0x28] sm:$0xf]
        %v455 = vld [vmem:[%s281 + $0x2c] sm:$0xf]
        %v456 = vld [vmem:[%s281 + $0x30] sm:$0xf]
        %v457 = vld [vmem:[%s281 + $0x34] sm:$0xf]
        %v458 = vld [vmem:[%s281 + $0x38] sm:$0xf]
        %v459 = vld [vmem:[%s281 + $0x3c] sm:$0xf]
        %v476 = vunpack.c.l.b16 %v444
        %v477 = vunpack.c.l.b16 %v445
        %v478 = vunpack.c.l.b16 %v446
        %v479 = vunpack.c.l.b16 %v447
        %v480 = vunpack.c.l.b16 %v448
        %v481 = vunpack.c.l.b16 %v449
        %v482 = vunpack.c.l.b16 %v450
        %v483 = vunpack.c.l.b16 %v451
        %v484 = vunpack.c.l.b16 %v452
        %v485 = vunpack.c.l.b16 %v453
        %v486 = vunpack.c.l.b16 %v454
        %v487 = vunpack.c.l.b16 %v455
        %v488 = vunpack.c.l.b16 %v456
        %v489 = vunpack.c.l.b16 %v457
        %v490 = vunpack.c.l.b16 %v458
        %v491 = vunpack.c.l.b16 %v459
        %v492 = vpack.c.b16 %v477, %v476
        %v493 = vpack.c.b16 %v479, %v478
        %v494 = vpack.c.b16 %v481, %v480
        %v495 = vpack.c.b16 %v483, %v482
        %v496 = vpack.c.b16 %v485, %v484
        %v497 = vpack.c.b16 %v487, %v486
        %v498 = vpack.c.b16 %v489, %v488
        %v499 = vpack.c.b16 %v491, %v490
        %508 = vmatpush.bf16.msra.mxu0 %v499
        %509 = vmatpush.bf16.msra.mxu0 %v498
        %510 = vmatpush.bf16.msra.mxu0 %v497
        %511 = vmatpush.bf16.msra.mxu0 %v496
        %512 = vmatpush.bf16.msra.mxu0 %v495
        %513 = vmatpush.bf16.msra.mxu0 %v494
        %514 = vmatpush.bf16.msra.mxu0 %v493
        %515 = vmatpush.bf16.msra.mxu0 %v492
        %516 = vmatmul.bf16.gmra.mxu0 %v366
        %v517 = vpop.f32.mrf.mxu0
        %v518 = vadd.f32 0.0, %v517
        %v519 = vpop.f32.mrf.mxu0
        %520 = vdwg.mxu0
        %v521 = vxor.u32 %v441, 2147483648
        %v522 = vmul.f32 %v521, 1.442695
        %v523 = vpow.pop %v522
        %v524 = vadd.f32 %v523, 1.0
        %v525 = vrcp.pop %v524
        %v526 = vmul.f32 %v524, %v525
        %v527 = vsub.f32 1.0, %v526
        %v528 = vmul.f32 %v525, %v527
        %v529 = vadd.f32 %v525, %v528
        %vm530 = vweird.f32 %v524
        %vm531 = vweird.f32 %v525
        %vm532 = vmor %vm530, %vm531
        %v533 = vsel %vm532, %v525, %v529
        %v534 = vand.u32 2147483647, %v524
        %vm535 = vcmp.eq.f32.partialorder %v534, 8.507059e+37
        %v536 = vand.u32 %v524, 2147483648
        %v537 = vor.u32 1.1754944e-38, %v536
        %v538 = vsel %vm535, %v537, %v533
        %v539 = vmul.f32 1.0, %v538
        %v540 = vmul.f32 %v441, %v539
        %v541 = vmul.f32 %v540, %v518
        %v542 = vpack.c.bf16 %v541, %v541
        %p543 = scmp.eq.s32.totalorder %s27, 0
        // Predicated region
        $region49: #{qwen2_forward.9} parent=39 // pred_check
          %p544 = pneg %p543
        $region50: #{qwen2_forward.9} parent=39 // pred_check_branch
          %546 = sbr.rel (%p544) target = $region52
        $region51: #{qwen2_forward.9} parent=39 // pred_region
          %547 = vst [vmem:[#allocation2] sm:$0xff] 0.0
        $region52: #{qwen2_forward.9} parent=39 // pred_fallthru
          _
        %v548 = vld [vmem:[#allocation2] sm:$0xff]
        %v549 = vld [vmem:[%s330] sm:$0xf]
        %v550 = vld [vmem:[%s330 + $0x4] sm:$0xf]
        %v551 = vld [vmem:[%s330 + $0x8] sm:$0xf]
        %v552 = vld [vmem:[%s330 + $0xc] sm:$0xf]
        %v553 = vld [vmem:[%s330 + $0x10] sm:$0xf]
        %v554 = vld [vmem:[%s330 + $0x14] sm:$0xf]
        %v555 = vld [vmem:[%s330 + $0x18] sm:$0xf]
        %v556 = vld [vmem:[%s330 + $0x1c] sm:$0xf]
        %v557 = vld [vmem:[%s330 + $0x20] sm:$0xf]
        %v558 = vld [vmem:[%s330 + $0x24] sm:$0xf]
        %v559 = vld [vmem:[%s330 + $0x28] sm:$0xf]
        %v560 = vld [vmem:[%s330 + $0x2c] sm:$0xf]
        %v561 = vld [vmem:[%s330 + $0x30] sm:$0xf]
        %v562 = vld [vmem:[%s330 + $0x34] sm:$0xf]
        %v563 = vld [vmem:[%s330 + $0x38] sm:$0xf]
        %v564 = vld [vmem:[%s330 + $0x3c] sm:$0xf]
        %v581 = vunpack.c.l.b16 %v549
        %v582 = vunpack.c.l.b16 %v550
        %v583 = vunpack.c.l.b16 %v551
        %v584 = vunpack.c.l.b16 %v552
        %v585 = vunpack.c.l.b16 %v553
        %v586 = vunpack.c.l.b16 %v554
        %v587 = vunpack.c.l.b16 %v555
        %v588 = vunpack.c.l.b16 %v556
        %v589 = vunpack.c.l.b16 %v557
        %v590 = vunpack.c.l.b16 %v558
        %v591 = vunpack.c.l.b16 %v559
        %v592 = vunpack.c.l.b16 %v560
        %v593 = vunpack.c.l.b16 %v561
        %v594 = vunpack.c.l.b16 %v562
        %v595 = vunpack.c.l.b16 %v563
        %v596 = vunpack.c.l.b16 %v564
        %v597 = vpack.c.b16 %v582, %v581
        %v598 = vpack.c.b16 %v584, %v583
        %v599 = vpack.c.b16 %v586, %v585
        %v600 = vpack.c.b16 %v588, %v587
        %v601 = vpack.c.b16 %v590, %v589
        %v602 = vpack.c.b16 %v592, %v591
        %v603 = vpack.c.b16 %v594, %v593
        %v604 = vpack.c.b16 %v596, %v595
        %613 = vmatpush.bf16.msra.mxu0 %v604
        %614 = vmatpush.bf16.msra.mxu0 %v603
        %615 = vmatpush.bf16.msra.mxu0 %v602
        %616 = vmatpush.bf16.msra.mxu0 %v601
        %617 = vmatpush.bf16.msra.mxu0 %v600
        %618 = vmatpush.bf16.msra.mxu0 %v599
        %619 = vmatpush.bf16.msra.mxu0 %v598
        %620 = vmatpush.bf16.msra.mxu0 %v597
        %621 = vmatmul.bf16.gmra.mxu0 %v542
        %v622 = vpop.f32.mrf.mxu0
        %v623 = vadd.f32 0.0, %v622
        %v624 = vpop.f32.mrf.mxu0
        %625 = vdwg.mxu0
        %v626 = vadd.f32 %v548, %v623
        %627 = vst [vmem:[#allocation2] sm:$0xff] %v626
        %p628 = scmp.eq.s32.totalorder %s27, 1
        // Predicated region
        $region53: #{qwen2_forward.9} parent=39 // pred_check
          %p629 = pneg %p628
        $region54: #{qwen2_forward.9} parent=39 // pred_check_branch
          %631 = sbr.rel (%p629) target = $region56
        $region55: #{qwen2_forward.9} parent=39 // pred_region
          %v632 = vld [vmem:[#allocation2] sm:$0xff]
          %v633 = vadd.f32 %v337, %v632
          %v634 = vpack.c.bf16 %v633, %v633
          %635 = vst [vmem:[%s335] sm:$0xf] %v634
        $region56: #{qwen2_forward.9} parent=39 // pred_fallthru
          _
        %p636 = scmp.lt.s32.totalorder %s26, 1
        %s637 = scalar_select %p636, %s26, 1
        %s638 = smul.addr %s637, 4
        %s639 = scalar_lea.vmem %s5, %s638
        // Predicated region
        $region57: #{qwen2_forward.9} parent=39 // pred_check
          %p640 = pneg %p177
        $region58: #{qwen2_forward.9} parent=39 // pred_check_branch
          %642 = sbr.rel (%p640) target = $region60
        $region59: #{qwen2_forward.9} parent=39 // pred_region
          _
        $region60: #{qwen2_forward.9} parent=39 // pred_fallthru
          _
      $region40: #{qwen2_forward.9} parent=5 // pred_fallthru
        _
      %p643 = scmp.le.s32.totalorder 2, %s17
      // Predicated region
      $region61: #{qwen2_forward.9} parent=5 // pred_check
        %p644 = pneg %p643
      $region62: #{qwen2_forward.9} parent=5 // pred_check_branch
        %646 = sbr.rel (%p644) target = $region64
      $region63: #{qwen2_forward.9} parent=5 // pred_region
        %s647 = ssub.s32 %s17, 2
        // Predicated region
        $region65: #{qwen2_forward.9} parent=63 // pred_check
          %p648 = pneg %p183
        $region66: #{qwen2_forward.9} parent=63 // pred_check_branch
          %650 = sbr.rel (%p648) target = $region68
        $region67: #{qwen2_forward.9} parent=63 // pred_region
          %p651 = scmp.lt.s32.totalorder %s28, 1
          %s652 = scalar_select %p651, %s28, 1
          %s653 = smul.addr %s652, 4
          %s654 = scalar_lea.vmem %s5, %s653
        $region68: #{qwen2_forward.9} parent=63 // pred_fallthru
          _
      $region64: #{qwen2_forward.9} parent=5 // pred_fallthru
        _
    $region6: #{qwen2_forward.9} parent=1 // loop_footer
      %s21 = sadd.s32 1, %s17
    $region7: #{qwen2_forward.9} parent=1 // loop_footer_branch
      %16 = sbr.rel target = $region3
    $region8: #{qwen2_forward.9} parent=1 // loop_exit
      _
    %655 = vsyncpa [#allocation4], 1
    %s656 = scalar_lea.sflag [#allocation4], 1
    %657 = vsyncpa %s656, 1
    %658 = vsyncpa [#allocation6], 1
    %s659 = scalar_lea.sflag [#allocation6], 1
    %660 = vsyncpa %s659, 1

// kernel: qwen2_forward.8
$region0: #{qwen2_forward.8}
  #allocation0 [shape = 'u32[]', space=smem, size = 0x4, offset = 0x4, fixed_abs, tag = 'smem constant byte address 0x4 - core index']
  #allocation1 [shape = 'u32[72,128]{1,0:T(1,128)}', space=vmem, size = 0x9000, scoped, tag = 'internal scratch']
  %s0 = inlined_call_operand.vmem [shape: f32[2,1,16], index: 0, kind: input, shape index: {}]
  %s1 = inlined_call_operand.vmem [shape: bf16[2,8,256], index: 1, kind: input, shape index: {}]
  %s2 = inlined_call_operand.vmem [shape: bf16[2,2,8,32], index: 2, kind: input, shape index: {}]
  %s3 = inlined_call_operand.vmem [shape: bf16[2,2,8,32], index: 3, kind: input, shape index: {}]
  %s4 = inlined_call_operand.hbm [shape: bf16[128,128], index: 4, kind: input, shape index: {}]
  %s5 = inlined_call_operand.vmem [shape: bf16[2,8,128], index: 5, kind: input, shape index: {}]
  %s6 = inlined_call_operand.vmem [shape: bf16[2,8,128], index: 6, kind: output, shape index: {}]
  %s7 = sld [smem:[#allocation0]]
  $region61: #{qwen2_forward.8} parent=0
    _
  %s9 = ssub.s32 1, %s7
  %s10 = scalar_select 0, %s9, %s7
  $region1: #{qwen2_forward.8} parent=0
    #allocation2 [shape = 'u8[32768]{0}', space=vmem, size = 0x8000, scoped, tag = 'input window, operand 4, single buffered']
    #allocation3 [shape = 's32[2]{0}', space=sflag, size = 0x8, scoped, tag = 'scoped memory for qwen2_forward.8']
    %11 = vsyncpa [#allocation3], 0
    loop: start=0, step=1, limit=4
    $region2: #{qwen2_forward.8} parent=1 // loop_pre_header
      _
    $region3: #{qwen2_forward.8} parent=1 // loop_header
      %s13 = sphi 0, %s17
      %p14 = scmp.ge.s32.totalorder %s13, 4
      %s23 = sphi 0, %s25
      %s26 = sphi 0, %s23
      %s27 = sphi 0, %s26
      %s43 = sphi 0, %s27
      %s49 = sphi 0, %s51
      %s52 = sphi 0, %s49
      %s53 = sphi 0, %s52
      %s69 = sphi 0, %s53
      %s75 = sphi 0, %s77
      %s78 = sphi 0, %s75
      %s79 = sphi 0, %s78
      %s95 = sphi 0, %s79
      %s101 = sphi 0, %s103
      %s104 = sphi 0, %s101
      %s105 = sphi 0, %s104
      %s121 = sphi 0, %s105
      %s125 = sphi 0, %s125
      %s127 = sphi 0, %s125
      %s128 = sphi 0, %s127
      %s142 = sphi 0, %s128
      %s148 = sphi 0, %s150
      %s151 = sphi 0, %s148
      %s152 = sphi 0, %s151
      %s168 = sphi 0, %s152
      %s174 = sphi 0, %s176
      %s177 = sphi 0, %s174
      %s178 = sphi 0, %s177
      %s194 = sphi 0, %s178
    $region4: #{qwen2_forward.8} parent=1 // loop_header_branch
      %16 = sbr.rel (%p14) target = $region8
    $region5: #{qwen2_forward.8} parent=1 // loop_body
      %s18 = ssub.s32 %s13, 1
      %s19 = ssub.s32 %s13, 2
      %s20 = sadd.s32 %s13, 1
      %s21 = ssub.s32 %s13, %s20
      %p22 = scmp.eq.s32.totalorder %s21, 0
      %s24 = sadd.s32 %s23, 1
      %s25 = scalar_select %p22, %s23, %s24
      %p28 = pneg %p22
      %p29 = scmp.eq.s32.totalorder %s13, 1
      %p30 = por %p28, %p29
      %p31 = scmp.ne.s32.totalorder %s23, %s26
      %p32 = scmp.eq.s32.totalorder %s13, 0
      %p33 = por %p31, %p32
      %p34 = scmp.ne.s32.totalorder %s23, %s26
      %p35 = scmp.eq.s32.totalorder %s18, 1
      %p36 = por %p34, %p35
      %p37 = scmp.ne.s32.totalorder %s26, %s27
      %p38 = scmp.eq.s32.totalorder %s18, 0
      %p39 = por %p37, %p38
      %p40 = scmp.ne.s32.totalorder %s26, %s27
      %p41 = scmp.eq.s32.totalorder %s19, 1
      %p42 = por %p40, %p41
      %p44 = scmp.ne.s32.totalorder %s27, %s43
      %p45 = scmp.eq.s32.totalorder %s19, 0
      %p46 = por %p44, %p45
      %s47 = ssub.s32 %s13, %s20
      %p48 = scmp.eq.s32.totalorder %s47, 0
      %s50 = sadd.s32 %s49, 1
      %s51 = scalar_select %p48, %s49, %s50
      %p54 = pneg %p48
      %p55 = scmp.eq.s32.totalorder %s13, 1
      %p56 = por %p54, %p55
      %p57 = scmp.ne.s32.totalorder %s49, %s52
      %p58 = scmp.eq.s32.totalorder %s13, 0
      %p59 = por %p57, %p58
      %p60 = scmp.ne.s32.totalorder %s49, %s52
      %p61 = scmp.eq.s32.totalorder %s18, 1
      %p62 = por %p60, %p61
      %p63 = scmp.ne.s32.totalorder %s52, %s53
      %p64 = scmp.eq.s32.totalorder %s18, 0
      %p65 = por %p63, %p64
      %p66 = scmp.ne.s32.totalorder %s52, %s53
      %p67 = scmp.eq.s32.totalorder %s19, 1
      %p68 = por %p66, %p67
      %p70 = scmp.ne.s32.totalorder %s53, %s69
      %p71 = scmp.eq.s32.totalorder %s19, 0
      %p72 = por %p70, %p71
      %s73 = ssub.s32 %s13, %s20
      %p74 = scmp.eq.s32.totalorder %s73, 0
      %s76 = sadd.s32 %s75, 1
      %s77 = scalar_select %p74, %s75, %s76
      %p80 = pneg %p74
      %p81 = scmp.eq.s32.totalorder %s13, 1
      %p82 = por %p80, %p81
      %p83 = scmp.ne.s32.totalorder %s75, %s78
      %p84 = scmp.eq.s32.totalorder %s13, 0
      %p85 = por %p83, %p84
      %p86 = scmp.ne.s32.totalorder %s75, %s78
      %p87 = scmp.eq.s32.totalorder %s18, 1
      %p88 = por %p86, %p87
      %p89 = scmp.ne.s32.totalorder %s78, %s79
      %p90 = scmp.eq.s32.totalorder %s18, 0
      %p91 = por %p89, %p90
      %p92 = scmp.ne.s32.totalorder %s78, %s79
      %p93 = scmp.eq.s32.totalorder %s19, 1
      %p94 = por %p92, %p93
      %p96 = scmp.ne.s32.totalorder %s79, %s95
      %p97 = scmp.eq.s32.totalorder %s19, 0
      %p98 = por %p96, %p97
      %s99 = ssub.s32 %s13, %s20
      %p100 = scmp.eq.s32.totalorder %s99, 0
      %s102 = sadd.s32 %s101, 1
      %s103 = scalar_select %p100, %s101, %s102
      %p106 = pneg %p100
      %p107 = scmp.eq.s32.totalorder %s13, 1
      %p108 = por %p106, %p107
      %p109 = scmp.ne.s32.totalorder %s101, %s104
      %p110 = scmp.eq.s32.totalorder %s13, 0
      %p111 = por %p109, %p110
      %p112 = scmp.ne.s32.totalorder %s101, %s104
      %p113 = scmp.eq.s32.totalorder %s18, 1
      %p114 = por %p112, %p113
      %p115 = scmp.ne.s32.totalorder %s104, %s105
      %p116 = scmp.eq.s32.totalorder %s18, 0
      %p117 = por %p115, %p116
      %p118 = scmp.ne.s32.totalorder %s104, %s105
      %p119 = scmp.eq.s32.totalorder %s19, 1
      %p120 = por %p118, %p119
      %p122 = scmp.ne.s32.totalorder %s105, %s121
      %p123 = scmp.eq.s32.totalorder %s19, 0
      %p124 = por %p122, %p123
      %s126 = sadd.s32 %s125, 1
      %p129 = scmp.eq.s32.totalorder %s13, 1
      %p130 = scmp.ne.s32.totalorder %s125, %s127
      %p131 = scmp.eq.s32.totalorder %s13, 0
      %p132 = por %p130, %p131
      %p133 = scmp.ne.s32.totalorder %s125, %s127
      %p134 = scmp.eq.s32.totalorder %s18, 1
      %p135 = por %p133, %p134
      %p136 = scmp.ne.s32.totalorder %s127, %s128
      %p137 = scmp.eq.s32.totalorder %s18, 0
      %p138 = por %p136, %p137
      %p139 = scmp.ne.s32.totalorder %s127, %s128
      %p140 = scmp.eq.s32.totalorder %s19, 1
      %p141 = por %p139, %p140
      %p143 = scmp.ne.s32.totalorder %s128, %s142
      %p144 = scmp.eq.s32.totalorder %s19, 0
      %p145 = por %p143, %p144
      %s146 = ssub.s32 %s13, %s20
      %p147 = scmp.eq.s32.totalorder %s146, 0
      %s149 = sadd.s32 %s148, 1
      %s150 = scalar_select %p147, %s148, %s149
      %p153 = pneg %p147
      %p154 = scmp.eq.s32.totalorder %s13, 1
      %p155 = por %p153, %p154
      %p156 = scmp.ne.s32.totalorder %s148, %s151
      %p157 = scmp.eq.s32.totalorder %s13, 0
      %p158 = por %p156, %p157
      %p159 = scmp.ne.s32.totalorder %s148, %s151
      %p160 = scmp.eq.s32.totalorder %s18, 1
      %p161 = por %p159, %p160
      %p162 = scmp.ne.s32.totalorder %s151, %s152
      %p163 = scmp.eq.s32.totalorder %s18, 0
      %p164 = por %p162, %p163
      %p165 = scmp.ne.s32.totalorder %s151, %s152
      %p166 = scmp.eq.s32.totalorder %s19, 1
      %p167 = por %p165, %p166
      %p169 = scmp.ne.s32.totalorder %s152, %s168
      %p170 = scmp.eq.s32.totalorder %s19, 0
      %p171 = por %p169, %p170
      %s172 = ssub.s32 %s13, %s20
      %p173 = scmp.eq.s32.totalorder %s172, 0
      %s175 = sadd.s32 %s174, 1
      %s176 = scalar_select %p173, %s174, %s175
      %p179 = pneg %p173
      %p180 = scmp.eq.s32.totalorder %s13, 1
      %p181 = por %p179, %p180
      %p182 = scmp.ne.s32.totalorder %s174, %s177
      %p183 = scmp.eq.s32.totalorder %s13, 0
      %p184 = por %p182, %p183
      %p185 = scmp.ne.s32.totalorder %s174, %s177
      %p186 = scmp.eq.s32.totalorder %s18, 1
      %p187 = por %p185, %p186
      %p188 = scmp.ne.s32.totalorder %s177, %s178
      %p189 = scmp.eq.s32.totalorder %s18, 0
      %p190 = por %p188, %p189
      %p191 = scmp.ne.s32.totalorder %s177, %s178
      %p192 = scmp.eq.s32.totalorder %s19, 1
      %p193 = por %p191, %p192
      %p195 = scmp.ne.s32.totalorder %s178, %s194
      %p196 = scmp.eq.s32.totalorder %s19, 0
      %p197 = por %p195, %p196
      %p198 = scmp.le.s32.totalorder 1, %s13
      %p199 = scmp.lt.s32.totalorder %s13, 3
      %p200 = pnand %p198, %p199
      %p201 = pneg %p200
      // Predicated region
      $region9: #{qwen2_forward.8} parent=5 // pred_check
        _
      $region10: #{qwen2_forward.8} parent=5 // pred_check_branch
        %203 = sbr.rel (%p200) target = $region12
      $region11: #{qwen2_forward.8} parent=5 // pred_region
        %s204 = ssub.s32 %s13, 1
        // Predicated region
        $region13: #{qwen2_forward.8} parent=11 // pred_check
          %p205 = pneg %p138
        $region14: #{qwen2_forward.8} parent=11 // pred_check_branch
          %207 = sbr.rel (%p205) target = $region16
        $region15: #{qwen2_forward.8} parent=11 // pred_region
          %209 = vsyncadd [#allocation3], 0
          %s210 = sshll.u32 %s4, 4
          %s211 = int_to_ptr.hbm [resolvable:$true] %s210
          %s212 = sshll.u32 [#allocation2], 4
          %s213 = int_to_ptr.vmem [resolvable:$true] %s212
          %218 = dma.hbm_to_vmem [thread:$0]  %s211, 1024, %s213, [#allocation3], 64, 64, 4
        $region16: #{qwen2_forward.8} parent=11 // pred_fallthru
          _
      $region12: #{qwen2_forward.8} parent=5 // pred_fallthru
        _
      %p219 = scmp.lt.s32.totalorder %s13, 2
      // Predicated region
      $region17: #{qwen2_forward.8} parent=5 // pred_check
        %p220 = pneg %p219
      $region18: #{qwen2_forward.8} parent=5 // pred_check_branch
        %222 = sbr.rel (%p220) target = $region20
      $region19: #{qwen2_forward.8} parent=5 // pred_region
        // Predicated region
        $region21: #{qwen2_forward.8} parent=19 // pred_check
          %p223 = pneg %p33
        $region22: #{qwen2_forward.8} parent=19 // pred_check_branch
          %225 = sbr.rel (%p223) target = $region24
        $region23: #{qwen2_forward.8} parent=19 // pred_region
          %p226 = scmp.lt.s32.totalorder %s13, 1
          %s227 = scalar_select %p226, %s13, 1
          %s228 = scalar_lea.vmem %s0, %s227
        $region24: #{qwen2_forward.8} parent=19 // pred_fallthru
          _
        // Predicated region
        $region25: #{qwen2_forward.8} parent=19 // pred_check
          %p229 = pneg %p59
        $region26: #{qwen2_forward.8} parent=19 // pred_check_branch
          %231 = sbr.rel (%p229) target = $region28
        $region27: #{qwen2_forward.8} parent=19 // pred_region
          %p232 = scmp.lt.s32.totalorder %s13, 1
          %s233 = scalar_select %p232, %s13, 1
          %s234 = smul.addr %s233, 2
          %s235 = smul.addr %s234, 4
          %s236 = scalar_lea.vmem %s1, %s235
        $region28: #{qwen2_forward.8} parent=19 // pred_fallthru
          _
        // Predicated region
        $region29: #{qwen2_forward.8} parent=19 // pred_check
          %p237 = pneg %p85
        $region30: #{qwen2_forward.8} parent=19 // pred_check_branch
          %239 = sbr.rel (%p237) target = $region32
        $region31: #{qwen2_forward.8} parent=19 // pred_region
          %p240 = scmp.lt.s32.totalorder %s13, 1
          %s241 = scalar_select %p240, %s13, 1
          %s242 = smul.addr %s241, 2
          %s243 = smul.addr %s242, 4
          %s244 = scalar_lea.vmem %s2, %s243
        $region32: #{qwen2_forward.8} parent=19 // pred_fallthru
          _
        // Predicated region
        $region33: #{qwen2_forward.8} parent=19 // pred_check
          %p245 = pneg %p111
        $region34: #{qwen2_forward.8} parent=19 // pred_check_branch
          %247 = sbr.rel (%p245) target = $region36
        $region35: #{qwen2_forward.8} parent=19 // pred_region
          %p248 = scmp.lt.s32.totalorder %s13, 1
          %s249 = scalar_select %p248, %s13, 1
          %s250 = smul.addr %s249, 2
          %s251 = smul.addr %s250, 4
          %s252 = scalar_lea.vmem %s3, %s251
        $region36: #{qwen2_forward.8} parent=19 // pred_fallthru
          _
        // Predicated region
        $region37: #{qwen2_forward.8} parent=19 // pred_check
          %p253 = pneg %p158
        $region38: #{qwen2_forward.8} parent=19 // pred_check_branch
          %255 = sbr.rel (%p253) target = $region40
        $region39: #{qwen2_forward.8} parent=19 // pred_region
          %p256 = scmp.lt.s32.totalorder %s13, 1
          %s257 = scalar_select %p256, %s13, 1
          %s258 = smul.addr %s257, 4
          %s259 = scalar_lea.vmem %s5, %s258
        $region40: #{qwen2_forward.8} parent=19 // pred_fallthru
          _
      $region20: #{qwen2_forward.8} parent=5 // pred_fallthru
        _
      %p260 = scmp.le.s32.totalorder 1, %s13
      %p261 = scmp.lt.s32.totalorder %s13, 3
      %p262 = pnand %p260, %p261
      %p263 = pneg %p262
      // Predicated region
      $region41: #{qwen2_forward.8} parent=5 // pred_check
        _
      $region42: #{qwen2_forward.8} parent=5 // pred_check_branch
        %265 = sbr.rel (%p262) target = $region44
      $region43: #{qwen2_forward.8} parent=5 // pred_region
        %s266 = ssub.s32 %s13, 1
        // Predicated region
        $region45: #{qwen2_forward.8} parent=43 // pred_check
          %p267 = pneg %p138
        $region46: #{qwen2_forward.8} parent=43 // pred_check_branch
          %269 = sbr.rel (%p267) target = $region48
        $region47: #{qwen2_forward.8} parent=43 // pred_region
          %271 = dma.done [#allocation3], 1024
        $region48: #{qwen2_forward.8} parent=43 // pred_fallthru
          _
        %p272 = scmp.lt.s32.totalorder %s18, 1
        %s273 = scalar_select %p272, %s18, 1
        %s274 = scalar_lea.vmem %s0, %s273
        %p275 = pneg %p39
        %p276 = pneg %p36
        %p277 = scmp.lt.s32.totalorder %s18, 1
        %s278 = scalar_select %p277, %s18, 1
        %s279 = smul.addr %s278, 2
        %s280 = smul.addr %s279, 4
        %s281 = scalar_lea.vmem %s1, %s280
        %p282 = pneg %p65
        %p283 = pneg %p62
        %p284 = scmp.lt.s32.totalorder %s18, 1
        %s285 = scalar_select %p284, %s18, 1
        %s286 = smul.addr %s285, 2
        %s287 = smul.addr %s286, 4
        %s288 = scalar_lea.vmem %s2, %s287
        %p289 = pneg %p91
        %p290 = pneg %p88
        %p291 = scmp.lt.s32.totalorder %s18, 1
        %s292 = scalar_select %p291, %s18, 1
        %s293 = smul.addr %s292, 2
        %s294 = smul.addr %s293, 4
        %s295 = scalar_lea.vmem %s3, %s294
        %p296 = pneg %p117
        %p297 = pneg %p114
        %p298 = pneg %p138
        %p299 = pneg %p135
        %p300 = scmp.lt.s32.totalorder %s18, 1
        %s301 = scalar_select %p300, %s18, 1
        %s302 = smul.addr %s301, 4
        %s303 = scalar_lea.vmem %s5, %s302
        %p304 = pneg %p164
        %p305 = pneg %p161
        %p306 = pneg %p190
        %p307 = pneg %p187
        %p308 = scmp.lt.s32.totalorder %s18, 1
        %s309 = scalar_select %p308, %s18, 1
        %s310 = smul.addr %s309, 4
        %s311 = scalar_lea.vmem %s6, %s310
        %p312 = scmp.lt.s32.totalorder %s18, 1
        %s313 = scalar_select %p312, %s18, 1
        %s314 = scalar_lea.vmem %s0, %s313
        %p315 = scmp.lt.s32.totalorder %s18, 1
        %s316 = scalar_select %p315, %s18, 1
        %s317 = smul.addr %s316, 2
        %s318 = smul.addr %s317, 4
        %s319 = scalar_lea.vmem %s1, %s318
        %p320 = scmp.lt.s32.totalorder %s18, 1
        %s321 = scalar_select %p320, %s18, 1
        %s322 = smul.addr %s321, 2
        %s323 = smul.addr %s322, 4
        %s324 = scalar_lea.vmem %s2, %s323
        %p325 = scmp.lt.s32.totalorder %s18, 1
        %s326 = scalar_select %p325, %s18, 1
        %s327 = smul.addr %s326, 2
        %s328 = smul.addr %s327, 4
        %s329 = scalar_lea.vmem %s3, %s328
        %p330 = scmp.lt.s32.totalorder %s18, 1
        %s331 = scalar_select %p330, %s18, 1
        %s332 = smul.addr %s331, 4
        %s333 = scalar_lea.vmem %s5, %s332
        %p334 = scmp.lt.s32.totalorder %s18, 1
        %s335 = scalar_select %p334, %s18, 1
        %s336 = smul.addr %s335, 4
        %s337 = scalar_lea.vmem %s6, %s336
        %v339 = vld [vmem:[%s319] sm:$0xff]
        %v340 = vlaneseq
        %v341 = vand.u32 %v340, 127
        %v342 = vlaneseq
        %v343 = vshrl.u32 %v342, 7
        %v344 = vadd.s32 %v343, 8
        %vm345 = vcmp.le.s32.totalorder %v341, %v344
        %v346 = vld [vmem:[%s314] sm:$0x1]
        %vm347 = vcmp.gt.f32.partialorder %v346, 0.5
        %v348 = vsel %vm347, 1, 0
        %v349 = vperm.slane %v348, 0
        %vm350 = vcmp.eq.s32.totalorder %v349, 1
        %vm351 = vmand %vm345, %vm350
        %v352 = vld [vmem:[%s324] sm:$0xf]
        %v354 = vunpack.c.h.b16 %v339
        %v355 = vpack.c.b16 %v354, %v354
        %vm356 = vcmask 1043456
        %v359 = vsel %vm356, %v352, %v355
        %v360 = vld [vmem:[%s329] sm:$0xf]
        %361 = vrot.lane.b32.xlu0 %v355, 64
        %v362 = vpop.permute.xlu0 %361
        %v365 = vsel %vm356, %v360, %v362
        %vm367 = vcmask 261120
        %v369 = vsel %vm367, %v339, 0
        %v371 = vsel %vm367, %v359, 0
        %373 = vmatpush.bf16.xpose.msra.mxu0 0
        %374 = vmatpush.bf16.xpose.msra.mxu0 0
        %375 = vmatpush.bf16.xpose.msra.mxu0 0
        %376 = vmatpush.bf16.xpose.msra.mxu0 0
        %377 = vmatpush.bf16.xpose.msra.mxu0 0
        %378 = vmatpush.bf16.xpose.msra.mxu0 0
        %379 = vmatpush.bf16.xpose.msra.mxu0 0
        %380 = vmatpush.bf16.xpose.msra.mxu0 %v371
        %381 = vmatmul.bf16.gmra.mxu0 %v369
        %v382 = vpop.f32.mrf.mxu0
        %v383 = vadd.f32 0.0, %v382
        %v384 = vpop.f32.mrf.mxu0
        %385 = vdwg.mxu0
        %v386 = vmul.f32 %v383, 0.17677669
        %v387 = vsel %vm351, %v386, -1e+30
        %vm388 = vcmask 130048
        %v389 = vsel %vm388, %v387, -inf
        %390 = vmax.xlane.f32.xlu0 %v389
        %v391 = vpop.xlane.xlu0 %390
        %v392 = vsub.f32 %v387, %v391
        %v393 = vmul.f32 %v392, 1.442695
        %v394 = vpow.pop %v393
        %v395 = vsel %vm388, %v394, 0.0
        %396 = vadd.xlane.f32.xlu0 %v395
        %v397 = vpop.xlane.xlu0 %396
        %v398 = vrcp.pop %v397
        %v399 = vmul.f32 %v394, %v398
        %v400 = vpack.c.bf16 %v399, %v399
        %v402 = vsel %vm388, %v400, 0
        %404 = vmatpush.bf16.msra.mxu0 0
        %405 = vmatpush.bf16.msra.mxu0 0
        %406 = vmatpush.bf16.msra.mxu0 0
        %407 = vmatpush.bf16.msra.mxu0 0
        %408 = vmatpush.bf16.msra.mxu0 0
        %409 = vmatpush.bf16.msra.mxu0 0
        %410 = vmatpush.bf16.msra.mxu0 0
        %411 = vmatpush.bf16.msra.mxu0 %v365
        %412 = vmatmul.bf16.gmra.mxu0 %v402
        %v413 = vpop.f32.mrf.mxu0
        %v414 = vadd.f32 0.0, %v413
        %v415 = vpop.f32.mrf.mxu0
        %416 = vdwg.mxu0
        %v417 = vunpack.c.l.b16 %v339
        %v418 = vpack.c.b16 %v417, %v417
        %419 = vrot.lane.b32.xlu0 %v418, 96
        %v420 = vpop.permute.xlu0 %419
        %v422 = vsel %vm367, %v420, 0
        %424 = vmatpush.bf16.xpose.msra.mxu0 0
        %425 = vmatpush.bf16.xpose.msra.mxu0 0
        %426 = vmatpush.bf16.xpose.msra.mxu0 0
        %427 = vmatpush.bf16.xpose.msra.mxu0 0
        %428 = vmatpush.bf16.xpose.msra.mxu0 0
        %429 = vmatpush.bf16.xpose.msra.mxu0 0
        %430 = vmatpush.bf16.xpose.msra.mxu0 0
        %431 = vmatpush.bf16.xpose.msra.mxu0 %v371
        %432 = vmatmul.bf16.gmra.mxu0 %v422
        %v433 = vpop.f32.mrf.mxu0
        %v434 = vadd.f32 0.0, %v433
        %v435 = vpop.f32.mrf.mxu0
        %436 = vdwg.mxu0
        %v437 = vmul.f32 %v434, 0.17677669
        %v438 = vsel %vm351, %v437, -1e+30
        %v439 = vsel %vm388, %v438, -inf
        %440 = vmax.xlane.f32.xlu0 %v439
        %v441 = vpop.xlane.xlu0 %440
        %v442 = vsub.f32 %v438, %v441
        %v443 = vmul.f32 %v442, 1.442695
        %v444 = vpow.pop %v443
        %v445 = vsel %vm388, %v444, 0.0
        %446 = vadd.xlane.f32.xlu0 %v445
        %v447 = vpop.xlane.xlu0 %446
        %v448 = vrcp.pop %v447
        %v449 = vmul.f32 %v444, %v448
        %v450 = vpack.c.bf16 %v449, %v449
        %v452 = vsel %vm388, %v450, 0
        %454 = vmatpush.bf16.msra.mxu0 0
        %455 = vmatpush.bf16.msra.mxu0 0
        %456 = vmatpush.bf16.msra.mxu0 0
        %457 = vmatpush.bf16.msra.mxu0 0
        %458 = vmatpush.bf16.msra.mxu0 0
        %459 = vmatpush.bf16.msra.mxu0 0
        %460 = vmatpush.bf16.msra.mxu0 0
        %461 = vmatpush.bf16.msra.mxu0 %v365
        %462 = vmatmul.bf16.gmra.mxu0 %v452
        %v463 = vpop.f32.mrf.mxu0
        %v464 = vadd.f32 0.0, %v463
        %v465 = vpop.f32.mrf.mxu0
        %466 = vdwg.mxu0
        %s467 = scalar_lea.vmem %s324, 4
        %v468 = vld [vmem:[%s467] sm:$0xf]
        %469 = vrot.lane.b32.xlu0 %v355, 96
        %v470 = vpop.permute.xlu0 %469
        %v473 = vsel %vm356, %v468, %v470
        %s474 = scalar_lea.vmem %s329, 4
        %v475 = vld [vmem:[%s474] sm:$0xf]
        %476 = vrot.lane.b32.xlu0 %v355, 32
        %v477 = vpop.permute.xlu0 %476
        %v480 = vsel %vm356, %v475, %v477
        %482 = vrot.lane.b32.xlu0 %v418, 64
        %v483 = vpop.permute.xlu0 %482
        %v485 = vsel %vm367, %v483, 0
        %v487 = vsel %vm367, %v473, 0
        %489 = vmatpush.bf16.xpose.msra.mxu0 0
        %490 = vmatpush.bf16.xpose.msra.mxu0 0
        %491 = vmatpush.bf16.xpose.msra.mxu0 0
        %492 = vmatpush.bf16.xpose.msra.mxu0 0
        %493 = vmatpush.bf16.xpose.msra.mxu0 0
        %494 = vmatpush.bf16.xpose.msra.mxu0 0
        %495 = vmatpush.bf16.xpose.msra.mxu0 0
        %496 = vmatpush.bf16.xpose.msra.mxu0 %v487
        %497 = vmatmul.bf16.gmra.mxu0 %v485
        %v498 = vpop.f32.mrf.mxu0
        %v499 = vadd.f32 0.0, %v498
        %v500 = vpop.f32.mrf.mxu0
        %501 = vdwg.mxu0
        %v502 = vmul.f32 %v499, 0.17677669
        %v503 = vsel %vm351, %v502, -1e+30
        %v504 = vsel %vm388, %v503, -inf
        %505 = vmax.xlane.f32.xlu0 %v504
        %v506 = vpop.xlane.xlu0 %505
        %v507 = vsub.f32 %v503, %v506
        %v508 = vmul.f32 %v507, 1.442695
        %v509 = vpow.pop %v508
        %v510 = vsel %vm388, %v509, 0.0
        %511 = vadd.xlane.f32.xlu0 %v510
        %v512 = vpop.xlane.xlu0 %511
        %v513 = vrcp.pop %v512
        %v514 = vmul.f32 %v509, %v513
        %v515 = vpack.c.bf16 %v514, %v514
        %v517 = vsel %vm388, %v515, 0
        %519 = vmatpush.bf16.msra.mxu0 0
        %520 = vmatpush.bf16.msra.mxu0 0
        %521 = vmatpush.bf16.msra.mxu0 0
        %522 = vmatpush.bf16.msra.mxu0 0
        %523 = vmatpush.bf16.msra.mxu0 0
        %524 = vmatpush.bf16.msra.mxu0 0
        %525 = vmatpush.bf16.msra.mxu0 0
        %526 = vmatpush.bf16.msra.mxu0 %v480
        %527 = vmatmul.bf16.gmra.mxu0 %v517
        %v528 = vpop.f32.mrf.mxu0
        %v529 = vadd.f32 0.0, %v528
        %v530 = vpop.f32.mrf.mxu0
        %531 = vdwg.mxu0
        %532 = vrot.lane.b32.xlu0 %v418, 32
        %v533 = vpop.permute.xlu0 %532
        %v535 = vsel %vm367, %v533, 0
        %537 = vmatpush.bf16.xpose.msra.mxu0 0
        %538 = vmatpush.bf16.xpose.msra.mxu0 0
        %539 = vmatpush.bf16.xpose.msra.mxu0 0
        %540 = vmatpush.bf16.xpose.msra.mxu0 0
        %541 = vmatpush.bf16.xpose.msra.mxu0 0
        %542 = vmatpush.bf16.xpose.msra.mxu0 0
        %543 = vmatpush.bf16.xpose.msra.mxu0 0
        %544 = vmatpush.bf16.xpose.msra.mxu0 %v487
        %545 = vmatmul.bf16.gmra.mxu0 %v535
        %v546 = vpop.f32.mrf.mxu0
        %v547 = vadd.f32 0.0, %v546
        %v548 = vpop.f32.mrf.mxu0
        %549 = vdwg.mxu0
        %v550 = vmul.f32 %v547, 0.17677669
        %v551 = vsel %vm351, %v550, -1e+30
        %v552 = vsel %vm388, %v551, -inf
        %553 = vmax.xlane.f32.xlu0 %v552
        %v554 = vpop.xlane.xlu0 %553
        %v555 = vsub.f32 %v551, %v554
        %v556 = vmul.f32 %v555, 1.442695
        %v557 = vpow.pop %v556
        %v558 = vsel %vm388, %v557, 0.0
        %559 = vadd.xlane.f32.xlu0 %v558
        %v560 = vpop.xlane.xlu0 %559
        %v561 = vrcp.pop %v560
        %v562 = vmul.f32 %v557, %v561
        %v563 = vpack.c.bf16 %v562, %v562
        %v565 = vsel %vm388, %v563, 0
        %567 = vmatpush.bf16.msra.mxu0 0
        %568 = vmatpush.bf16.msra.mxu0 0
        %569 = vmatpush.bf16.msra.mxu0 0
        %570 = vmatpush.bf16.msra.mxu0 0
        %571 = vmatpush.bf16.msra.mxu0 0
        %572 = vmatpush.bf16.msra.mxu0 0
        %573 = vmatpush.bf16.msra.mxu0 0
        %574 = vmatpush.bf16.msra.mxu0 %v480
        %575 = vmatmul.bf16.gmra.mxu0 %v565
        %v576 = vpop.f32.mrf.mxu0
        %v577 = vadd.f32 0.0, %v576
        %v578 = vpop.f32.mrf.mxu0
        %579 = vdwg.mxu0
        %581 = vrot.lane.b32.xlu0 %v464, 32
        %v582 = vpop.permute.xlu0 %581
        %585 = vrot.lane.b32.xlu0 %v529, 64
        %v586 = vpop.permute.xlu0 %585
        %589 = vrot.lane.b32.xlu0 %v577, 96
        %v590 = vpop.permute.xlu0 %589
        %v592 = vsel %vm367, %v414, %v582
        %vm593 = vcmask 523264
        %v594 = vsel %vm593, %v592, %v586
        %vm595 = vcmask 785408
        %v596 = vsel %vm595, %v594, %v590
        %v597 = vpack.c.bf16 %v596, %v596
        %v598 = vld [vmem:[#allocation2] sm:$0xf]
        %v599 = vld [vmem:[#allocation2 + $0x4] sm:$0xf]
        %v600 = vld [vmem:[#allocation2 + $0x8] sm:$0xf]
        %v601 = vld [vmem:[#allocation2 + $0xc] sm:$0xf]
        %v602 = vld [vmem:[#allocation2 + $0x10] sm:$0xf]
        %v603 = vld [vmem:[#allocation2 + $0x14] sm:$0xf]
        %v604 = vld [vmem:[#allocation2 + $0x18] sm:$0xf]
        %v605 = vld [vmem:[#allocation2 + $0x1c] sm:$0xf]
        %v606 = vld [vmem:[#allocation2 + $0x20] sm:$0xf]
        %v607 = vld [vmem:[#allocation2 + $0x24] sm:$0xf]
        %v608 = vld [vmem:[#allocation2 + $0x28] sm:$0xf]
        %v609 = vld [vmem:[#allocation2 + $0x2c] sm:$0xf]
        %v610 = vld [vmem:[#allocation2 + $0x30] sm:$0xf]
        %v611 = vld [vmem:[#allocation2 + $0x34] sm:$0xf]
        %v612 = vld [vmem:[#allocation2 + $0x38] sm:$0xf]
        %v613 = vld [vmem:[#allocation2 + $0x3c] sm:$0xf]
        %v630 = vunpack.c.l.b16 %v598
        %v631 = vunpack.c.l.b16 %v599
        %v632 = vunpack.c.l.b16 %v600
        %v633 = vunpack.c.l.b16 %v601
        %v634 = vunpack.c.l.b16 %v602
        %v635 = vunpack.c.l.b16 %v603
        %v636 = vunpack.c.l.b16 %v604
        %v637 = vunpack.c.l.b16 %v605
        %v638 = vunpack.c.l.b16 %v606
        %v639 = vunpack.c.l.b16 %v607
        %v640 = vunpack.c.l.b16 %v608
        %v641 = vunpack.c.l.b16 %v609
        %v642 = vunpack.c.l.b16 %v610
        %v643 = vunpack.c.l.b16 %v611
        %v644 = vunpack.c.l.b16 %v612
        %v645 = vunpack.c.l.b16 %v613
        %v646 = vpack.c.b16 %v631, %v630
        %v647 = vpack.c.b16 %v633, %v632
        %v648 = vpack.c.b16 %v635, %v634
        %v649 = vpack.c.b16 %v637, %v636
        %v650 = vpack.c.b16 %v639, %v638
        %v651 = vpack.c.b16 %v641, %v640
        %v652 = vpack.c.b16 %v643, %v642
        %v653 = vpack.c.b16 %v645, %v644
        %662 = vmatpush.bf16.msra.mxu0 %v653
        %663 = vmatpush.bf16.msra.mxu0 %v652
        %664 = vmatpush.bf16.msra.mxu0 %v651
        %665 = vmatpush.bf16.msra.mxu0 %v650
        %666 = vmatpush.bf16.msra.mxu0 %v649
        %667 = vmatpush.bf16.msra.mxu0 %v648
        %668 = vmatpush.bf16.msra.mxu0 %v647
        %669 = vmatpush.bf16.msra.mxu0 %v646
        %670 = vmatmul.bf16.gmra.mxu0 %v597
        %v671 = vpop.f32.mrf.mxu0
        %v672 = vadd.f32 0.0, %v671
        %v673 = vpop.f32.mrf.mxu0
        %674 = vdwg.mxu0
        %v675 = vld [vmem:[%s333] sm:$0xf]
        %v676 = vunpack.c.l.bf16 %v675
        %v677 = vadd.f32 %v676, %v672
        %v678 = vpack.c.bf16 %v677, %v677
        %679 = vst [vmem:[%s337] sm:$0xf] %v678
        %p680 = scmp.lt.s32.totalorder %s18, 1
        %s681 = scalar_select %p680, %s18, 1
        %s682 = smul.addr %s681, 4
        %s683 = scalar_lea.vmem %s6, %s682
        // Predicated region
        $region49: #{qwen2_forward.8} parent=43 // pred_check
          %p684 = pneg %p187
        $region50: #{qwen2_forward.8} parent=43 // pred_check_branch
          %686 = sbr.rel (%p684) target = $region52
        $region51: #{qwen2_forward.8} parent=43 // pred_region
          _
        $region52: #{qwen2_forward.8} parent=43 // pred_fallthru
          _
      $region44: #{qwen2_forward.8} parent=5 // pred_fallthru
        _
      %p687 = scmp.le.s32.totalorder 2, %s13
      // Predicated region
      $region53: #{qwen2_forward.8} parent=5 // pred_check
        %p688 = pneg %p687
      $region54: #{qwen2_forward.8} parent=5 // pred_check_branch
        %690 = sbr.rel (%p688) target = $region56
      $region55: #{qwen2_forward.8} parent=5 // pred_region
        %s691 = ssub.s32 %s13, 2
        // Predicated region
        $region57: #{qwen2_forward.8} parent=55 // pred_check
          %p692 = pneg %p193
        $region58: #{qwen2_forward.8} parent=55 // pred_check_branch
          %694 = sbr.rel (%p692) target = $region60
        $region59: #{qwen2_forward.8} parent=55 // pred_region
          %p695 = scmp.lt.s32.totalorder %s19, 1
          %s696 = scalar_select %p695, %s19, 1
          %s697 = smul.addr %s696, 4
          %s698 = scalar_lea.vmem %s6, %s697
        $region60: #{qwen2_forward.8} parent=55 // pred_fallthru
          _
      $region56: #{qwen2_forward.8} parent=5 // pred_fallthru
        _
    $region6: #{qwen2_forward.8} parent=1 // loop_footer
      %s17 = sadd.s32 1, %s13
    $region7: #{qwen2_forward.8} parent=1 // loop_footer_branch
      %12 = sbr.rel target = $region3
    $region8: #{qwen2_forward.8} parent=1 // loop_exit
      _
    %699 = vsyncpa [#allocation3], 1
    %s700 = scalar_lea.sflag [#allocation3], 1
    %701 = vsyncpa %s700, 1

// kernel: qwen2_forward.10
$region0: #{qwen2_forward.10}
  #allocation0 [shape = 'u32[]', space=smem, size = 0x4, offset = 0x4, fixed_abs, tag = 'smem constant byte address 0x4 - core index']
  #allocation1 [shape = 'u32[72,128]{1,0:T(1,128)}', space=vmem, size = 0x9000, scoped, tag = 'internal scratch']
  %s0 = inlined_call_operand.vmem [shape: bf16[2,8,128], index: 0, kind: input, shape index: {}]
  %s1 = inlined_call_operand.vmem [shape: f32[1,128], index: 1, kind: input, shape index: {}]
  %s2 = inlined_call_operand.vmem [shape: bf16[128,256], index: 2, kind: input, shape index: {}]
  %s3 = inlined_call_operand.vmem [shape: f32[1,256], index: 3, kind: input, shape index: {}]
  %s4 = inlined_call_operand.vmem [shape: f32[2,8,32], index: 4, kind: input, shape index: {}]
  %s5 = inlined_call_operand.vmem [shape: f32[2,8,32], index: 5, kind: input, shape index: {}]
  %s6 = inlined_call_operand.vmem [shape: bf16[2,8,256], index: 6, kind: output, shape index: {}]
  %s7 = sld [smem:[#allocation0]]
  $region57: #{qwen2_forward.10} parent=0
    _
  %s9 = ssub.s32 1, %s7
  %s10 = scalar_select 0, %s9, %s7
  loop: start=0, step=1, limit=4
  $region2: #{qwen2_forward.10} parent=0 // loop_pre_header
    _
  $region3: #{qwen2_forward.10} parent=0 // loop_header
    %s12 = sphi 0, %s16
    %p13 = scmp.ge.s32.totalorder %s12, 4
    %s22 = sphi 0, %s24
    %s25 = sphi 0, %s22
    %s26 = sphi 0, %s25
    %s42 = sphi 0, %s26
    %s46 = sphi 0, %s46
    %s48 = sphi 0, %s46
    %s49 = sphi 0, %s48
    %s63 = sphi 0, %s49
    %s67 = sphi 0, %s67
    %s69 = sphi 0, %s67
    %s70 = sphi 0, %s69
    %s84 = sphi 0, %s70
    %s88 = sphi 0, %s88
    %s90 = sphi 0, %s88
    %s91 = sphi 0, %s90
    %s105 = sphi 0, %s91
    %s111 = sphi 0, %s113
    %s114 = sphi 0, %s111
    %s115 = sphi 0, %s114
    %s131 = sphi 0, %s115
    %s137 = sphi 0, %s139
    %s140 = sphi 0, %s137
    %s141 = sphi 0, %s140
    %s157 = sphi 0, %s141
    %s163 = sphi 0, %s165
    %s166 = sphi 0, %s163
    %s167 = sphi 0, %s166
    %s183 = sphi 0, %s167
  $region4: #{qwen2_forward.10} parent=0 // loop_header_branch
    %15 = sbr.rel (%p13) target = $region8
  $region5: #{qwen2_forward.10} parent=0 // loop_body
    %s17 = ssub.s32 %s12, 1
    %s18 = ssub.s32 %s12, 2
    %s19 = sadd.s32 %s12, 1
    %s20 = ssub.s32 %s12, %s19
    %p21 = scmp.eq.s32.totalorder %s20, 0
    %s23 = sadd.s32 %s22, 1
    %s24 = scalar_select %p21, %s22, %s23
    %p27 = pneg %p21
    %p28 = scmp.eq.s32.totalorder %s12, 1
    %p29 = por %p27, %p28
    %p30 = scmp.ne.s32.totalorder %s22, %s25
    %p31 = scmp.eq.s32.totalorder %s12, 0
    %p32 = por %p30, %p31
    %p33 = scmp.ne.s32.totalorder %s22, %s25
    %p34 = scmp.eq.s32.totalorder %s17, 1
    %p35 = por %p33, %p34
    %p36 = scmp.ne.s32.totalorder %s25, %s26
    %p37 = scmp.eq.s32.totalorder %s17, 0
    %p38 = por %p36, %p37
    %p39 = scmp.ne.s32.totalorder %s25, %s26
    %p40 = scmp.eq.s32.totalorder %s18, 1
    %p41 = por %p39, %p40
    %p43 = scmp.ne.s32.totalorder %s26, %s42
    %p44 = scmp.eq.s32.totalorder %s18, 0
    %p45 = por %p43, %p44
    %s47 = sadd.s32 %s46, 1
    %p50 = scmp.eq.s32.totalorder %s12, 1
    %p51 = scmp.ne.s32.totalorder %s46, %s48
    %p52 = scmp.eq.s32.totalorder %s12, 0
    %p53 = por %p51, %p52
    %p54 = scmp.ne.s32.totalorder %s46, %s48
    %p55 = scmp.eq.s32.totalorder %s17, 1
    %p56 = por %p54, %p55
    %p57 = scmp.ne.s32.totalorder %s48, %s49
    %p58 = scmp.eq.s32.totalorder %s17, 0
    %p59 = por %p57, %p58
    %p60 = scmp.ne.s32.totalorder %s48, %s49
    %p61 = scmp.eq.s32.totalorder %s18, 1
    %p62 = por %p60, %p61
    %p64 = scmp.ne.s32.totalorder %s49, %s63
    %p65 = scmp.eq.s32.totalorder %s18, 0
    %p66 = por %p64, %p65
    %s68 = sadd.s32 %s67, 1
    %p71 = scmp.eq.s32.totalorder %s12, 1
    %p72 = scmp.ne.s32.totalorder %s67, %s69
    %p73 = scmp.eq.s32.totalorder %s12, 0
    %p74 = por %p72, %p73
    %p75 = scmp.ne.s32.totalorder %s67, %s69
    %p76 = scmp.eq.s32.totalorder %s17, 1
    %p77 = por %p75, %p76
    %p78 = scmp.ne.s32.totalorder %s69, %s70
    %p79 = scmp.eq.s32.totalorder %s17, 0
    %p80 = por %p78, %p79
    %p81 = scmp.ne.s32.totalorder %s69, %s70
    %p82 = scmp.eq.s32.totalorder %s18, 1
    %p83 = por %p81, %p82
    %p85 = scmp.ne.s32.totalorder %s70, %s84
    %p86 = scmp.eq.s32.totalorder %s18, 0
    %p87 = por %p85, %p86
    %s89 = sadd.s32 %s88, 1
    %p92 = scmp.eq.s32.totalorder %s12, 1
    %p93 = scmp.ne.s32.totalorder %s88, %s90
    %p94 = scmp.eq.s32.totalorder %s12, 0
    %p95 = por %p93, %p94
    %p96 = scmp.ne.s32.totalorder %s88, %s90
    %p97 = scmp.eq.s32.totalorder %s17, 1
    %p98 = por %p96, %p97
    %p99 = scmp.ne.s32.totalorder %s90, %s91
    %p100 = scmp.eq.s32.totalorder %s17, 0
    %p101 = por %p99, %p100
    %p102 = scmp.ne.s32.totalorder %s90, %s91
    %p103 = scmp.eq.s32.totalorder %s18, 1
    %p104 = por %p102, %p103
    %p106 = scmp.ne.s32.totalorder %s91, %s105
    %p107 = scmp.eq.s32.totalorder %s18, 0
    %p108 = por %p106, %p107
    %s109 = ssub.s32 %s12, %s19
    %p110 = scmp.eq.s32.totalorder %s109, 0
    %s112 = sadd.s32 %s111, 1
    %s113 = scalar_select %p110, %s111, %s112
    %p116 = pneg %p110
    %p117 = scmp.eq.s32.totalorder %s12, 1
    %p118 = por %p116, %p117
    %p119 = scmp.ne.s32.totalorder %s111, %s114
    %p120 = scmp.eq.s32.totalorder %s12, 0
    %p121 = por %p119, %p120
    %p122 = scmp.ne.s32.totalorder %s111, %s114
    %p123 = scmp.eq.s32.totalorder %s17, 1
    %p124 = por %p122, %p123
    %p125 = scmp.ne.s32.totalorder %s114, %s115
    %p126 = scmp.eq.s32.totalorder %s17, 0
    %p127 = por %p125, %p126
    %p128 = scmp.ne.s32.totalorder %s114, %s115
    %p129 = scmp.eq.s32.totalorder %s18, 1
    %p130 = por %p128, %p129
    %p132 = scmp.ne.s32.totalorder %s115, %s131
    %p133 = scmp.eq.s32.totalorder %s18, 0
    %p134 = por %p132, %p133
    %s135 = ssub.s32 %s12, %s19
    %p136 = scmp.eq.s32.totalorder %s135, 0
    %s138 = sadd.s32 %s137, 1
    %s139 = scalar_select %p136, %s137, %s138
    %p142 = pneg %p136
    %p143 = scmp.eq.s32.totalorder %s12, 1
    %p144 = por %p142, %p143
    %p145 = scmp.ne.s32.totalorder %s137, %s140
    %p146 = scmp.eq.s32.totalorder %s12, 0
    %p147 = por %p145, %p146
    %p148 = scmp.ne.s32.totalorder %s137, %s140
    %p149 = scmp.eq.s32.totalorder %s17, 1
    %p150 = por %p148, %p149
    %p151 = scmp.ne.s32.totalorder %s140, %s141
    %p152 = scmp.eq.s32.totalorder %s17, 0
    %p153 = por %p151, %p152
    %p154 = scmp.ne.s32.totalorder %s140, %s141
    %p155 = scmp.eq.s32.totalorder %s18, 1
    %p156 = por %p154, %p155
    %p158 = scmp.ne.s32.totalorder %s141, %s157
    %p159 = scmp.eq.s32.totalorder %s18, 0
    %p160 = por %p158, %p159
    %s161 = ssub.s32 %s12, %s19
    %p162 = scmp.eq.s32.totalorder %s161, 0
    %s164 = sadd.s32 %s163, 1
    %s165 = scalar_select %p162, %s163, %s164
    %p168 = pneg %p162
    %p169 = scmp.eq.s32.totalorder %s12, 1
    %p170 = por %p168, %p169
    %p171 = scmp.ne.s32.totalorder %s163, %s166
    %p172 = scmp.eq.s32.totalorder %s12, 0
    %p173 = por %p171, %p172
    %p174 = scmp.ne.s32.totalorder %s163, %s166
    %p175 = scmp.eq.s32.totalorder %s17, 1
    %p176 = por %p174, %p175
    %p177 = scmp.ne.s32.totalorder %s166, %s167
    %p178 = scmp.eq.s32.totalorder %s17, 0
    %p179 = por %p177, %p178
    %p180 = scmp.ne.s32.totalorder %s166, %s167
    %p181 = scmp.eq.s32.totalorder %s18, 1
    %p182 = por %p180, %p181
    %p184 = scmp.ne.s32.totalorder %s167, %s183
    %p185 = scmp.eq.s32.totalorder %s18, 0
    %p186 = por %p184, %p185
    %p187 = scmp.le.s32.totalorder 1, %s12
    %p188 = scmp.lt.s32.totalorder %s12, 3
    %p189 = pnand %p187, %p188
    %p190 = pneg %p189
    // Predicated region
    $region9: #{qwen2_forward.10} parent=5 // pred_check
      _
    $region10: #{qwen2_forward.10} parent=5 // pred_check_branch
      %192 = sbr.rel (%p189) target = $region12
    $region11: #{qwen2_forward.10} parent=5 // pred_region
      %s193 = ssub.s32 %s12, 1
      // Predicated region
      $region13: #{qwen2_forward.10} parent=11 // pred_check
        %p194 = pneg %p59
      $region14: #{qwen2_forward.10} parent=11 // pred_check_branch
        %196 = sbr.rel (%p194) target = $region16
      $region15: #{qwen2_forward.10} parent=11 // pred_region
        _
      $region16: #{qwen2_forward.10} parent=11 // pred_fallthru
        _
      // Predicated region
      $region17: #{qwen2_forward.10} parent=11 // pred_check
        %p197 = pneg %p80
      $region18: #{qwen2_forward.10} parent=11 // pred_check_branch
        %199 = sbr.rel (%p197) target = $region20
      $region19: #{qwen2_forward.10} parent=11 // pred_region
        _
      $region20: #{qwen2_forward.10} parent=11 // pred_fallthru
        _
      // Predicated region
      $region21: #{qwen2_forward.10} parent=11 // pred_check
        %p200 = pneg %p101
      $region22: #{qwen2_forward.10} parent=11 // pred_check_branch
        %202 = sbr.rel (%p200) target = $region24
      $region23: #{qwen2_forward.10} parent=11 // pred_region
        _
      $region24: #{qwen2_forward.10} parent=11 // pred_fallthru
        _
    $region12: #{qwen2_forward.10} parent=5 // pred_fallthru
      _
    %p203 = scmp.lt.s32.totalorder %s12, 2
    // Predicated region
    $region25: #{qwen2_forward.10} parent=5 // pred_check
      %p204 = pneg %p203
    $region26: #{qwen2_forward.10} parent=5 // pred_check_branch
      %206 = sbr.rel (%p204) target = $region28
    $region27: #{qwen2_forward.10} parent=5 // pred_region
      // Predicated region
      $region29: #{qwen2_forward.10} parent=27 // pred_check
        %p207 = pneg %p32
      $region30: #{qwen2_forward.10} parent=27 // pred_check_branch
        %209 = sbr.rel (%p207) target = $region32
      $region31: #{qwen2_forward.10} parent=27 // pred_region
        %p210 = scmp.lt.s32.totalorder %s12, 1
        %s211 = scalar_select %p210, %s12, 1
        %s212 = smul.addr %s211, 4
        %s213 = scalar_lea.vmem %s0, %s212
      $region32: #{qwen2_forward.10} parent=27 // pred_fallthru
        _
      // Predicated region
      $region33: #{qwen2_forward.10} parent=27 // pred_check
        %p214 = pneg %p121
      $region34: #{qwen2_forward.10} parent=27 // pred_check_branch
        %216 = sbr.rel (%p214) target = $region36
      $region35: #{qwen2_forward.10} parent=27 // pred_region
        %p217 = scmp.lt.s32.totalorder %s12, 1
        %s218 = scalar_select %p217, %s12, 1
        %s219 = smul.addr %s218, 8
        %s220 = scalar_lea.vmem %s4, %s219
      $region36: #{qwen2_forward.10} parent=27 // pred_fallthru
        _
      // Predicated region
      $region37: #{qwen2_forward.10} parent=27 // pred_check
        %p221 = pneg %p147
      $region38: #{qwen2_forward.10} parent=27 // pred_check_branch
        %223 = sbr.rel (%p221) target = $region40
      $region39: #{qwen2_forward.10} parent=27 // pred_region
        %p224 = scmp.lt.s32.totalorder %s12, 1
        %s225 = scalar_select %p224, %s12, 1
        %s226 = smul.addr %s225, 8
        %s227 = scalar_lea.vmem %s5, %s226
      $region40: #{qwen2_forward.10} parent=27 // pred_fallthru
        _
    $region28: #{qwen2_forward.10} parent=5 // pred_fallthru
      _
    %p228 = scmp.le.s32.totalorder 1, %s12
    %p229 = scmp.lt.s32.totalorder %s12, 3
    %p230 = pnand %p228, %p229
    %p231 = pneg %p230
    // Predicated region
    $region41: #{qwen2_forward.10} parent=5 // pred_check
      _
    $region42: #{qwen2_forward.10} parent=5 // pred_check_branch
      %233 = sbr.rel (%p230) target = $region44
    $region43: #{qwen2_forward.10} parent=5 // pred_region
      %s234 = ssub.s32 %s12, 1
      %p235 = scmp.lt.s32.totalorder %s17, 1
      %s236 = scalar_select %p235, %s17, 1
      %s237 = smul.addr %s236, 4
      %s238 = scalar_lea.vmem %s0, %s237
      %p239 = pneg %p38
      %p240 = pneg %p35
      %p241 = pneg %p59
      %p242 = pneg %p56
      %p243 = pneg %p80
      %p244 = pneg %p77
      %p245 = pneg %p101
      %p246 = pneg %p98
      %p247 = scmp.lt.s32.totalorder %s17, 1
      %s248 = scalar_select %p247, %s17, 1
      %s249 = smul.addr %s248, 8
      %s250 = scalar_lea.vmem %s4, %s249
      %p251 = pneg %p127
      %p252 = pneg %p124
      %p253 = scmp.lt.s32.totalorder %s17, 1
      %s254 = scalar_select %p253, %s17, 1
      %s255 = smul.addr %s254, 8
      %s256 = scalar_lea.vmem %s5, %s255
      %p257 = pneg %p153
      %p258 = pneg %p150
      %p259 = pneg %p179
      %p260 = pneg %p176
      %p261 = scmp.lt.s32.totalorder %s17, 1
      %s262 = scalar_select %p261, %s17, 1
      %s263 = smul.addr %s262, 2
      %s264 = smul.addr %s263, 4
      %s265 = scalar_lea.vmem %s6, %s264
      %p266 = scmp.lt.s32.totalorder %s17, 1
      %s267 = scalar_select %p266, %s17, 1
      %s268 = smul.addr %s267, 4
      %s269 = scalar_lea.vmem %s0, %s268
      %p270 = scmp.lt.s32.totalorder %s17, 1
      %s271 = scalar_select %p270, %s17, 1
      %s272 = smul.addr %s271, 8
      %s273 = scalar_lea.vmem %s4, %s272
      %p274 = scmp.lt.s32.totalorder %s17, 1
      %s275 = scalar_select %p274, %s17, 1
      %s276 = smul.addr %s275, 8
      %s277 = scalar_lea.vmem %s5, %s276
      %p278 = scmp.lt.s32.totalorder %s17, 1
      %s279 = scalar_select %p278, %s17, 1
      %s280 = smul.addr %s279, 2
      %s281 = smul.addr %s280, 4
      %s282 = scalar_lea.vmem %s6, %s281
      %v283 = vld [vmem:[%s269] sm:$0xf]
      %v284 = vunpack.c.l.bf16 %v283
      %v285 = vmul.f32 %v284, %v284
      %286 = vadd.xlane.f32.xlu0 %v285
      %v287 = vpop.xlane.xlu0 %286
      %v288 = vrcp.pop 128.0
      %v289 = vmul.f32 128.0, %v288
      %v290 = vsub.f32 1.0, %v289
      %v291 = vmul.f32 %v288, %v290
      %v292 = vadd.f32 %v288, %v291
      %vm293 = vweird.f32 %v288
      %v294 = vsel %vm293, %v288, %v292
      %v295 = vmul.f32 %v287, %v294
      %v296 = vadd.f32 %v295, 1e-06
      %v297 = vrsqrt.pop %v296
      %v298 = vmul.f32 %v297, %v296
      %v299 = vmul.f32 %v298, %v297
      %v300 = vmul.f32 0.5, %v299
      %v301 = vsub.f32 1.5, %v300
      %v302 = vmul.f32 %v297, %v301
      %vm303 = vweird.f32 %v296
      %vm304 = vweird.f32 %v297
      %vm305 = vmor %vm303, %vm304
      %v306 = vsel %vm305, %v297, %v302
      %v307 = vmul.f32 %v284, %v306
      %v308 = vld [vmem:[%s1] sm:$0x1]
      %v310 = vperm.slane %v308, 0
      %v312 = vmul.f32 %v307, %v310
      %v313 = vpack.c.bf16 %v312, %v312
      %v314 = vld [vmem:[%s2] sm:$0xff]
      %v315 = vld [vmem:[%s2 + $0x8] sm:$0xff]
      %v316 = vld [vmem:[%s2 + $0x10] sm:$0xff]
      %v317 = vld [vmem:[%s2 + $0x18] sm:$0xff]
      %v318 = vld [vmem:[%s2 + $0x20] sm:$0xff]
      %v319 = vld [vmem:[%s2 + $0x28] sm:$0xff]
      %v320 = vld [vmem:[%s2 + $0x30] sm:$0xff]
      %v321 = vld [vmem:[%s2 + $0x38] sm:$0xff]
      %v322 = vld [vmem:[%s2 + $0x40] sm:$0xff]
      %v323 = vld [vmem:[%s2 + $0x48] sm:$0xff]
      %v324 = vld [vmem:[%s2 + $0x50] sm:$0xff]
      %v325 = vld [vmem:[%s2 + $0x58] sm:$0xff]
      %v326 = vld [vmem:[%s2 + $0x60] sm:$0xff]
      %v327 = vld [vmem:[%s2 + $0x68] sm:$0xff]
      %v328 = vld [vmem:[%s2 + $0x70] sm:$0xff]
      %v329 = vld [vmem:[%s2 + $0x78] sm:$0xff]
      %v330 = vld [vmem:[%s3] sm:$0x3]
      %v332 = vperm.slane %v330, 0
      %v333 = vperm.slane %v330, 1
      %v352 = vunpack.c.l.b16 %v314
      %v353 = vunpack.c.h.b16 %v314
      %v354 = vunpack.c.l.b16 %v315
      %v355 = vunpack.c.h.b16 %v315
      %v356 = vunpack.c.l.b16 %v316
      %v357 = vunpack.c.h.b16 %v316
      %v358 = vunpack.c.l.b16 %v317
      %v359 = vunpack.c.h.b16 %v317
      %v360 = vunpack.c.l.b16 %v318
      %v361 = vunpack.c.h.b16 %v318
      %v362 = vunpack.c.l.b16 %v319
      %v363 = vunpack.c.h.b16 %v319
      %v364 = vunpack.c.l.b16 %v320
      %v365 = vunpack.c.h.b16 %v320
      %v366 = vunpack.c.l.b16 %v321
      %v367 = vunpack.c.h.b16 %v321
      %v368 = vunpack.c.l.b16 %v322
      %v369 = vunpack.c.h.b16 %v322
      %v370 = vunpack.c.l.b16 %v323
      %v371 = vunpack.c.h.b16 %v323
      %v372 = vunpack.c.l.b16 %v324
      %v373 = vunpack.c.h.b16 %v324
      %v374 = vunpack.c.l.b16 %v325
      %v375 = vunpack.c.h.b16 %v325
      %v376 = vunpack.c.l.b16 %v326
      %v377 = vunpack.c.h.b16 %v326
      %v378 = vunpack.c.l.b16 %v327
      %v379 = vunpack.c.h.b16 %v327
      %v380 = vunpack.c.l.b16 %v328
      %v381 = vunpack.c.h.b16 %v328
      %v382 = vunpack.c.l.b16 %v329
      %v383 = vunpack.c.h.b16 %v329
      %v384 = vpack.c.b16 %v354, %v352
      %v385 = vpack.c.b16 %v355, %v353
      %v386 = vpack.c.b16 %v358, %v356
      %v387 = vpack.c.b16 %v359, %v357
      %v388 = vpack.c.b16 %v362, %v360
      %v389 = vpack.c.b16 %v363, %v361
      %v390 = vpack.c.b16 %v366, %v364
      %v391 = vpack.c.b16 %v367, %v365
      %v392 = vpack.c.b16 %v370, %v368
      %v393 = vpack.c.b16 %v371, %v369
      %v394 = vpack.c.b16 %v374, %v372
      %v395 = vpack.c.b16 %v375, %v373
      %v396 = vpack.c.b16 %v378, %v376
      %v397 = vpack.c.b16 %v379, %v377
      %v398 = vpack.c.b16 %v382, %v380
      %v399 = vpack.c.b16 %v383, %v381
      %416 = vmatpush.bf16.msra.mxu0 %v398
      %417 = vmatpush.bf16.msra.mxu0 %v396
      %418 = vmatpush.bf16.msra.mxu0 %v394
      %419 = vmatpush.bf16.msra.mxu0 %v392
      %420 = vmatpush.bf16.msra.mxu0 %v390
      %421 = vmatpush.bf16.msra.mxu0 %v388
      %422 = vmatpush.bf16.msra.mxu0 %v386
      %423 = vmatpush.bf16.msra.mxu0 %v384
      %424 = vmatmul.bf16.gmra.mxu0 %v313
      %v425 = vpop.f32.mrf.mxu0
      %v426 = vadd.f32 %v332, %v425
      %v427 = vpop.f32.mrf.mxu0
      %428 = vdwg.mxu0
      %429 = vmatpush.bf16.msra.mxu0 %v399
      %430 = vmatpush.bf16.msra.mxu0 %v397
      %431 = vmatpush.bf16.msra.mxu0 %v395
      %432 = vmatpush.bf16.msra.mxu0 %v393
      %433 = vmatpush.bf16.msra.mxu0 %v391
      %434 = vmatpush.bf16.msra.mxu0 %v389
      %435 = vmatpush.bf16.msra.mxu0 %v387
      %436 = vmatpush.bf16.msra.mxu0 %v385
      %437 = vmatmul.bf16.gmra.mxu0 %v313
      %v438 = vpop.f32.mrf.mxu0
      %v439 = vadd.f32 %v333, %v438
      %v440 = vpop.f32.mrf.mxu0
      %441 = vdwg.mxu0
      %444 = vrot.lane.b32.xlu0 %v426, 112
      %v445 = vpop.permute.xlu0 %444
      %446 = vrot.lane.b32.xlu0 %v439, 112
      %v447 = vpop.permute.xlu0 %446
      %vm448 = vcmask 916480
      %v449 = vsel %vm448, %v445, %v447
      %v453 = vsel %vm448, %v447, %v445
      %454 = vrot.lane.b32.xlu0 %v439, 16
      %v455 = vpop.permute.xlu0 %454
      %457 = vrot.lane.b32.xlu0 %v426, 16
      %v458 = vpop.permute.xlu0 %457
      %vm459 = vcmask 130048
      %v460 = vsel %vm459, %v458, %v455
      %v463 = vsel %vm459, %v455, %v458
      %v464 = vlaneseq
      %v465 = vand.u32 %v464, 127
      %v466 = vadd.s32 %v465, 128
      %vm467 = vcmp.lt.s32.totalorder %v465, 0
      %v468 = vsub.s32 0, %v465
      %v469 = vsel %vm467, %v468, %v465
      %v470 = vshrl.u32 %v469, 5
      %v471 = vand.u32 %v469, 31
      %v472 = vsub.s32 0, %v471
      %v473 = vsel %vm467, %v472, %v471
      %vm474 = vcmp.lt.s32.totalorder %v466, 0
      %v475 = vsub.s32 0, %v466
      %v476 = vsel %vm474, %v475, %v466
      %v477 = vshrl.u32 %v476, 5
      %v478 = vand.u32 %v476, 31
      %v479 = vsub.s32 0, %v478
      %v480 = vsel %vm474, %v479, %v478
      %vm481 = vcmp.ne.s32.totalorder %v473, 0
      %vm482 = vcmp.ne.s32.totalorder %v480, 0
      %vm483 = vcmp.lt.s32.totalorder %v473, 0
      %vm484 = vcmp.lt.s32.totalorder %v480, 0
      %vm485 = vmand %vm483, %vm481
      %vm486 = vmand %vm484, %vm482
      %v487 = vadd.s32 %v473, 32
      %v488 = vadd.s32 %v480, 32
      %v489 = vsel %vm485, %v487, %v473
      %v490 = vsel %vm486, %v488, %v480
      %vm491 = vcmp.lt.s32.totalorder %v489, 16
      %vm492 = vcmp.lt.s32.totalorder %v490, 16
      %v493 = vsub.f32 0.0, %v449
      %v494 = vsub.f32 0.0, %v453
      %v495 = vsel %vm491, %v493, %v463
      %v496 = vsel %vm492, %v494, %v460
      %v497 = vld [vmem:[%s273] sm:$0xff]
      %499 = vrot.lane.b32.xlu0 %v497, 32
      %v500 = vpop.permute.xlu0 %499
      %502 = vrot.lane.b32.xlu0 %v497, 64
      %v503 = vpop.permute.xlu0 %502
      %505 = vrot.lane.b32.xlu0 %v497, 96
      %v506 = vpop.permute.xlu0 %505
      %vm508 = vcmask 261120
      %v509 = vsel %vm508, %v497, %v500
      %vm510 = vcmask 523264
      %v511 = vsel %vm510, %v509, %v503
      %vm512 = vcmask 785408
      %v513 = vsel %vm512, %v511, %v506
      %v514 = vld [vmem:[%s277] sm:$0xff]
      %516 = vrot.lane.b32.xlu0 %v514, 32
      %v517 = vpop.permute.xlu0 %516
      %519 = vrot.lane.b32.xlu0 %v514, 64
      %v520 = vpop.permute.xlu0 %519
      %522 = vrot.lane.b32.xlu0 %v514, 96
      %v523 = vpop.permute.xlu0 %522
      %v525 = vsel %vm508, %v514, %v517
      %v526 = vsel %vm510, %v525, %v520
      %v527 = vsel %vm512, %v526, %v523
      %v528 = vmul.f32 %v426, %v513
      %v529 = vmul.f32 %v439, %v513
      %v530 = vmul.f32 %v495, %v527
      %v531 = vmul.f32 %v496, %v527
      %v532 = vadd.f32 %v528, %v530
      %v533 = vadd.f32 %v529, %v531
      %vm534 = vcmp.lt.s32.totalorder %v465, 192
      %vm535 = vcmp.lt.s32.totalorder %v466, 192
      %v536 = vsel %vm534, %v532, %v426
      %v537 = vsel %vm535, %v533, %v439
      %v538 = vpack.c.bf16 %v537, %v536
      %539 = vst [vmem:[%s282] sm:$0xff] %v538
      %p540 = scmp.lt.s32.totalorder %s17, 1
      %s541 = scalar_select %p540, %s17, 1
      %s542 = smul.addr %s541, 2
      %s543 = smul.addr %s542, 4
      %s544 = scalar_lea.vmem %s6, %s543
      // Predicated region
      $region45: #{qwen2_forward.10} parent=43 // pred_check
        %p545 = pneg %p176
      $region46: #{qwen2_forward.10} parent=43 // pred_check_branch
        %547 = sbr.rel (%p545) target = $region48
      $region47: #{qwen2_forward.10} parent=43 // pred_region
        _
      $region48: #{qwen2_forward.10} parent=43 // pred_fallthru
        _
    $region44: #{qwen2_forward.10} parent=5 // pred_fallthru
      _
    %p548 = scmp.le.s32.totalorder 2, %s12
    // Predicated region
    $region49: #{qwen2_forward.10} parent=5 // pred_check
      %p549 = pneg %p548
    $region50: #{qwen2_forward.10} parent=5 // pred_check_branch
      %551 = sbr.rel (%p549) target = $region52
    $region51: #{qwen2_forward.10} parent=5 // pred_region
      %s552 = ssub.s32 %s12, 2
      // Predicated region
      $region53: #{qwen2_forward.10} parent=51 // pred_check
        %p553 = pneg %p182
      $region54: #{qwen2_forward.10} parent=51 // pred_check_branch
        %555 = sbr.rel (%p553) target = $region56
      $region55: #{qwen2_forward.10} parent=51 // pred_region
        %p556 = scmp.lt.s32.totalorder %s18, 1
        %s557 = scalar_select %p556, %s18, 1
        %s558 = smul.addr %s557, 2
        %s559 = smul.addr %s558, 4
        %s560 = scalar_lea.vmem %s6, %s559
      $region56: #{qwen2_forward.10} parent=51 // pred_fallthru
        _
    $region52: #{qwen2_forward.10} parent=5 // pred_fallthru
      _
  $region6: #{qwen2_forward.10} parent=0 // loop_footer
    %s16 = sadd.s32 1, %s12
  $region7: #{qwen2_forward.10} parent=0 // loop_footer_branch
    %11 = sbr.rel target = $region3
  $region8: #{qwen2_forward.10} parent=0 // loop_exit
    _

// kernel: qwen2_forward.13
$region0: #{qwen2_forward.13}
  #allocation0 [shape = 'u32[]', space=smem, size = 0x4, offset = 0x4, fixed_abs, tag = 'smem constant byte address 0x4 - core index']
  #allocation1 [shape = 'u32[72,128]{1,0:T(1,128)}', space=vmem, size = 0x9000, scoped, tag = 'internal scratch']
  %s0 = inlined_call_operand.vmem [shape: bf16[2,8,128], index: 0, kind: input, shape index: {}]
  %s1 = inlined_call_operand.vmem [shape: f32[1,128], index: 1, kind: input, shape index: {}]
  %s2 = inlined_call_operand.hbm [shape: bf16[128,128], index: 2, kind: input, shape index: {}]
  %s3 = inlined_call_operand.hbm [shape: f32[2,8,128], index: 3, kind: output, shape index: {}]
  %s4 = sld [smem:[#allocation0]]
  $region49: #{qwen2_forward.13} parent=0
    _
  %s6 = ssub.s32 1, %s4
  %s7 = scalar_select 0, %s6, %s4
  $region1: #{qwen2_forward.13} parent=0
    #allocation2 [shape = 'u8[32768]{0}', space=vmem, size = 0x8000, scoped, tag = 'input window, operand 2, single buffered']
    #allocation3 [shape = 's32[2]{0}', space=sflag, size = 0x8, scoped, tag = 'scoped memory for qwen2_forward.13']
    #allocation4 [shape = 's32[2]{0}', space=sflag, size = 0x8, scoped, tag = 'scoped memory for qwen2_forward.13']
    #allocation5 [shape = 'u8[8192]{0}', space=vmem, size = 0x2000, scoped, tag = 'output window, operand 0']
    %8 = vsyncpa [#allocation3], 0
    %9 = vsyncpa [#allocation4], 0
    %s10 = scalar_lea.sflag [#allocation4], 1
    %11 = vsyncpa %s10, 0
    loop: start=0, step=1, limit=4
    $region2: #{qwen2_forward.13} parent=1 // loop_pre_header
      _
    $region3: #{qwen2_forward.13} parent=1 // loop_header
      %s13 = sphi 0, %s17
      %p14 = scmp.ge.s32.totalorder %s13, 4
      %s20 = sphi 0, %s32
      %s21 = sphi 0, %s28
      %s22 = sphi 0, %s20
      %s23 = sphi 0, %s21
      %s24 = sphi 0, %s22
      %s25 = sphi 0, %s23
      %s35 = sphi 0, %s37
      %s38 = sphi 0, %s35
      %s39 = sphi 0, %s38
      %s55 = sphi 0, %s39
      %s59 = sphi 0, %s59
      %s61 = sphi 0, %s59
      %s62 = sphi 0, %s61
      %s76 = sphi 0, %s62
      %s82 = sphi 0, %s84
      %s85 = sphi 0, %s82
      %s86 = sphi 0, %s85
      %s102 = sphi 0, %s86
      %s110 = sphi 0, %s112
      %s113 = sphi 0, %s110
      %s114 = sphi 0, %s113
      %s130 = sphi 0, %s114
    $region4: #{qwen2_forward.13} parent=1 // loop_header_branch
      %16 = sbr.rel (%p14) target = $region8
    $region5: #{qwen2_forward.13} parent=1 // loop_body
      %s18 = ssub.s32 %s13, 1
      %s19 = ssub.s32 %s13, 2
      %s26 = sadd.s32 1, %s21
      %p27 = scmp.ge.s32.totalorder %s26, 1
      %s28 = scalar_select %p27, 0, %s26
      %s29 = sadd.s32 1, %s20
      %s30 = scalar_select %p27, %s29, %s20
      %p31 = scmp.ge.s32.totalorder %s30, 2
      %s32 = scalar_select %p31, 0, %s30
      %s33 = ssub.s32 %s20, %s32
      %p34 = scmp.eq.s32.totalorder %s33, 0
      %s36 = sadd.s32 %s35, 1
      %s37 = scalar_select %p34, %s35, %s36
      %p40 = pneg %p34
      %p41 = scmp.eq.s32.totalorder %s13, 1
      %p42 = por %p40, %p41
      %p43 = scmp.ne.s32.totalorder %s35, %s38
      %p44 = scmp.eq.s32.totalorder %s13, 0
      %p45 = por %p43, %p44
      %p46 = scmp.ne.s32.totalorder %s35, %s38
      %p47 = scmp.eq.s32.totalorder %s18, 1
      %p48 = por %p46, %p47
      %p49 = scmp.ne.s32.totalorder %s38, %s39
      %p50 = scmp.eq.s32.totalorder %s18, 0
      %p51 = por %p49, %p50
      %p52 = scmp.ne.s32.totalorder %s38, %s39
      %p53 = scmp.eq.s32.totalorder %s19, 1
      %p54 = por %p52, %p53
      %p56 = scmp.ne.s32.totalorder %s39, %s55
      %p57 = scmp.eq.s32.totalorder %s19, 0
      %p58 = por %p56, %p57
      %s60 = sadd.s32 %s59, 1
      %p63 = scmp.eq.s32.totalorder %s13, 1
      %p64 = scmp.ne.s32.totalorder %s59, %s61
      %p65 = scmp.eq.s32.totalorder %s13, 0
      %p66 = por %p64, %p65
      %p67 = scmp.ne.s32.totalorder %s59, %s61
      %p68 = scmp.eq.s32.totalorder %s18, 1
      %p69 = por %p67, %p68
      %p70 = scmp.ne.s32.totalorder %s61, %s62
      %p71 = scmp.eq.s32.totalorder %s18, 0
      %p72 = por %p70, %p71
      %p73 = scmp.ne.s32.totalorder %s61, %s62
      %p74 = scmp.eq.s32.totalorder %s19, 1
      %p75 = por %p73, %p74
      %p77 = scmp.ne.s32.totalorder %s62, %s76
      %p78 = scmp.eq.s32.totalorder %s19, 0
      %p79 = por %p77, %p78
      %s80 = ssub.s32 %s21, %s28
      %p81 = scmp.eq.s32.totalorder %s80, 0
      %s83 = sadd.s32 %s82, 1
      %s84 = scalar_select %p81, %s82, %s83
      %p87 = pneg %p81
      %p88 = scmp.eq.s32.totalorder %s13, 1
      %p89 = por %p87, %p88
      %p90 = scmp.ne.s32.totalorder %s82, %s85
      %p91 = scmp.eq.s32.totalorder %s13, 0
      %p92 = por %p90, %p91
      %p93 = scmp.ne.s32.totalorder %s82, %s85
      %p94 = scmp.eq.s32.totalorder %s18, 1
      %p95 = por %p93, %p94
      %p96 = scmp.ne.s32.totalorder %s85, %s86
      %p97 = scmp.eq.s32.totalorder %s18, 0
      %p98 = por %p96, %p97
      %p99 = scmp.ne.s32.totalorder %s85, %s86
      %p100 = scmp.eq.s32.totalorder %s19, 1
      %p101 = por %p99, %p100
      %p103 = scmp.ne.s32.totalorder %s86, %s102
      %p104 = scmp.eq.s32.totalorder %s19, 0
      %p105 = por %p103, %p104
      %s106 = ssub.s32 %s20, %s32
      %s107 = ssub.s32 %s21, %s28
      %s108 = sor.u32 %s106, %s107
      %p109 = scmp.eq.s32.totalorder %s108, 0
      %s111 = sadd.s32 %s110, 1
      %s112 = scalar_select %p109, %s110, %s111
      %p115 = pneg %p109
      %p116 = scmp.eq.s32.totalorder %s13, 1
      %p117 = por %p115, %p116
      %p118 = scmp.ne.s32.totalorder %s110, %s113
      %p119 = scmp.eq.s32.totalorder %s13, 0
      %p120 = por %p118, %p119
      %p121 = scmp.ne.s32.totalorder %s110, %s113
      %p122 = scmp.eq.s32.totalorder %s18, 1
      %p123 = por %p121, %p122
      %p124 = scmp.ne.s32.totalorder %s113, %s114
      %p125 = scmp.eq.s32.totalorder %s18, 0
      %p126 = por %p124, %p125
      %p127 = scmp.ne.s32.totalorder %s113, %s114
      %p128 = scmp.eq.s32.totalorder %s19, 1
      %p129 = por %p127, %p128
      %p131 = scmp.ne.s32.totalorder %s114, %s130
      %p132 = scmp.eq.s32.totalorder %s19, 0
      %p133 = por %p131, %p132
      %p134 = scmp.le.s32.totalorder 1, %s13
      %p135 = scmp.lt.s32.totalorder %s13, 3
      %p136 = pnand %p134, %p135
      %p137 = pneg %p136
      // Predicated region
      $region9: #{qwen2_forward.13} parent=5 // pred_check
        _
      $region10: #{qwen2_forward.13} parent=5 // pred_check_branch
        %139 = sbr.rel (%p136) target = $region12
      $region11: #{qwen2_forward.13} parent=5 // pred_region
        %s140 = ssub.s32 %s13, 1
        // Predicated region
        $region13: #{qwen2_forward.13} parent=11 // pred_check
          %p141 = pneg %p72
        $region14: #{qwen2_forward.13} parent=11 // pred_check_branch
          %143 = sbr.rel (%p141) target = $region16
        $region15: #{qwen2_forward.13} parent=11 // pred_region
          _
        $region16: #{qwen2_forward.13} parent=11 // pred_fallthru
          _
        // Predicated region
        $region17: #{qwen2_forward.13} parent=11 // pred_check
          %p144 = pneg %p98
        $region18: #{qwen2_forward.13} parent=11 // pred_check_branch
          %146 = sbr.rel (%p144) target = $region20
        $region19: #{qwen2_forward.13} parent=11 // pred_region
          %148 = vsyncadd [#allocation3], 0
          %s149 = smul.addr %s23, 4
          %s150 = scalar_lea.hbm %s2, %s149
          %s151 = sshll.u32 %s150, 4
          %s152 = int_to_ptr.hbm [resolvable:$true] %s151
          %s153 = sshll.u32 [#allocation2], 4
          %s154 = int_to_ptr.vmem [resolvable:$true] %s153
          %159 = dma.hbm_to_vmem [thread:$0]  %s152, 1024, %s154, [#allocation3], 64, 64, 4
        $region20: #{qwen2_forward.13} parent=11 // pred_fallthru
          _
      $region12: #{qwen2_forward.13} parent=5 // pred_fallthru
        _
      %p160 = scmp.lt.s32.totalorder %s13, 2
      // Predicated region
      $region21: #{qwen2_forward.13} parent=5 // pred_check
        %p161 = pneg %p160
      $region22: #{qwen2_forward.13} parent=5 // pred_check_branch
        %163 = sbr.rel (%p161) target = $region24
      $region23: #{qwen2_forward.13} parent=5 // pred_region
        // Predicated region
        $region25: #{qwen2_forward.13} parent=23 // pred_check
          %p164 = pneg %p45
        $region26: #{qwen2_forward.13} parent=23 // pred_check_branch
          %166 = sbr.rel (%p164) target = $region28
        $region27: #{qwen2_forward.13} parent=23 // pred_region
          %p167 = scmp.lt.s32.totalorder %s20, 1
          %s168 = scalar_select %p167, %s20, 1
          %s169 = smul.addr %s168, 4
          %s170 = scalar_lea.vmem %s0, %s169
        $region28: #{qwen2_forward.13} parent=23 // pred_fallthru
          _
      $region24: #{qwen2_forward.13} parent=5 // pred_fallthru
        _
      %p171 = scmp.le.s32.totalorder 1, %s13
      %p172 = scmp.lt.s32.totalorder %s13, 3
      %p173 = pnand %p171, %p172
      %p174 = pneg %p173
      // Predicated region
      $region29: #{qwen2_forward.13} parent=5 // pred_check
        _
      $region30: #{qwen2_forward.13} parent=5 // pred_check_branch
        %176 = sbr.rel (%p173) target = $region32
      $region31: #{qwen2_forward.13} parent=5 // pred_region
        %s177 = ssub.s32 %s13, 1
        // Predicated region
        $region33: #{qwen2_forward.13} parent=31 // pred_check
          %p178 = pneg %p98
        $region34: #{qwen2_forward.13} parent=31 // pred_check_branch
          %180 = sbr.rel (%p178) target = $region36
        $region35: #{qwen2_forward.13} parent=31 // pred_region
          %182 = dma.done [#allocation3], 1024
        $region36: #{qwen2_forward.13} parent=31 // pred_fallthru
          _
        %p183 = scmp.lt.s32.totalorder %s22, 1
        %s184 = scalar_select %p183, %s22, 1
        %s185 = smul.addr %s184, 4
        %s186 = scalar_lea.vmem %s0, %s185
        %p187 = pneg %p51
        %p188 = pneg %p48
        %p189 = pneg %p72
        %p190 = pneg %p69
        %p191 = pneg %p98
        %p192 = pneg %p95
        %p193 = pneg %p126
        %p194 = pneg %p123
        %s195 = sand.u32 %s113, 1
        %s196 = scalar_lea.sflag [#allocation4], %s195
        %s197 = sand.u32 %s113, 1
        %s198 = smul.addr %s197, 8
        %s199 = scalar_lea.vmem [#allocation5], %s198
        %p200 = scmp.lt.s32.totalorder %s22, 1
        %s201 = scalar_select %p200, %s22, 1
        %s202 = smul.addr %s201, 4
        %s203 = scalar_lea.vmem %s0, %s202
        %v204 = vld [vmem:[%s203] sm:$0xf]
        %v205 = vunpack.c.l.bf16 %v204
        %v206 = vmul.f32 %v205, %v205
        %207 = vadd.xlane.f32.xlu0 %v206
        %v208 = vpop.xlane.xlu0 %207
        %v209 = vrcp.pop 128.0
        %v210 = vmul.f32 128.0, %v209
        %v211 = vsub.f32 1.0, %v210
        %v212 = vmul.f32 %v209, %v211
        %v213 = vadd.f32 %v209, %v212
        %vm214 = vweird.f32 %v209
        %v215 = vsel %vm214, %v209, %v213
        %v216 = vmul.f32 %v208, %v215
        %v217 = vadd.f32 %v216, 1e-06
        %v218 = vrsqrt.pop %v217
        %v219 = vmul.f32 %v218, %v217
        %v220 = vmul.f32 %v219, %v218
        %v221 = vmul.f32 0.5, %v220
        %v222 = vsub.f32 1.5, %v221
        %v223 = vmul.f32 %v218, %v222
        %vm224 = vweird.f32 %v217
        %vm225 = vweird.f32 %v218
        %vm226 = vmor %vm224, %vm225
        %v227 = vsel %vm226, %v218, %v223
        %v228 = vmul.f32 %v205, %v227
        %v229 = vld [vmem:[%s1] sm:$0x1]
        %v231 = vperm.slane %v229, 0
        %v233 = vmul.f32 %v228, %v231
        %v234 = vpack.c.bf16 %v233, %v233
        %v235 = vld [vmem:[#allocation2] sm:$0xf]
        %v236 = vld [vmem:[#allocation2 + $0x4] sm:$0xf]
        %v237 = vld [vmem:[#allocation2 + $0x8] sm:$0xf]
        %v238 = vld [vmem:[#allocation2 + $0xc] sm:$0xf]
        %v239 = vld [vmem:[#allocation2 + $0x10] sm:$0xf]
        %v240 = vld [vmem:[#allocation2 + $0x14] sm:$0xf]
        %v241 = vld [vmem:[#allocation2 + $0x18] sm:$0xf]
        %v242 = vld [vmem:[#allocation2 + $0x1c] sm:$0xf]
        %v243 = vld [vmem:[#allocation2 + $0x20] sm:$0xf]
        %v244 = vld [vmem:[#allocation2 + $0x24] sm:$0xf]
        %v245 = vld [vmem:[#allocation2 + $0x28] sm:$0xf]
        %v246 = vld [vmem:[#allocation2 + $0x2c] sm:$0xf]
        %v247 = vld [vmem:[#allocation2 + $0x30] sm:$0xf]
        %v248 = vld [vmem:[#allocation2 + $0x34] sm:$0xf]
        %v249 = vld [vmem:[#allocation2 + $0x38] sm:$0xf]
        %v250 = vld [vmem:[#allocation2 + $0x3c] sm:$0xf]
        %v267 = vunpack.c.l.b16 %v235
        %v268 = vunpack.c.l.b16 %v236
        %v269 = vunpack.c.l.b16 %v237
        %v270 = vunpack.c.l.b16 %v238
        %v271 = vunpack.c.l.b16 %v239
        %v272 = vunpack.c.l.b16 %v240
        %v273 = vunpack.c.l.b16 %v241
        %v274 = vunpack.c.l.b16 %v242
        %v275 = vunpack.c.l.b16 %v243
        %v276 = vunpack.c.l.b16 %v244
        %v277 = vunpack.c.l.b16 %v245
        %v278 = vunpack.c.l.b16 %v246
        %v279 = vunpack.c.l.b16 %v247
        %v280 = vunpack.c.l.b16 %v248
        %v281 = vunpack.c.l.b16 %v249
        %v282 = vunpack.c.l.b16 %v250
        %v283 = vpack.c.b16 %v268, %v267
        %v284 = vpack.c.b16 %v270, %v269
        %v285 = vpack.c.b16 %v272, %v271
        %v286 = vpack.c.b16 %v274, %v273
        %v287 = vpack.c.b16 %v276, %v275
        %v288 = vpack.c.b16 %v278, %v277
        %v289 = vpack.c.b16 %v280, %v279
        %v290 = vpack.c.b16 %v282, %v281
        %299 = vmatpush.bf16.msra.mxu0 %v290
        %300 = vmatpush.bf16.msra.mxu0 %v289
        %301 = vmatpush.bf16.msra.mxu0 %v288
        %302 = vmatpush.bf16.msra.mxu0 %v287
        %303 = vmatpush.bf16.msra.mxu0 %v286
        %304 = vmatpush.bf16.msra.mxu0 %v285
        %305 = vmatpush.bf16.msra.mxu0 %v284
        %306 = vmatpush.bf16.msra.mxu0 %v283
        %307 = vmatmul.bf16.gmra.mxu0 %v234
        %v308 = vpop.f32.mrf.mxu0
        %v309 = vadd.f32 0.0, %v308
        %v310 = vpop.f32.mrf.mxu0
        %311 = vdwg.mxu0
        %312 = vst [vmem:[%s199] sm:$0xff] %v309
        %s313 = sand.u32 %s113, 1
        %s314 = scalar_lea.sflag [#allocation4], %s313
        %s315 = sand.u32 %s113, 1
        %s316 = smul.addr %s315, 8
        %s317 = scalar_lea.vmem [#allocation5], %s316
        // Predicated region
        $region37: #{qwen2_forward.13} parent=31 // pred_check
          %p318 = pneg %p123
        $region38: #{qwen2_forward.13} parent=31 // pred_check_branch
          %320 = sbr.rel (%p318) target = $region40
        $region39: #{qwen2_forward.13} parent=31 // pred_region
          %322 = vsyncadd %s314, 0
          %s323 = sadd.s32 %s23, %s22
          %s324 = smul.addr %s323, 8
          %s325 = scalar_lea.hbm %s3, %s324
          %s327 = sshll.u32 %s317, 4
          %s328 = int_to_ptr.vmem [resolvable:$true] %s327
          %s329 = sshll.u32 %s325, 4
          %s330 = int_to_ptr.hbm [resolvable:$true] %s329
          %332 = dma.vmem_to_hbm [thread:$0]  %s328, 128, %s330, %s314
        $region40: #{qwen2_forward.13} parent=31 // pred_fallthru
          _
      $region32: #{qwen2_forward.13} parent=5 // pred_fallthru
        _
      %p333 = scmp.le.s32.totalorder 2, %s13
      // Predicated region
      $region41: #{qwen2_forward.13} parent=5 // pred_check
        %p334 = pneg %p333
      $region42: #{qwen2_forward.13} parent=5 // pred_check_branch
        %336 = sbr.rel (%p334) target = $region44
      $region43: #{qwen2_forward.13} parent=5 // pred_region
        %s337 = ssub.s32 %s13, 2
        // Predicated region
        $region45: #{qwen2_forward.13} parent=43 // pred_check
          %p338 = pneg %p129
        $region46: #{qwen2_forward.13} parent=43 // pred_check_branch
          %340 = sbr.rel (%p338) target = $region48
        $region47: #{qwen2_forward.13} parent=43 // pred_region
          %s341 = sand.u32 %s114, 1
          %s342 = scalar_lea.sflag [#allocation4], %s341
          %s343 = sand.u32 %s114, 1
          %s344 = smul.addr %s343, 8
          %s345 = scalar_lea.vmem [#allocation5], %s344
          %347 = dma.done %s342, 128
        $region48: #{qwen2_forward.13} parent=43 // pred_fallthru
          _
      $region44: #{qwen2_forward.13} parent=5 // pred_fallthru
        _
    $region6: #{qwen2_forward.13} parent=1 // loop_footer
      %s17 = sadd.s32 1, %s13
    $region7: #{qwen2_forward.13} parent=1 // loop_footer_branch
      %12 = sbr.rel target = $region3
    $region8: #{qwen2_forward.13} parent=1 // loop_exit
      _
    %348 = vsyncpa [#allocation3], 1
    %s349 = scalar_lea.sflag [#allocation3], 1
    %350 = vsyncpa %s349, 1
    %351 = vsyncpa [#allocation4], 1
    %s352 = scalar_lea.sflag [#allocation4], 1
    %353 = vsyncpa %s352, 1

// kernel: qwen2_forward.12
$region0: #{qwen2_forward.12}
  #allocation0 [shape = 'u32[]', space=smem, size = 0x4, offset = 0x4, fixed_abs, tag = 'smem constant byte address 0x4 - core index']
  #allocation1 [shape = 'u32[72,128]{1,0:T(1,128)}', space=vmem, size = 0x9000, scoped, tag = 'internal scratch']
  #allocation2 [shape = 'f32[8,128]{1,0:T(8,128)}', space=vmem, size = 0x1000, scoped, tag = 'scratch operand']
  %s0 = inlined_call_operand.vmem [shape: bf16[2,8,128], index: 0, kind: input, shape index: {}]
  %s1 = inlined_call_operand.vmem [shape: f32[1,128], index: 1, kind: input, shape index: {}]
  %s2 = inlined_call_operand.vmem [shape: bf16[128,256], index: 2, kind: input, shape index: {}]
  %s3 = inlined_call_operand.vmem [shape: bf16[128,256], index: 3, kind: input, shape index: {}]
  %s4 = inlined_call_operand.vmem [shape: bf16[256,128], index: 4, kind: input, shape index: {}]
  %s5 = inlined_call_operand.vmem [shape: bf16[2,8,128], index: 5, kind: output, shape index: {}]
  %s6 = sld [smem:[#allocation0]]
  $region143: #{qwen2_forward.12} parent=0
    _
  %s8 = ssub.s32 1, %s6
  %s9 = scalar_select 0, %s8, %s6
  $region1: #{qwen2_forward.12} parent=0
    #allocation3 [shape = 'u8[65536]{0}', space=vmem, size = 0x10000, scoped, tag = 'input window, operand 2']
    #allocation4 [shape = 'u8[65536]{0}', space=vmem, size = 0x10000, scoped, tag = 'input window, operand 3']
    loop: start=0, step=1, limit=6
    $region2: #{qwen2_forward.12} parent=1 // loop_pre_header
      _
    $region3: #{qwen2_forward.12} parent=1 // loop_header
      %s11 = sphi 0, %s15
      %p12 = scmp.ge.s32.totalorder %s11, 6
      %s18 = sphi 0, %s30
      %s19 = sphi 0, %s26
      %s20 = sphi 0, %s18
      %s21 = sphi 0, %s19
      %s22 = sphi 0, %s20
      %s23 = sphi 0, %s21
      %s33 = sphi 0, %s35
      %s36 = sphi 0, %s33
      %s37 = sphi 0, %s36
      %s53 = sphi 0, %s37
      %s57 = sphi 0, %s57
      %s59 = sphi 0, %s57
      %s60 = sphi 0, %s59
      %s74 = sphi 0, %s60
      %s80 = sphi 0, %s82
      %s83 = sphi 0, %s80
      %s84 = sphi 0, %s83
      %s100 = sphi 0, %s84
      %s106 = sphi 0, %s108
      %s109 = sphi 0, %s106
      %s110 = sphi 0, %s109
      %s126 = sphi 0, %s110
      %s132 = sphi 0, %s134
      %s135 = sphi 0, %s132
      %s136 = sphi 0, %s135
      %s152 = sphi 0, %s136
      %s158 = sphi 0, %s160
      %s161 = sphi 0, %s158
      %s162 = sphi 0, %s161
      %s178 = sphi 0, %s162
    $region4: #{qwen2_forward.12} parent=1 // loop_header_branch
      %14 = sbr.rel (%p12) target = $region8
    $region5: #{qwen2_forward.12} parent=1 // loop_body
      %s16 = ssub.s32 %s11, 1
      %s17 = ssub.s32 %s11, 2
      %s24 = sadd.s32 1, %s19
      %p25 = scmp.ge.s32.totalorder %s24, 2
      %s26 = scalar_select %p25, 0, %s24
      %s27 = sadd.s32 1, %s18
      %s28 = scalar_select %p25, %s27, %s18
      %p29 = scmp.ge.s32.totalorder %s28, 2
      %s30 = scalar_select %p29, 0, %s28
      %s31 = ssub.s32 %s18, %s30
      %p32 = scmp.eq.s32.totalorder %s31, 0
      %s34 = sadd.s32 %s33, 1
      %s35 = scalar_select %p32, %s33, %s34
      %p38 = pneg %p32
      %p39 = scmp.eq.s32.totalorder %s11, 3
      %p40 = por %p38, %p39
      %p41 = scmp.ne.s32.totalorder %s33, %s36
      %p42 = scmp.eq.s32.totalorder %s11, 0
      %p43 = por %p41, %p42
      %p44 = scmp.ne.s32.totalorder %s33, %s36
      %p45 = scmp.eq.s32.totalorder %s16, 3
      %p46 = por %p44, %p45
      %p47 = scmp.ne.s32.totalorder %s36, %s37
      %p48 = scmp.eq.s32.totalorder %s16, 0
      %p49 = por %p47, %p48
      %p50 = scmp.ne.s32.totalorder %s36, %s37
      %p51 = scmp.eq.s32.totalorder %s17, 3
      %p52 = por %p50, %p51
      %p54 = scmp.ne.s32.totalorder %s37, %s53
      %p55 = scmp.eq.s32.totalorder %s17, 0
      %p56 = por %p54, %p55
      %s58 = sadd.s32 %s57, 1
      %p61 = scmp.eq.s32.totalorder %s11, 3
      %p62 = scmp.ne.s32.totalorder %s57, %s59
      %p63 = scmp.eq.s32.totalorder %s11, 0
      %p64 = por %p62, %p63
      %p65 = scmp.ne.s32.totalorder %s57, %s59
      %p66 = scmp.eq.s32.totalorder %s16, 3
      %p67 = por %p65, %p66
      %p68 = scmp.ne.s32.totalorder %s59, %s60
      %p69 = scmp.eq.s32.totalorder %s16, 0
      %p70 = por %p68, %p69
      %p71 = scmp.ne.s32.totalorder %s59, %s60
      %p72 = scmp.eq.s32.totalorder %s17, 3
      %p73 = por %p71, %p72
      %p75 = scmp.ne.s32.totalorder %s60, %s74
      %p76 = scmp.eq.s32.totalorder %s17, 0
      %p77 = por %p75, %p76
      %s78 = ssub.s32 %s19, %s26
      %p79 = scmp.eq.s32.totalorder %s78, 0
      %s81 = sadd.s32 %s80, 1
      %s82 = scalar_select %p79, %s80, %s81
      %p85 = pneg %p79
      %p86 = scmp.eq.s32.totalorder %s11, 3
      %p87 = por %p85, %p86
      %p88 = scmp.ne.s32.totalorder %s80, %s83
      %p89 = scmp.eq.s32.totalorder %s11, 0
      %p90 = por %p88, %p89
      %p91 = scmp.ne.s32.totalorder %s80, %s83
      %p92 = scmp.eq.s32.totalorder %s16, 3
      %p93 = por %p91, %p92
      %p94 = scmp.ne.s32.totalorder %s83, %s84
      %p95 = scmp.eq.s32.totalorder %s16, 0
      %p96 = por %p94, %p95
      %p97 = scmp.ne.s32.totalorder %s83, %s84
      %p98 = scmp.eq.s32.totalorder %s17, 3
      %p99 = por %p97, %p98
      %p101 = scmp.ne.s32.totalorder %s84, %s100
      %p102 = scmp.eq.s32.totalorder %s17, 0
      %p103 = por %p101, %p102
      %s104 = ssub.s32 %s19, %s26
      %p105 = scmp.eq.s32.totalorder %s104, 0
      %s107 = sadd.s32 %s106, 1
      %s108 = scalar_select %p105, %s106, %s107
      %p111 = pneg %p105
      %p112 = scmp.eq.s32.totalorder %s11, 3
      %p113 = por %p111, %p112
      %p114 = scmp.ne.s32.totalorder %s106, %s109
      %p115 = scmp.eq.s32.totalorder %s11, 0
      %p116 = por %p114, %p115
      %p117 = scmp.ne.s32.totalorder %s106, %s109
      %p118 = scmp.eq.s32.totalorder %s16, 3
      %p119 = por %p117, %p118
      %p120 = scmp.ne.s32.totalorder %s109, %s110
      %p121 = scmp.eq.s32.totalorder %s16, 0
      %p122 = por %p120, %p121
      %p123 = scmp.ne.s32.totalorder %s109, %s110
      %p124 = scmp.eq.s32.totalorder %s17, 3
      %p125 = por %p123, %p124
      %p127 = scmp.ne.s32.totalorder %s110, %s126
      %p128 = scmp.eq.s32.totalorder %s17, 0
      %p129 = por %p127, %p128
      %s130 = ssub.s32 %s19, %s26
      %p131 = scmp.eq.s32.totalorder %s130, 0
      %s133 = sadd.s32 %s132, 1
      %s134 = scalar_select %p131, %s132, %s133
      %p137 = pneg %p131
      %p138 = scmp.eq.s32.totalorder %s11, 3
      %p139 = por %p137, %p138
      %p140 = scmp.ne.s32.totalorder %s132, %s135
      %p141 = scmp.eq.s32.totalorder %s11, 0
      %p142 = por %p140, %p141
      %p143 = scmp.ne.s32.totalorder %s132, %s135
      %p144 = scmp.eq.s32.totalorder %s16, 3
      %p145 = por %p143, %p144
      %p146 = scmp.ne.s32.totalorder %s135, %s136
      %p147 = scmp.eq.s32.totalorder %s16, 0
      %p148 = por %p146, %p147
      %p149 = scmp.ne.s32.totalorder %s135, %s136
      %p150 = scmp.eq.s32.totalorder %s17, 3
      %p151 = por %p149, %p150
      %p153 = scmp.ne.s32.totalorder %s136, %s152
      %p154 = scmp.eq.s32.totalorder %s17, 0
      %p155 = por %p153, %p154
      %s156 = ssub.s32 %s18, %s30
      %p157 = scmp.eq.s32.totalorder %s156, 0
      %s159 = sadd.s32 %s158, 1
      %s160 = scalar_select %p157, %s158, %s159
      %p163 = pneg %p157
      %p164 = scmp.eq.s32.totalorder %s11, 3
      %p165 = por %p163, %p164
      %p166 = scmp.ne.s32.totalorder %s158, %s161
      %p167 = scmp.eq.s32.totalorder %s11, 0
      %p168 = por %p166, %p167
      %p169 = scmp.ne.s32.totalorder %s158, %s161
      %p170 = scmp.eq.s32.totalorder %s16, 3
      %p171 = por %p169, %p170
      %p172 = scmp.ne.s32.totalorder %s161, %s162
      %p173 = scmp.eq.s32.totalorder %s16, 0
      %p174 = por %p172, %p173
      %p175 = scmp.ne.s32.totalorder %s161, %s162
      %p176 = scmp.eq.s32.totalorder %s17, 3
      %p177 = por %p175, %p176
      %p179 = scmp.ne.s32.totalorder %s162, %s178
      %p180 = scmp.eq.s32.totalorder %s17, 0
      %p181 = por %p179, %p180
      %p182 = scmp.le.s32.totalorder 1, %s11
      %p183 = scmp.lt.s32.totalorder %s11, 5
      %p184 = pnand %p182, %p183
      %p185 = pneg %p184
      // Predicated region
      $region9: #{qwen2_forward.12} parent=5 // pred_check
        _
      $region10: #{qwen2_forward.12} parent=5 // pred_check_branch
        %187 = sbr.rel (%p184) target = $region12
      $region11: #{qwen2_forward.12} parent=5 // pred_region
        %s188 = ssub.s32 %s11, 1
        // Predicated region
        $region13: #{qwen2_forward.12} parent=11 // pred_check
          %p189 = pneg %p70
        $region14: #{qwen2_forward.12} parent=11 // pred_check_branch
          %191 = sbr.rel (%p189) target = $region16
        $region15: #{qwen2_forward.12} parent=11 // pred_region
          _
        $region16: #{qwen2_forward.12} parent=11 // pred_fallthru
          _
      $region12: #{qwen2_forward.12} parent=5 // pred_fallthru
        _
      %p192 = scmp.lt.s32.totalorder %s11, 4
      // Predicated region
      $region17: #{qwen2_forward.12} parent=5 // pred_check
        %p193 = pneg %p192
      $region18: #{qwen2_forward.12} parent=5 // pred_check_branch
        %195 = sbr.rel (%p193) target = $region20
      $region19: #{qwen2_forward.12} parent=5 // pred_region
        // Predicated region
        $region21: #{qwen2_forward.12} parent=19 // pred_check
          %p196 = pneg %p43
        $region22: #{qwen2_forward.12} parent=19 // pred_check_branch
          %198 = sbr.rel (%p196) target = $region24
        $region23: #{qwen2_forward.12} parent=19 // pred_region
          %p199 = scmp.lt.s32.totalorder %s18, 1
          %s200 = scalar_select %p199, %s18, 1
          %s201 = smul.addr %s200, 4
          %s202 = scalar_lea.vmem %s0, %s201
        $region24: #{qwen2_forward.12} parent=19 // pred_fallthru
          _
        // Predicated region
        $region25: #{qwen2_forward.12} parent=19 // pred_check
          %p203 = pneg %p90
        $region26: #{qwen2_forward.12} parent=19 // pred_check_branch
          %205 = sbr.rel (%p203) target = $region28
        $region27: #{qwen2_forward.12} parent=19 // pred_region
          %s206 = sand.u32 %s80, 1
          %s207 = sand.u32 %s80, 1
          %s208 = smul.addr %s207, 64
          %s209 = scalar_lea.vmem [#allocation3], %s208
          %s210 = smul.addr %s19, 4
          %s211 = scalar_lea.vmem %s2, %s210
          // Predicated region
          $region29: #{qwen2_forward.12} parent=27 // pred_check
            _
          $region30: #{qwen2_forward.12} parent=27 // pred_check_branch
            %213 = sbr.rel (0) target = $region32
          $region31: #{qwen2_forward.12} parent=27 // pred_region
            // Predicated region
            $region33: #{qwen2_forward.12} parent=31 // pred_check
              _
            $region34: #{qwen2_forward.12} parent=31 // pred_check_branch
              %215 = sbr.rel target = $region36
            $region35: #{qwen2_forward.12} parent=31 // pred_region
              // Predicated region
              $region48: #{qwen2_forward.12} parent=35 // pred_check
                _
              $region49: #{qwen2_forward.12} parent=35 // pred_check_branch
                %261 = sbr.rel (0) target = $region51
              $region50: #{qwen2_forward.12} parent=35 // pred_region
                loop: start=0, step=1, limit=1
                $region52: #{qwen2_forward.12} parent=50 // loop_pre_header
                  _
                $region53: #{qwen2_forward.12} parent=50 // loop_header
                  %s263 = sphi 0, %s267
                  %p264 = scmp.ge.s32.totalorder %s263, 1
                  %s268 = sphi %s211, %s211
                  %s269 = sphi %s209, %s209
                $region54: #{qwen2_forward.12} parent=50 // loop_header_branch
                  %266 = sbr.rel (%p264) target = $region58
                $region55: #{qwen2_forward.12} parent=50 // loop_body
                  _
                $region56: #{qwen2_forward.12} parent=50 // loop_footer
                  %s267 = sadd.s32 1, %s263
                $region57: #{qwen2_forward.12} parent=50 // loop_footer_branch
                  %262 = sbr.rel target = $region53
                $region58: #{qwen2_forward.12} parent=50 // loop_exit
                  _
                %s271 = ssub.s32 16, 1
                loop: start=0, step=1, limit=1
                $region59: #{qwen2_forward.12} parent=50 // loop_pre_header
                  _
                $region60: #{qwen2_forward.12} parent=50 // loop_header
                  %s273 = sphi 0, %s277
                  %p274 = scmp.ge.s32.totalorder %s273, 1
                  %s278 = sphi %s211, %s211
                  %s279 = sphi %s209, %s209
                $region61: #{qwen2_forward.12} parent=50 // loop_header_branch
                  %276 = sbr.rel (%p274) target = $region65
                $region62: #{qwen2_forward.12} parent=50 // loop_body
                  %v280 = vld [vmem:[%s278] sm:%s271]
                  %281 = vst [vmem:[%s279] sm:%s271] %v280
                  %v282 = vld [vmem:[%s278 + $0x8] sm:%s271]
                  %283 = vst [vmem:[%s279 + $0x4] sm:%s271] %v282
                  %v284 = vld [vmem:[%s278 + $0x10] sm:%s271]
                  %285 = vst [vmem:[%s279 + $0x8] sm:%s271] %v284
                  %v286 = vld [vmem:[%s278 + $0x18] sm:%s271]
                  %287 = vst [vmem:[%s279 + $0xc] sm:%s271] %v286
                  %v288 = vld [vmem:[%s278 + $0x20] sm:%s271]
                  %289 = vst [vmem:[%s279 + $0x10] sm:%s271] %v288
                  %v290 = vld [vmem:[%s278 + $0x28] sm:%s271]
                  %291 = vst [vmem:[%s279 + $0x14] sm:%s271] %v290
                  %v292 = vld [vmem:[%s278 + $0x30] sm:%s271]
                  %293 = vst [vmem:[%s279 + $0x18] sm:%s271] %v292
                  %v294 = vld [vmem:[%s278 + $0x38] sm:%s271]
                  %295 = vst [vmem:[%s279 + $0x1c] sm:%s271] %v294
                  %v296 = vld [vmem:[%s278 + $0x40] sm:%s271]
                  %297 = vst [vmem:[%s279 + $0x20] sm:%s271] %v296
                  %v298 = vld [vmem:[%s278 + $0x48] sm:%s271]
                  %299 = vst [vmem:[%s279 + $0x24] sm:%s271] %v298
                  %v300 = vld [vmem:[%s278 + $0x50] sm:%s271]
                  %301 = vst [vmem:[%s279 + $0x28] sm:%s271] %v300
                  %v302 = vld [vmem:[%s278 + $0x58] sm:%s271]
                  %303 = vst [vmem:[%s279 + $0x2c] sm:%s271] %v302
                  %v304 = vld [vmem:[%s278 + $0x60] sm:%s271]
                  %305 = vst [vmem:[%s279 + $0x30] sm:%s271] %v304
                  %v306 = vld [vmem:[%s278 + $0x68] sm:%s271]
                  %307 = vst [vmem:[%s279 + $0x34] sm:%s271] %v306
                  %v308 = vld [vmem:[%s278 + $0x70] sm:%s271]
                  %309 = vst [vmem:[%s279 + $0x38] sm:%s271] %v308
                  %v310 = vld [vmem:[%s278 + $0x78] sm:%s271]
                  %311 = vst [vmem:[%s279 + $0x3c] sm:%s271] %v310
                $region63: #{qwen2_forward.12} parent=50 // loop_footer
                  %s277 = sadd.s32 1, %s273
                $region64: #{qwen2_forward.12} parent=50 // loop_footer_branch
                  %272 = sbr.rel target = $region60
                $region65: #{qwen2_forward.12} parent=50 // loop_exit
                  _
              $region51: #{qwen2_forward.12} parent=35 // pred_fallthru
                _
            $region36: #{qwen2_forward.12} parent=31 // pred_fallthru
              _
            // Predicated region
            $region37: #{qwen2_forward.12} parent=31 // pred_check
              _
            $region38: #{qwen2_forward.12} parent=31 // pred_check_branch
              %217 = sbr.rel (0) target = $region40
            $region39: #{qwen2_forward.12} parent=31 // pred_region
              %s219 = ssub.s32 16, 1
              loop: start=0, step=1, limit=1
              $region41: #{qwen2_forward.12} parent=39 // loop_pre_header
                _
              $region42: #{qwen2_forward.12} parent=39 // loop_header
                %s221 = sphi 0, %s225
                %p222 = scmp.ge.s32.totalorder %s221, 1
                %s226 = sphi %s211, %s211
                %s227 = sphi %s209, %s209
              $region43: #{qwen2_forward.12} parent=39 // loop_header_branch
                %224 = sbr.rel (%p222) target = $region47
              $region44: #{qwen2_forward.12} parent=39 // loop_body
                %v228 = vld [vmem:[%s226] sm:%s219]
                %229 = vst [vmem:[%s227] sm:%s219] %v228
                %v230 = vld [vmem:[%s226 + $0x8] sm:%s219]
                %231 = vst [vmem:[%s227 + $0x4] sm:%s219] %v230
                %v232 = vld [vmem:[%s226 + $0x10] sm:%s219]
                %233 = vst [vmem:[%s227 + $0x8] sm:%s219] %v232
                %v234 = vld [vmem:[%s226 + $0x18] sm:%s219]
                %235 = vst [vmem:[%s227 + $0xc] sm:%s219] %v234
                %v236 = vld [vmem:[%s226 + $0x20] sm:%s219]
                %237 = vst [vmem:[%s227 + $0x10] sm:%s219] %v236
                %v238 = vld [vmem:[%s226 + $0x28] sm:%s219]
                %239 = vst [vmem:[%s227 + $0x14] sm:%s219] %v238
                %v240 = vld [vmem:[%s226 + $0x30] sm:%s219]
                %241 = vst [vmem:[%s227 + $0x18] sm:%s219] %v240
                %v242 = vld [vmem:[%s226 + $0x38] sm:%s219]
                %243 = vst [vmem:[%s227 + $0x1c] sm:%s219] %v242
                %v244 = vld [vmem:[%s226 + $0x40] sm:%s219]
                %245 = vst [vmem:[%s227 + $0x20] sm:%s219] %v244
                %v246 = vld [vmem:[%s226 + $0x48] sm:%s219]
                %247 = vst [vmem:[%s227 + $0x24] sm:%s219] %v246
                %v248 = vld [vmem:[%s226 + $0x50] sm:%s219]
                %249 = vst [vmem:[%s227 + $0x28] sm:%s219] %v248
                %v250 = vld [vmem:[%s226 + $0x58] sm:%s219]
                %251 = vst [vmem:[%s227 + $0x2c] sm:%s219] %v250
                %v252 = vld [vmem:[%s226 + $0x60] sm:%s219]
                %253 = vst [vmem:[%s227 + $0x30] sm:%s219] %v252
                %v254 = vld [vmem:[%s226 + $0x68] sm:%s219]
                %255 = vst [vmem:[%s227 + $0x34] sm:%s219] %v254
                %v256 = vld [vmem:[%s226 + $0x70] sm:%s219]
                %257 = vst [vmem:[%s227 + $0x38] sm:%s219] %v256
                %v258 = vld [vmem:[%s226 + $0x78] sm:%s219]
                %259 = vst [vmem:[%s227 + $0x3c] sm:%s219] %v258
              $region45: #{qwen2_forward.12} parent=39 // loop_footer
                %s225 = sadd.s32 1, %s221
              $region46: #{qwen2_forward.12} parent=39 // loop_footer_branch
                %220 = sbr.rel target = $region42
              $region47: #{qwen2_forward.12} parent=39 // loop_exit
                _
            $region40: #{qwen2_forward.12} parent=31 // pred_fallthru
              _
          $region32: #{qwen2_forward.12} parent=27 // pred_fallthru
            _
          %312 = vnop
        $region28: #{qwen2_forward.12} parent=19 // pred_fallthru
          _
        // Predicated region
        $region66: #{qwen2_forward.12} parent=19 // pred_check
          %p313 = pneg %p116
        $region67: #{qwen2_forward.12} parent=19 // pred_check_branch
          %315 = sbr.rel (%p313) target = $region69
        $region68: #{qwen2_forward.12} parent=19 // pred_region
          %s316 = sand.u32 %s106, 1
          %s317 = sand.u32 %s106, 1
          %s318 = smul.addr %s317, 64
          %s319 = scalar_lea.vmem [#allocation4], %s318
          %s320 = smul.addr %s19, 4
          %s321 = scalar_lea.vmem %s3, %s320
          // Predicated region
          $region70: #{qwen2_forward.12} parent=68 // pred_check
            _
          $region71: #{qwen2_forward.12} parent=68 // pred_check_branch
            %323 = sbr.rel (0) target = $region73
          $region72: #{qwen2_forward.12} parent=68 // pred_region
            // Predicated region
            $region74: #{qwen2_forward.12} parent=72 // pred_check
              _
            $region75: #{qwen2_forward.12} parent=72 // pred_check_branch
              %325 = sbr.rel target = $region77
            $region76: #{qwen2_forward.12} parent=72 // pred_region
              // Predicated region
              $region89: #{qwen2_forward.12} parent=76 // pred_check
                _
              $region90: #{qwen2_forward.12} parent=76 // pred_check_branch
                %371 = sbr.rel (0) target = $region92
              $region91: #{qwen2_forward.12} parent=76 // pred_region
                loop: start=0, step=1, limit=1
                $region93: #{qwen2_forward.12} parent=91 // loop_pre_header
                  _
                $region94: #{qwen2_forward.12} parent=91 // loop_header
                  %s373 = sphi 0, %s377
                  %p374 = scmp.ge.s32.totalorder %s373, 1
                  %s378 = sphi %s321, %s321
                  %s379 = sphi %s319, %s319
                $region95: #{qwen2_forward.12} parent=91 // loop_header_branch
                  %376 = sbr.rel (%p374) target = $region99
                $region96: #{qwen2_forward.12} parent=91 // loop_body
                  _
                $region97: #{qwen2_forward.12} parent=91 // loop_footer
                  %s377 = sadd.s32 1, %s373
                $region98: #{qwen2_forward.12} parent=91 // loop_footer_branch
                  %372 = sbr.rel target = $region94
                $region99: #{qwen2_forward.12} parent=91 // loop_exit
                  _
                %s381 = ssub.s32 16, 1
                loop: start=0, step=1, limit=1
                $region100: #{qwen2_forward.12} parent=91 // loop_pre_header
                  _
                $region101: #{qwen2_forward.12} parent=91 // loop_header
                  %s383 = sphi 0, %s387
                  %p384 = scmp.ge.s32.totalorder %s383, 1
                  %s388 = sphi %s321, %s321
                  %s389 = sphi %s319, %s319
                $region102: #{qwen2_forward.12} parent=91 // loop_header_branch
                  %386 = sbr.rel (%p384) target = $region106
                $region103: #{qwen2_forward.12} parent=91 // loop_body
                  %v390 = vld [vmem:[%s388] sm:%s381]
                  %391 = vst [vmem:[%s389] sm:%s381] %v390
                  %v392 = vld [vmem:[%s388 + $0x8] sm:%s381]
                  %393 = vst [vmem:[%s389 + $0x4] sm:%s381] %v392
                  %v394 = vld [vmem:[%s388 + $0x10] sm:%s381]
                  %395 = vst [vmem:[%s389 + $0x8] sm:%s381] %v394
                  %v396 = vld [vmem:[%s388 + $0x18] sm:%s381]
                  %397 = vst [vmem:[%s389 + $0xc] sm:%s381] %v396
                  %v398 = vld [vmem:[%s388 + $0x20] sm:%s381]
                  %399 = vst [vmem:[%s389 + $0x10] sm:%s381] %v398
                  %v400 = vld [vmem:[%s388 + $0x28] sm:%s381]
                  %401 = vst [vmem:[%s389 + $0x14] sm:%s381] %v400
                  %v402 = vld [vmem:[%s388 + $0x30] sm:%s381]
                  %403 = vst [vmem:[%s389 + $0x18] sm:%s381] %v402
                  %v404 = vld [vmem:[%s388 + $0x38] sm:%s381]
                  %405 = vst [vmem:[%s389 + $0x1c] sm:%s381] %v404
                  %v406 = vld [vmem:[%s388 + $0x40] sm:%s381]
                  %407 = vst [vmem:[%s389 + $0x20] sm:%s381] %v406
                  %v408 = vld [vmem:[%s388 + $0x48] sm:%s381]
                  %409 = vst [vmem:[%s389 + $0x24] sm:%s381] %v408
                  %v410 = vld [vmem:[%s388 + $0x50] sm:%s381]
                  %411 = vst [vmem:[%s389 + $0x28] sm:%s381] %v410
                  %v412 = vld [vmem:[%s388 + $0x58] sm:%s381]
                  %413 = vst [vmem:[%s389 + $0x2c] sm:%s381] %v412
                  %v414 = vld [vmem:[%s388 + $0x60] sm:%s381]
                  %415 = vst [vmem:[%s389 + $0x30] sm:%s381] %v414
                  %v416 = vld [vmem:[%s388 + $0x68] sm:%s381]
                  %417 = vst [vmem:[%s389 + $0x34] sm:%s381] %v416
                  %v418 = vld [vmem:[%s388 + $0x70] sm:%s381]
                  %419 = vst [vmem:[%s389 + $0x38] sm:%s381] %v418
                  %v420 = vld [vmem:[%s388 + $0x78] sm:%s381]
                  %421 = vst [vmem:[%s389 + $0x3c] sm:%s381] %v420
                $region104: #{qwen2_forward.12} parent=91 // loop_footer
                  %s387 = sadd.s32 1, %s383
                $region105: #{qwen2_forward.12} parent=91 // loop_footer_branch
                  %382 = sbr.rel target = $region101
                $region106: #{qwen2_forward.12} parent=91 // loop_exit
                  _
              $region92: #{qwen2_forward.12} parent=76 // pred_fallthru
                _
            $region77: #{qwen2_forward.12} parent=72 // pred_fallthru
              _
            // Predicated region
            $region78: #{qwen2_forward.12} parent=72 // pred_check
              _
            $region79: #{qwen2_forward.12} parent=72 // pred_check_branch
              %327 = sbr.rel (0) target = $region81
            $region80: #{qwen2_forward.12} parent=72 // pred_region
              %s329 = ssub.s32 16, 1
              loop: start=0, step=1, limit=1
              $region82: #{qwen2_forward.12} parent=80 // loop_pre_header
                _
              $region83: #{qwen2_forward.12} parent=80 // loop_header
                %s331 = sphi 0, %s335
                %p332 = scmp.ge.s32.totalorder %s331, 1
                %s336 = sphi %s321, %s321
                %s337 = sphi %s319, %s319
              $region84: #{qwen2_forward.12} parent=80 // loop_header_branch
                %334 = sbr.rel (%p332) target = $region88
              $region85: #{qwen2_forward.12} parent=80 // loop_body
                %v338 = vld [vmem:[%s336] sm:%s329]
                %339 = vst [vmem:[%s337] sm:%s329] %v338
                %v340 = vld [vmem:[%s336 + $0x8] sm:%s329]
                %341 = vst [vmem:[%s337 + $0x4] sm:%s329] %v340
                %v342 = vld [vmem:[%s336 + $0x10] sm:%s329]
                %343 = vst [vmem:[%s337 + $0x8] sm:%s329] %v342
                %v344 = vld [vmem:[%s336 + $0x18] sm:%s329]
                %345 = vst [vmem:[%s337 + $0xc] sm:%s329] %v344
                %v346 = vld [vmem:[%s336 + $0x20] sm:%s329]
                %347 = vst [vmem:[%s337 + $0x10] sm:%s329] %v346
                %v348 = vld [vmem:[%s336 + $0x28] sm:%s329]
                %349 = vst [vmem:[%s337 + $0x14] sm:%s329] %v348
                %v350 = vld [vmem:[%s336 + $0x30] sm:%s329]
                %351 = vst [vmem:[%s337 + $0x18] sm:%s329] %v350
                %v352 = vld [vmem:[%s336 + $0x38] sm:%s329]
                %353 = vst [vmem:[%s337 + $0x1c] sm:%s329] %v352
                %v354 = vld [vmem:[%s336 + $0x40] sm:%s329]
                %355 = vst [vmem:[%s337 + $0x20] sm:%s329] %v354
                %v356 = vld [vmem:[%s336 + $0x48] sm:%s329]
                %357 = vst [vmem:[%s337 + $0x24] sm:%s329] %v356
                %v358 = vld [vmem:[%s336 + $0x50] sm:%s329]
                %359 = vst [vmem:[%s337 + $0x28] sm:%s329] %v358
                %v360 = vld [vmem:[%s336 + $0x58] sm:%s329]
                %361 = vst [vmem:[%s337 + $0x2c] sm:%s329] %v360
                %v362 = vld [vmem:[%s336 + $0x60] sm:%s329]
                %363 = vst [vmem:[%s337 + $0x30] sm:%s329] %v362
                %v364 = vld [vmem:[%s336 + $0x68] sm:%s329]
                %365 = vst [vmem:[%s337 + $0x34] sm:%s329] %v364
                %v366 = vld [vmem:[%s336 + $0x70] sm:%s329]
                %367 = vst [vmem:[%s337 + $0x38] sm:%s329] %v366
                %v368 = vld [vmem:[%s336 + $0x78] sm:%s329]
                %369 = vst [vmem:[%s337 + $0x3c] sm:%s329] %v368
              $region86: #{qwen2_forward.12} parent=80 // loop_footer
                %s335 = sadd.s32 1, %s331
              $region87: #{qwen2_forward.12} parent=80 // loop_footer_branch
                %330 = sbr.rel target = $region83
              $region88: #{qwen2_forward.12} parent=80 // loop_exit
                _
            $region81: #{qwen2_forward.12} parent=72 // pred_fallthru
              _
          $region73: #{qwen2_forward.12} parent=68 // pred_fallthru
            _
          %422 = vnop
        $region69: #{qwen2_forward.12} parent=19 // pred_fallthru
          _
        // Predicated region
        $region107: #{qwen2_forward.12} parent=19 // pred_check
          %p423 = pneg %p142
        $region108: #{qwen2_forward.12} parent=19 // pred_check_branch
          %425 = sbr.rel (%p423) target = $region110
        $region109: #{qwen2_forward.12} parent=19 // pred_region
          %s426 = smul.u32 16, %s19
          %p427 = scmp.lt.s32.totalorder %s426, 31
          %s428 = scalar_select %p427, %s426, 31
          %s429 = smul.addr %s428, 4
          %s430 = scalar_lea.vmem %s4, %s429
          %s431 = smul.u32 16, %s19
        $region110: #{qwen2_forward.12} parent=19 // pred_fallthru
          _
      $region20: #{qwen2_forward.12} parent=5 // pred_fallthru
        _
      %p432 = scmp.le.s32.totalorder 1, %s11
      %p433 = scmp.lt.s32.totalorder %s11, 5
      %p434 = pnand %p432, %p433
      %p435 = pneg %p434
      // Predicated region
      $region111: #{qwen2_forward.12} parent=5 // pred_check
        _
      $region112: #{qwen2_forward.12} parent=5 // pred_check_branch
        %437 = sbr.rel (%p434) target = $region114
      $region113: #{qwen2_forward.12} parent=5 // pred_region
        %s438 = ssub.s32 %s11, 1
        %s439 = sand.u32 %s83, 1
        %s440 = sand.u32 %s83, 1
        %s441 = smul.addr %s440, 64
        %s442 = scalar_lea.vmem [#allocation3], %s441
        // Predicated region
        $region115: #{qwen2_forward.12} parent=113 // pred_check
          %p443 = pneg %p96
        $region116: #{qwen2_forward.12} parent=113 // pred_check_branch
          %445 = sbr.rel (%p443) target = $region118
        $region117: #{qwen2_forward.12} parent=113 // pred_region
          _
        $region118: #{qwen2_forward.12} parent=113 // pred_fallthru
          _
        %s446 = sand.u32 %s109, 1
        %s447 = sand.u32 %s109, 1
        %s448 = smul.addr %s447, 64
        %s449 = scalar_lea.vmem [#allocation4], %s448
        // Predicated region
        $region119: #{qwen2_forward.12} parent=113 // pred_check
          %p450 = pneg %p122
        $region120: #{qwen2_forward.12} parent=113 // pred_check_branch
          %452 = sbr.rel (%p450) target = $region122
        $region121: #{qwen2_forward.12} parent=113 // pred_region
          _
        $region122: #{qwen2_forward.12} parent=113 // pred_fallthru
          _
        %p453 = scmp.lt.s32.totalorder %s20, 1
        %s454 = scalar_select %p453, %s20, 1
        %s455 = smul.addr %s454, 4
        %s456 = scalar_lea.vmem %s0, %s455
        %p457 = pneg %p49
        %p458 = pneg %p46
        %p459 = pneg %p70
        %p460 = pneg %p67
        %s461 = sand.u32 %s83, 1
        %s462 = sand.u32 %s83, 1
        %s463 = smul.addr %s462, 64
        %s464 = scalar_lea.vmem [#allocation3], %s463
        %p465 = pneg %p96
        %p466 = pneg %p93
        %s467 = sand.u32 %s109, 1
        %s468 = sand.u32 %s109, 1
        %s469 = smul.addr %s468, 64
        %s470 = scalar_lea.vmem [#allocation4], %s469
        %p471 = pneg %p122
        %p472 = pneg %p119
        %s473 = smul.u32 16, %s21
        %p474 = scmp.lt.s32.totalorder %s473, 31
        %s475 = scalar_select %p474, %s473, 31
        %s476 = smul.addr %s475, 4
        %s477 = scalar_lea.vmem %s4, %s476
        %p478 = pneg %p148
        %p479 = pneg %p145
        %p480 = pneg %p174
        %p481 = pneg %p171
        %p482 = scmp.lt.s32.totalorder %s20, 1
        %s483 = scalar_select %p482, %s20, 1
        %s484 = smul.addr %s483, 4
        %s485 = scalar_lea.vmem %s5, %s484
        %p486 = scmp.lt.s32.totalorder %s20, 1
        %s487 = scalar_select %p486, %s20, 1
        %s488 = smul.addr %s487, 4
        %s489 = scalar_lea.vmem %s0, %s488
        %s490 = smul.u32 16, %s21
        %p491 = scmp.lt.s32.totalorder %s490, 31
        %s492 = scalar_select %p491, %s490, 31
        %s493 = smul.addr %s492, 4
        %s494 = scalar_lea.vmem %s4, %s493
        %s495 = smul.u32 16, %s21
        %p496 = scmp.lt.s32.totalorder %s20, 1
        %s497 = scalar_select %p496, %s20, 1
        %s498 = smul.addr %s497, 4
        %s499 = scalar_lea.vmem %s5, %s498
        %v500 = vld [vmem:[%s489] sm:$0xf]
        %v501 = vunpack.c.l.bf16 %v500
        %v502 = vmul.f32 %v501, %v501
        %503 = vadd.xlane.f32.xlu0 %v502
        %v504 = vpop.xlane.xlu0 %503
        %v505 = vrcp.pop 128.0
        %v506 = vmul.f32 128.0, %v505
        %v507 = vsub.f32 1.0, %v506
        %v508 = vmul.f32 %v505, %v507
        %v509 = vadd.f32 %v505, %v508
        %vm510 = vweird.f32 %v505
        %v511 = vsel %vm510, %v505, %v509
        %v512 = vmul.f32 %v504, %v511
        %v513 = vadd.f32 %v512, 1e-06
        %v514 = vrsqrt.pop %v513
        %v515 = vmul.f32 %v514, %v513
        %v516 = vmul.f32 %v515, %v514
        %v517 = vmul.f32 0.5, %v516
        %v518 = vsub.f32 1.5, %v517
        %v519 = vmul.f32 %v514, %v518
        %vm520 = vweird.f32 %v513
        %vm521 = vweird.f32 %v514
        %vm522 = vmor %vm520, %vm521
        %v523 = vsel %vm522, %v514, %v519
        %v524 = vmul.f32 %v501, %v523
        %v525 = vld [vmem:[%s1] sm:$0x1]
        %v527 = vperm.slane %v525, 0
        %v529 = vmul.f32 %v524, %v527
        %v530 = vpack.c.bf16 %v529, %v529
        %v531 = vld [vmem:[%s442] sm:$0xf]
        %v532 = vld [vmem:[%s442 + $0x4] sm:$0xf]
        %v533 = vld [vmem:[%s442 + $0x8] sm:$0xf]
        %v534 = vld [vmem:[%s442 + $0xc] sm:$0xf]
        %v535 = vld [vmem:[%s442 + $0x10] sm:$0xf]
        %v536 = vld [vmem:[%s442 + $0x14] sm:$0xf]
        %v537 = vld [vmem:[%s442 + $0x18] sm:$0xf]
        %v538 = vld [vmem:[%s442 + $0x1c] sm:$0xf]
        %v539 = vld [vmem:[%s442 + $0x20] sm:$0xf]
        %v540 = vld [vmem:[%s442 + $0x24] sm:$0xf]
        %v541 = vld [vmem:[%s442 + $0x28] sm:$0xf]
        %v542 = vld [vmem:[%s442 + $0x2c] sm:$0xf]
        %v543 = vld [vmem:[%s442 + $0x30] sm:$0xf]
        %v544 = vld [vmem:[%s442 + $0x34] sm:$0xf]
        %v545 = vld [vmem:[%s442 + $0x38] sm:$0xf]
        %v546 = vld [vmem:[%s442 + $0x3c] sm:$0xf]
        %v563 = vunpack.c.l.b16 %v531
        %v564 = vunpack.c.l.b16 %v532
        %v565 = vunpack.c.l.b16 %v533
        %v566 = vunpack.c.l.b16 %v534
        %v567 = vunpack.c.l.b16 %v535
        %v568 = vunpack.c.l.b16 %v536
        %v569 = vunpack.c.l.b16 %v537
        %v570 = vunpack.c.l.b16 %v538
        %v571 = vunpack.c.l.b16 %v539
        %v572 = vunpack.c.l.b16 %v540
        %v573 = vunpack.c.l.b16 %v541
        %v574 = vunpack.c.l.b16 %v542
        %v575 = vunpack.c.l.b16 %v543
        %v576 = vunpack.c.l.b16 %v544
        %v577 = vunpack.c.l.b16 %v545
        %v578 = vunpack.c.l.b16 %v546
        %v579 = vpack.c.b16 %v564, %v563
        %v580 = vpack.c.b16 %v566, %v565
        %v581 = vpack.c.b16 %v568, %v567
        %v582 = vpack.c.b16 %v570, %v569
        %v583 = vpack.c.b16 %v572, %v571
        %v584 = vpack.c.b16 %v574, %v573
        %v585 = vpack.c.b16 %v576, %v575
        %v586 = vpack.c.b16 %v578, %v577
        %595 = vmatpush.bf16.msra.mxu0 %v586
        %596 = vmatpush.bf16.msra.mxu0 %v585
        %597 = vmatpush.bf16.msra.mxu0 %v584
        %598 = vmatpush.bf16.msra.mxu0 %v583
        %599 = vmatpush.bf16.msra.mxu0 %v582
        %600 = vmatpush.bf16.msra.mxu0 %v581
        %601 = vmatpush.bf16.msra.mxu0 %v580
        %602 = vmatpush.bf16.msra.mxu0 %v579
        %603 = vmatmul.bf16.gmra.mxu0 %v530
        %v604 = vpop.f32.mrf.mxu0
        %v605 = vadd.f32 0.0, %v604
        %v606 = vpop.f32.mrf.mxu0
        %607 = vdwg.mxu0
        %v608 = vld [vmem:[%s449] sm:$0xf]
        %v609 = vld [vmem:[%s449 + $0x4] sm:$0xf]
        %v610 = vld [vmem:[%s449 + $0x8] sm:$0xf]
        %v611 = vld [vmem:[%s449 + $0xc] sm:$0xf]
        %v612 = vld [vmem:[%s449 + $0x10] sm:$0xf]
        %v613 = vld [vmem:[%s449 + $0x14] sm:$0xf]
        %v614 = vld [vmem:[%s449 + $0x18] sm:$0xf]
        %v615 = vld [vmem:[%s449 + $0x1c] sm:$0xf]
        %v616 = vld [vmem:[%s449 + $0x20] sm:$0xf]
        %v617 = vld [vmem:[%s449 + $0x24] sm:$0xf]
        %v618 = vld [vmem:[%s449 + $0x28] sm:$0xf]
        %v619 = vld [vmem:[%s449 + $0x2c] sm:$0xf]
        %v620 = vld [vmem:[%s449 + $0x30] sm:$0xf]
        %v621 = vld [vmem:[%s449 + $0x34] sm:$0xf]
        %v622 = vld [vmem:[%s449 + $0x38] sm:$0xf]
        %v623 = vld [vmem:[%s449 + $0x3c] sm:$0xf]
        %v640 = vunpack.c.l.b16 %v608
        %v641 = vunpack.c.l.b16 %v609
        %v642 = vunpack.c.l.b16 %v610
        %v643 = vunpack.c.l.b16 %v611
        %v644 = vunpack.c.l.b16 %v612
        %v645 = vunpack.c.l.b16 %v613
        %v646 = vunpack.c.l.b16 %v614
        %v647 = vunpack.c.l.b16 %v615
        %v648 = vunpack.c.l.b16 %v616
        %v649 = vunpack.c.l.b16 %v617
        %v650 = vunpack.c.l.b16 %v618
        %v651 = vunpack.c.l.b16 %v619
        %v652 = vunpack.c.l.b16 %v620
        %v653 = vunpack.c.l.b16 %v621
        %v654 = vunpack.c.l.b16 %v622
        %v655 = vunpack.c.l.b16 %v623
        %v656 = vpack.c.b16 %v641, %v640
        %v657 = vpack.c.b16 %v643, %v642
        %v658 = vpack.c.b16 %v645, %v644
        %v659 = vpack.c.b16 %v647, %v646
        %v660 = vpack.c.b16 %v649, %v648
        %v661 = vpack.c.b16 %v651, %v650
        %v662 = vpack.c.b16 %v653, %v652
        %v663 = vpack.c.b16 %v655, %v654
        %672 = vmatpush.bf16.msra.mxu0 %v663
        %673 = vmatpush.bf16.msra.mxu0 %v662
        %674 = vmatpush.bf16.msra.mxu0 %v661
        %675 = vmatpush.bf16.msra.mxu0 %v660
        %676 = vmatpush.bf16.msra.mxu0 %v659
        %677 = vmatpush.bf16.msra.mxu0 %v658
        %678 = vmatpush.bf16.msra.mxu0 %v657
        %679 = vmatpush.bf16.msra.mxu0 %v656
        %680 = vmatmul.bf16.gmra.mxu0 %v530
        %v681 = vpop.f32.mrf.mxu0
        %v682 = vadd.f32 0.0, %v681
        %v683 = vpop.f32.mrf.mxu0
        %684 = vdwg.mxu0
        %v685 = vxor.u32 %v605, 2147483648
        %v686 = vmul.f32 %v685, 1.442695
        %v687 = vpow.pop %v686
        %v688 = vadd.f32 %v687, 1.0
        %v689 = vrcp.pop %v688
        %v690 = vmul.f32 %v688, %v689
        %v691 = vsub.f32 1.0, %v690
        %v692 = vmul.f32 %v689, %v691
        %v693 = vadd.f32 %v689, %v692
        %vm694 = vweird.f32 %v688
        %vm695 = vweird.f32 %v689
        %vm696 = vmor %vm694, %vm695
        %v697 = vsel %vm696, %v689, %v693
        %v698 = vand.u32 2147483647, %v688
        %vm699 = vcmp.eq.f32.partialorder %v698, 8.507059e+37
        %v700 = vand.u32 %v688, 2147483648
        %v701 = vor.u32 1.1754944e-38, %v700
        %v702 = vsel %vm699, %v701, %v697
        %v703 = vmul.f32 1.0, %v702
        %v704 = vmul.f32 %v605, %v703
        %v705 = vmul.f32 %v704, %v682
        %v706 = vpack.c.bf16 %v705, %v705
        %p707 = scmp.eq.s32.totalorder %s21, 0
        // Predicated region
        $region123: #{qwen2_forward.12} parent=113 // pred_check
          %p708 = pneg %p707
        $region124: #{qwen2_forward.12} parent=113 // pred_check_branch
          %710 = sbr.rel (%p708) target = $region126
        $region125: #{qwen2_forward.12} parent=113 // pred_region
          %711 = vst [vmem:[#allocation2] sm:$0xff] 0.0
        $region126: #{qwen2_forward.12} parent=113 // pred_fallthru
          _
        %v712 = vld [vmem:[#allocation2] sm:$0xff]
        %v713 = vld [vmem:[%s494] sm:$0xf]
        %v714 = vld [vmem:[%s494 + $0x4] sm:$0xf]
        %v715 = vld [vmem:[%s494 + $0x8] sm:$0xf]
        %v716 = vld [vmem:[%s494 + $0xc] sm:$0xf]
        %v717 = vld [vmem:[%s494 + $0x10] sm:$0xf]
        %v718 = vld [vmem:[%s494 + $0x14] sm:$0xf]
        %v719 = vld [vmem:[%s494 + $0x18] sm:$0xf]
        %v720 = vld [vmem:[%s494 + $0x1c] sm:$0xf]
        %v721 = vld [vmem:[%s494 + $0x20] sm:$0xf]
        %v722 = vld [vmem:[%s494 + $0x24] sm:$0xf]
        %v723 = vld [vmem:[%s494 + $0x28] sm:$0xf]
        %v724 = vld [vmem:[%s494 + $0x2c] sm:$0xf]
        %v725 = vld [vmem:[%s494 + $0x30] sm:$0xf]
        %v726 = vld [vmem:[%s494 + $0x34] sm:$0xf]
        %v727 = vld [vmem:[%s494 + $0x38] sm:$0xf]
        %v728 = vld [vmem:[%s494 + $0x3c] sm:$0xf]
        %v745 = vunpack.c.l.b16 %v713
        %v746 = vunpack.c.l.b16 %v714
        %v747 = vunpack.c.l.b16 %v715
        %v748 = vunpack.c.l.b16 %v716
        %v749 = vunpack.c.l.b16 %v717
        %v750 = vunpack.c.l.b16 %v718
        %v751 = vunpack.c.l.b16 %v719
        %v752 = vunpack.c.l.b16 %v720
        %v753 = vunpack.c.l.b16 %v721
        %v754 = vunpack.c.l.b16 %v722
        %v755 = vunpack.c.l.b16 %v723
        %v756 = vunpack.c.l.b16 %v724
        %v757 = vunpack.c.l.b16 %v725
        %v758 = vunpack.c.l.b16 %v726
        %v759 = vunpack.c.l.b16 %v727
        %v760 = vunpack.c.l.b16 %v728
        %v761 = vpack.c.b16 %v746, %v745
        %v762 = vpack.c.b16 %v748, %v747
        %v763 = vpack.c.b16 %v750, %v749
        %v764 = vpack.c.b16 %v752, %v751
        %v765 = vpack.c.b16 %v754, %v753
        %v766 = vpack.c.b16 %v756, %v755
        %v767 = vpack.c.b16 %v758, %v757
        %v768 = vpack.c.b16 %v760, %v759
        %777 = vmatpush.bf16.msra.mxu0 %v768
        %778 = vmatpush.bf16.msra.mxu0 %v767
        %779 = vmatpush.bf16.msra.mxu0 %v766
        %780 = vmatpush.bf16.msra.mxu0 %v765
        %781 = vmatpush.bf16.msra.mxu0 %v764
        %782 = vmatpush.bf16.msra.mxu0 %v763
        %783 = vmatpush.bf16.msra.mxu0 %v762
        %784 = vmatpush.bf16.msra.mxu0 %v761
        %785 = vmatmul.bf16.gmra.mxu0 %v706
        %v786 = vpop.f32.mrf.mxu0
        %v787 = vadd.f32 0.0, %v786
        %v788 = vpop.f32.mrf.mxu0
        %789 = vdwg.mxu0
        %v790 = vadd.f32 %v712, %v787
        %791 = vst [vmem:[#allocation2] sm:$0xff] %v790
        %p792 = scmp.eq.s32.totalorder %s21, 1
        // Predicated region
        $region127: #{qwen2_forward.12} parent=113 // pred_check
          %p793 = pneg %p792
        $region128: #{qwen2_forward.12} parent=113 // pred_check_branch
          %795 = sbr.rel (%p793) target = $region130
        $region129: #{qwen2_forward.12} parent=113 // pred_region
          %v796 = vld [vmem:[#allocation2] sm:$0xff]
          %v797 = vadd.f32 %v501, %v796
          %v798 = vpack.c.bf16 %v797, %v797
          %799 = vst [vmem:[%s499] sm:$0xf] %v798
        $region130: #{qwen2_forward.12} parent=113 // pred_fallthru
          _
        %p800 = scmp.lt.s32.totalorder %s20, 1
        %s801 = scalar_select %p800, %s20, 1
        %s802 = smul.addr %s801, 4
        %s803 = scalar_lea.vmem %s5, %s802
        // Predicated region
        $region131: #{qwen2_forward.12} parent=113 // pred_check
          %p804 = pneg %p171
        $region132: #{qwen2_forward.12} parent=113 // pred_check_branch
          %806 = sbr.rel (%p804) target = $region134
        $region133: #{qwen2_forward.12} parent=113 // pred_region
          _
        $region134: #{qwen2_forward.12} parent=113 // pred_fallthru
          _
      $region114: #{qwen2_forward.12} parent=5 // pred_fallthru
        _
      %p807 = scmp.le.s32.totalorder 2, %s11
      // Predicated region
      $region135: #{qwen2_forward.12} parent=5 // pred_check
        %p808 = pneg %p807
      $region136: #{qwen2_forward.12} parent=5 // pred_check_branch
        %810 = sbr.rel (%p808) target = $region138
      $region137: #{qwen2_forward.12} parent=5 // pred_region
        %s811 = ssub.s32 %s11, 2
        // Predicated region
        $region139: #{qwen2_forward.12} parent=137 // pred_check
          %p812 = pneg %p177
        $region140: #{qwen2_forward.12} parent=137 // pred_check_branch
          %814 = sbr.rel (%p812) target = $region142
        $region141: #{qwen2_forward.12} parent=137 // pred_region
          %p815 = scmp.lt.s32.totalorder %s22, 1
          %s816 = scalar_select %p815, %s22, 1
          %s817 = smul.addr %s816, 4
          %s818 = scalar_lea.vmem %s5, %s817
        $region142: #{qwen2_forward.12} parent=137 // pred_fallthru
          _
      $region138: #{qwen2_forward.12} parent=5 // pred_fallthru
        _
    $region6: #{qwen2_forward.12} parent=1 // loop_footer
      %s15 = sadd.s32 1, %s11
    $region7: #{qwen2_forward.12} parent=1 // loop_footer_branch
      %10 = sbr.rel target = $region3
    $region8: #{qwen2_forward.12} parent=1 // loop_exit
      _

</llo_original>
